<compile_context>
chip_gen: v7x
topology: tpu7x:2x2x1
jax: 0.10.0
libtpu: 0.0.40
codegen_flags: <defaults>
</compile_context>

<pallas_src>
import functools

import jax
import jax.numpy as jnp
from jax.experimental import pallas as pl
from jax.experimental.pallas import tpu as pltpu

NUM_CLASSES = 10      # len(disease_uniques) is data-dependent; fixed small value here
NCLS_PAD = 128        # fc output padded to a full lane width (lane-dense stores)
STEM_CH = 40          # EfficientNet-B3 stem width
STEM_PAD = 128        # stem width zero-padded to one full vreg lane width
HEAD_CH = 1536        # n_channels_dict['efficientnet-b3']
NCORES = 2            # split of the row axis across v7x's 2 TensorCores
TM_CAP = 1024         # row tile (per perf review: 4x fewer grid steps than 256)


def _round_up(x, m):
    return ((x + m - 1) // m) * m


# ---------------------------------------------------------------------------
# Fused Pallas kernel: stem matmul+BN+swish -> head matmul+BN+swish -> GAP -> fc
# ---------------------------------------------------------------------------

def _fused_kernel(x_ref, ws_ref, bs_ref, wh_ref, bh_ref, wf_ref,
                  o_ref, acc_ref, *, hw, tm, n_mh, need_mask):
    c = pl.program_id(1)          # core-split index (parallel)
    m = pl.program_id(2)          # row-tile index within this core's half (arbitrary)

    @pl.when(m == 0)
    def _():
        acc_ref[...] = jnp.zeros_like(acc_ref)

    x = x_ref[0]                                                  # [TM, Kp] bf16

    # Stem: conv (matmul over im2col patches, fp32 acc) + folded-BN bias + bf16 swish
    stem = jnp.dot(x, ws_ref[...], preferred_element_type=jnp.float32)
    sb = (stem + bs_ref[...]).astype(jnp.bfloat16)
    stem_act = sb * jax.nn.sigmoid(sb)                            # [TM, STEM_PAD] bf16

    # Head: 1x1 conv -> 1536 channels (fp32 acc) + folded-BN bias + bf16 swish
    head = jnp.dot(stem_act, wh_ref[...], preferred_element_type=jnp.float32)
    hb = (head + bh_ref[...]).astype(jnp.bfloat16)
    act = hb * jax.nn.sigmoid(hb)                                 # [TM, HEAD_CH] bf16

    # Mask rows that are pure zero-padding of the spatial axis.
    # NOTE: hw/tm/n_mh are trace-time Python ints; padded rows equal swish(bias) != 0
    # and MUST be masked whenever the padded row count differs from hw.
    if need_mask:
        row = (c * n_mh + m) * tm + jax.lax.broadcasted_iota(jnp.int32, (tm, 1), 0)
        act = jnp.where(row < hw, act, jnp.zeros_like(act))

    # Global-average-pool partial sum: sublane-aligned [8, HEAD_CH] fp32 accumulator.
    # Leading-axis sum is pure VALU vreg adds; the cross-sublane reduce happens once
    # in the finalize below.
    acc_ref[...] += jnp.sum(
        act.astype(jnp.float32).reshape(tm // 8, 8, HEAD_CH), axis=0)

    # Finalize this core's half: divide by H*W, dropout(eval)=identity, partial fc.
    # (fc is linear -> per-core partial logits sum to the full logits; bias is added
    #  once outside the kernel after the cross-core combine.)
    @pl.when(m == n_mh - 1)
    def _():
        feat = jnp.sum(acc_ref[...], axis=0, keepdims=True) * (1.0 / hw)   # [1, HEAD_CH]
        part = jnp.dot(feat.astype(jnp.bfloat16), wf_ref[...],
                       preferred_element_type=jnp.float32)                 # [1, NCLS_PAD]
        o_ref[...] = part.reshape(1, 1, 1, -1)


def fused_forward(patches, ws, bs, wh, bh, wf, *, hw, tm):
    """patches: [B, M_pad, Kp] bf16 with M_pad % (NCORES*tm) == 0.
    Returns per-core partial logits [B, NCORES, 1, NCLS_PAD] (no fc bias)."""
    B, m_pad, kp = patches.shape
    n_mh = m_pad // (NCORES * tm)
    need_mask = (m_pad != hw)
    kernel = functools.partial(_fused_kernel, hw=hw, tm=tm, n_mh=n_mh,
                               need_mask=need_mask)

    # TODO(synk): the grid-invariant weight inputs could use pipeline_mode=pl.Buffered(1)
    #             to drop their double buffers (~1 MB); left default for robustness.
    out = pl.pallas_call(
        kernel,
        out_shape=jax.ShapeDtypeStruct((B, NCORES, 1, NCLS_PAD), jnp.float32),
        grid=(B, NCORES, n_mh),
        in_specs=[
            pl.BlockSpec((1, tm, kp), lambda b, c, m: (b, c * n_mh + m, 0)),  # patches
            pl.BlockSpec((kp, STEM_PAD), lambda b, c, m: (0, 0)),             # stem W
            pl.BlockSpec((1, STEM_PAD), lambda b, c, m: (0, 0)),              # stem bias
            pl.BlockSpec((STEM_PAD, HEAD_CH), lambda b, c, m: (0, 0)),        # head W
            pl.BlockSpec((1, HEAD_CH), lambda b, c, m: (0, 0)),               # head bias
            pl.BlockSpec((HEAD_CH, NCLS_PAD), lambda b, c, m: (0, 0)),        # fc W (padded)
        ],
        out_specs=pl.BlockSpec((1, 1, 1, NCLS_PAD), lambda b, c, m: (b, c, 0, 0)),
        scratch_shapes=[pltpu.VMEM((8, HEAD_CH), jnp.float32)],               # GAP accumulator
        compiler_params=pltpu.CompilerParams(
            dimension_semantics=("parallel", "parallel", "arbitrary"),
            vmem_limit_bytes=40 * 1024 * 1024,
        ),
    )(patches, ws, bs, wh, bh, wf)
    return out


# ---------------------------------------------------------------------------
# Glue: im2col for the stem 3x3 stride-2 SAME conv (bf16 end-to-end, jit-fused)
# ---------------------------------------------------------------------------
# TODO(synk): the 9 conv taps could be read in-kernel with strided DMA to avoid the
#             9x patch materialization in HBM; kept as XLA glue (bf16, fused under jit).

def im2col_3x3_s2_same(x_nhwc):
    """TF-style SAME padding for k=3, s=2. Returns [N, Ho*Wo, 9*Cin], (Ho, Wo)."""
    N, H, W, C = x_nhwc.shape
    Ho, Wo = -(-H // 2), -(-W // 2)
    pad_h = max((Ho - 1) * 2 + 3 - H, 0)
    pad_w = max((Wo - 1) * 2 + 3 - W, 0)
    xp = jnp.pad(
        x_nhwc,
        ((0, 0), (pad_h // 2, pad_h - pad_h // 2), (pad_w // 2, pad_w - pad_w // 2), (0, 0)),
    )
    patches = []
    for di in range(3):
        for dj in range(3):
            patches.append(xp[:, di:di + 2 * Ho:2, dj:dj + 2 * Wo:2, :])  # [N,Ho,Wo,C]
    patches = jnp.concatenate(patches, axis=-1)                           # [N,Ho,Wo,9C]
    return patches.reshape(N, Ho * Wo, 9 * C), (Ho, Wo)


# ---------------------------------------------------------------------------
# Parameters (deterministic synthetic init), BN-fold + padding, forward
# ---------------------------------------------------------------------------

def init_params(key, c_in=3, num_classes=NUM_CLASSES):
    k = jax.random.split(key, 4)
    w_stem = jax.random.normal(k[0], (9 * c_in, STEM_CH), jnp.float32) * 0.1
    stem_scale = jnp.full((1, STEM_CH), 0.9, jnp.float32)   # folded BN (deterministic stats)
    stem_bias = jnp.full((1, STEM_CH), 0.05, jnp.float32)
    w_head = jax.random.normal(k[1], (STEM_CH, HEAD_CH), jnp.float32) * 0.05
    head_scale = jnp.full((1, HEAD_CH), 1.1, jnp.float32)
    head_bias = jnp.full((1, HEAD_CH), -0.02, jnp.float32)
    w_fc = jax.random.normal(k[2], (HEAD_CH, num_classes), jnp.float32) * 0.02
    b_fc = jax.random.normal(k[3], (1, num_classes), jnp.float32) * 0.01
    return dict(w_stem=w_stem, stem_scale=stem_scale, stem_bias=stem_bias,
                w_head=w_head, head_scale=head_scale, head_bias=head_bias,
                w_fc=w_fc, b_fc=b_fc)


def prepare_params(p, c_in=3):
    """Fold BN scales into weights, zero-pad to MXU/lane-friendly shapes, cast to bf16."""
    k_raw = 9 * c_in
    kp = _round_up(k_raw, 8)                                   # 27 -> 32 for c_in=3

    ws = p["w_stem"] * p["stem_scale"]                         # [27, 40]
    ws = jnp.pad(ws, ((0, kp - k_raw), (0, STEM_PAD - STEM_CH)))
    bs = jnp.pad(p["stem_bias"], ((0, 0), (0, STEM_PAD - STEM_CH)))  # pad 0 -> swish(0)=0

    wh = p["w_head"] * p["head_scale"]                         # [40, 1536]
    wh = jnp.pad(wh, ((0, STEM_PAD - STEM_CH), (0, 0)))
    bh = p["head_bias"]

    ncls = p["w_fc"].shape[1]
    wf = jnp.pad(p["w_fc"], ((0, 0), (0, NCLS_PAD - ncls)))    # [1536, 128]
    bf = jnp.pad(p["b_fc"], ((0, 0), (0, NCLS_PAD - ncls)))    # [1, 128]

    return dict(
        ws=ws.astype(jnp.bfloat16), bs=bs.astype(jnp.float32),
        wh=wh.astype(jnp.bfloat16), bh=bh.astype(jnp.float32),
        wf=wf.astype(jnp.bfloat16), bf=bf.astype(jnp.float32),
    )


def _model_forward(x_nchw, kp_params):
    """Forward pass of Model (EfficientNet-B3 wrapper) -> logits [N, num_classes]."""
    x = jnp.transpose(x_nchw, (0, 2, 3, 1)).astype(jnp.bfloat16)   # NCHW -> NHWC, bf16

    patches, (Ho, Wo) = im2col_3x3_s2_same(x)                      # [B, HW, 9C] bf16
    B, hw, k_raw = patches.shape
    kp = _round_up(k_raw, 8)

    tm = min(TM_CAP, _round_up(hw, 8))                             # large row tile
    m_pad = _round_up(hw, NCORES * tm)                             # even split over cores
    patches = jnp.pad(patches, ((0, 0), (0, m_pad - hw), (0, kp - k_raw)))

    part = fused_forward(
        patches,
        kp_params["ws"], kp_params["bs"],
        kp_params["wh"], kp_params["bh"],
        kp_params["wf"],
        hw=hw, tm=tm,
    )                                                              # [B, NCORES, 1, 128]

    # Cross-core combine + fc bias (added once), then slice the padded classes away.
    logits = part.sum(axis=1)[:, 0, :] + kp_params["bf"]           # [B, 128]
    return logits[:, :NUM_CLASSES]


model_forward = jax.jit(_model_forward)


if __name__ == "__main__":
    key = jax.random.PRNGKey(0)
    k_x, k_p = jax.random.split(key)
    x = jax.random.normal(k_x, (2, 3, 16, 16), jnp.float32)   # NCHW like PyTorch
    params = init_params(k_p)
    kparams = prepare_params(params, c_in=3)

    out = model_forward(x, kparams)
    out = jax.block_until_ready(out)
    assert out.shape == (2, NUM_CLASSES)
    assert out.dtype == jnp.float32
    assert bool(jnp.isfinite(out).all())
    print("KERNEL_OK")
</pallas_src>

<mosaic_0001>
module attributes {stable_mosaic.version = 11 : i64} {
  func.func @_fused_kernel(%arg0: i32, %arg1: i32, %arg2: i32, %arg3: memref<1x64x32xbf16, #tpu.memory_space<vmem>>, %arg4: memref<32x128xbf16, #tpu.memory_space<vmem>>, %arg5: memref<1x128xf32, #tpu.memory_space<vmem>>, %arg6: memref<128x1536xbf16, #tpu.memory_space<vmem>>, %arg7: memref<1x1536xf32, #tpu.memory_space<vmem>>, %arg8: memref<1536x128xbf16, #tpu.memory_space<vmem>>, %arg9: memref<1x1x1x128xf32, #tpu.memory_space<vmem>>, %arg10: memref<8x1536xf32, #tpu.memory_space<vmem>>) attributes {dimension_semantics = [#tpu.dimension_semantics<parallel>, #tpu.dimension_semantics<parallel>, #tpu.dimension_semantics<arbitrary>], iteration_bounds = array<i64: 2, 2, 1>, scalar_prefetch = 0 : i64, scratch_operands = 1 : i64, tpu.core_type = #tpu.core_type<tc>, window_params = [{transform_indices = @transform_0, window_bounds = array<i64: 1, 64, 32>}, {pipeline_mode = #tpu.pipeline_mode<synchronous>, transform_indices = @transform_1, window_bounds = array<i64: 32, 128>}, {pipeline_mode = #tpu.pipeline_mode<synchronous>, transform_indices = @transform_2, window_bounds = array<i64: 1, 128>}, {pipeline_mode = #tpu.pipeline_mode<synchronous>, transform_indices = @transform_3, window_bounds = array<i64: 128, 1536>}, {pipeline_mode = #tpu.pipeline_mode<synchronous>, transform_indices = @transform_4, window_bounds = array<i64: 1, 1536>}, {pipeline_mode = #tpu.pipeline_mode<synchronous>, transform_indices = @transform_5, window_bounds = array<i64: 1536, 128>}, {transform_indices = @transform_6, window_bounds = array<i64: 1, 1, 1, 128>}]} {
    %c0_i32 = arith.constant 0 : i32
    %0 = arith.cmpi eq, %arg2, %c0_i32 : i32
    %1 = arith.extui %0 : i1 to i32
    %c0_i32_0 = arith.constant 0 : i32
    %2 = arith.cmpi ne, %1, %c0_i32_0 : i32
    scf.if %2 {
      %cst_23 = arith.constant 0.000000e+00 : f32
      %50 = vector.broadcast %cst_23 : f32 to vector<8x1536xf32>
      %c0_24 = arith.constant 0 : index
      %c0_25 = arith.constant 0 : index
      %51 = vector.load %arg10[%c0_24, %c0_25] : memref<8x1536xf32, #tpu.memory_space<vmem>>, vector<8x1536xf32>
      tpu.vector_store %arg10[%c0_24, %c0_25], %50 {strides = array<i32>} : memref<8x1536xf32, #tpu.memory_space<vmem>>, vector<8x1536xf32>,
    } else {
    }
    %c0 = arith.constant 0 : index
    %c0_1 = arith.constant 0 : index
    %c0_2 = arith.constant 0 : index
    %3 = vector.load %arg3[%c0, %c0_1, %c0_2] : memref<1x64x32xbf16, #tpu.memory_space<vmem>>, vector<1x64x32xbf16>
    %4 = vector.shape_cast %3 : vector<1x64x32xbf16> to vector<64x32xbf16>
    %c0_3 = arith.constant 0 : index
    %c0_4 = arith.constant 0 : index
    %5 = vector.load %arg4[%c0_3, %c0_4] : memref<32x128xbf16, #tpu.memory_space<vmem>>, vector<32x128xbf16>
    %cst = arith.constant dense<0.000000e+00> : vector<64x128xf32>
    %6 = tpu.matmul %4, %5, %cst {dimension_numbers = #tpu.dot_dimension_numbers<[1], [0], [0], [1], [0, 0, 1, 1], [], []>} : vector<64x32xbf16>, vector<32x128xbf16>, vector<64x128xf32> -> vector<64x128xf32>
    %c0_5 = arith.constant 0 : index
    %c0_6 = arith.constant 0 : index
    %7 = vector.load %arg5[%c0_5, %c0_6] : memref<1x128xf32, #tpu.memory_space<vmem>>, vector<1x128xf32>
    %8 = vector.broadcast %7 : vector<1x128xf32> to vector<64x128xf32>
    %9 = arith.addf %6, %8 : vector<64x128xf32>
    %10 = arith.truncf %9 : vector<64x128xf32> to vector<64x128xbf16>
    %11 = arith.negf %10 : vector<64x128xbf16>
    %12 = math.exp %11 : vector<64x128xbf16>
    %cst_7 = arith.constant 1.000000e+00 : bf16
    %13 = vector.broadcast %cst_7 : bf16 to vector<64x128xbf16>
    %14 = arith.addf %13, %12 : vector<64x128xbf16>
    %15 = arith.divf %13, %14 : vector<64x128xbf16>
    %16 = arith.mulf %10, %15 : vector<64x128xbf16>
    %c0_8 = arith.constant 0 : index
    %c0_9 = arith.constant 0 : index
    %17 = vector.load %arg6[%c0_8, %c0_9] : memref<128x1536xbf16, #tpu.memory_space<vmem>>, vector<128x1536xbf16>
    %cst_10 = arith.constant dense<0.000000e+00> : vector<64x1536xf32>
    %18 = tpu.matmul %16, %17, %cst_10 {dimension_numbers = #tpu.dot_dimension_numbers<[1], [0], [0], [1], [0, 0, 1, 1], [], []>} : vector<64x128xbf16>, vector<128x1536xbf16>, vector<64x1536xf32> -> vector<64x1536xf32>
    %c0_11 = arith.constant 0 : index
    %c0_12 = arith.constant 0 : index
    %19 = vector.load %arg7[%c0_11, %c0_12] : memref<1x1536xf32, #tpu.memory_space<vmem>>, vector<1x1536xf32>
    %20 = vector.broadcast %19 : vector<1x1536xf32> to vector<64x1536xf32>
    %21 = arith.addf %18, %20 : vector<64x1536xf32>
    %22 = arith.truncf %21 : vector<64x1536xf32> to vector<64x1536xbf16>
    %23 = arith.negf %22 : vector<64x1536xbf16>
    %24 = math.exp %23 : vector<64x1536xbf16>
    %cst_13 = arith.constant 1.000000e+00 : bf16
    %25 = vector.broadcast %cst_13 : bf16 to vector<64x1536xbf16>
    %26 = arith.addf %25, %24 : vector<64x1536xbf16>
    %27 = arith.divf %25, %26 : vector<64x1536xbf16>
    %28 = arith.mulf %22, %27 : vector<64x1536xbf16>
    %c1_i32 = arith.constant 1 : i32
    %29 = arith.muli %arg1, %c1_i32 : i32
    %30 = arith.addi %29, %arg2 : i32
    %c64_i32 = arith.constant 64 : i32
    %31 = arith.muli %30, %c64_i32 : i32
    %32 = tpu.iota {dimensions = array<i32: 0>} : vector<64x1xi32>
    %33 = vector.broadcast %31 : i32 to vector<64x1xi32>
    %34 = arith.addi %33, %32 : vector<64x1xi32>
    %c64_i32_14 = arith.constant 64 : i32
    %35 = vector.broadcast %c64_i32_14 : i32 to vector<64x1xi32>
    %36 = arith.cmpi slt, %34, %35 : vector<64x1xi32>
    %cst_15 = arith.constant 0.000000e+00 : bf16
    %37 = vector.broadcast %cst_15 : bf16 to vector<64x1536xbf16>
    %38 = vector.shape_cast %36 : vector<64x1xi1> to vector<64x1xi1>
    %39 = vector.broadcast %38 : vector<64x1xi1> to vector<64x1536xi1>
    %40 = arith.select %39, %28, %37 : vector<64x1536xi1>, vector<64x1536xbf16>
    %c0_16 = arith.constant 0 : index
    %c0_17 = arith.constant 0 : index
    %41 = vector.load %arg10[%c0_16, %c0_17] : memref<8x1536xf32, #tpu.memory_space<vmem>>, vector<8x1536xf32>
    %42 = arith.extf %40 : vector<64x1536xbf16> to vector<64x1536xf32>
    %43 = vector.shape_cast %42 : vector<64x1536xf32> to vector<8x8x1536xf32>
    %cst_18 = arith.constant dense<0.000000e+00> : vector<8x1536xf32>
    %44 = vector.multi_reduction <add>, %43, %cst_18 [0] : vector<8x8x1536xf32> to vector<8x1536xf32>
    %45 = arith.addf %41, %44 : vector<8x1536xf32>
    %c0_19 = arith.constant 0 : index
    %c0_20 = arith.constant 0 : index
    %46 = vector.load %arg10[%c0_19, %c0_20] : memref<8x1536xf32, #tpu.memory_space<vmem>>, vector<8x1536xf32>
    tpu.vector_store %arg10[%c0_19, %c0_20], %45 {strides = array<i32>} : memref<8x1536xf32, #tpu.memory_space<vmem>>, vector<8x1536xf32>,
    %c0_i32_21 = arith.constant 0 : i32
    %47 = arith.cmpi eq, %arg2, %c0_i32_21 : i32
    %48 = arith.extui %47 : i1 to i32
    %c0_i32_22 = arith.constant 0 : i32
    %49 = arith.cmpi ne, %48, %c0_i32_22 : i32
    scf.if %49 {
      %c0_23 = arith.constant 0 : index
      %c0_24 = arith.constant 0 : index
      %50 = vector.load %arg10[%c0_23, %c0_24] : memref<8x1536xf32, #tpu.memory_space<vmem>>, vector<8x1536xf32>
      %cst_25 = arith.constant dense<0.000000e+00> : vector<1536xf32>
      %51 = vector.multi_reduction <add>, %50, %cst_25 [0] : vector<8x1536xf32> to vector<1536xf32>
      %52 = vector.shape_cast %51 : vector<1536xf32> to vector<1x1536xf32>
      %cst_26 = arith.constant 1.562500e-02 : f32
      %53 = vector.broadcast %cst_26 : f32 to vector<1x1536xf32>
      %54 = arith.mulf %52, %53 : vector<1x1536xf32>
      %55 = arith.truncf %54 : vector<1x1536xf32> to vector<1x1536xbf16>
      %c0_27 = arith.constant 0 : index
      %c0_28 = arith.constant 0 : index
      %56 = vector.load %arg8[%c0_27, %c0_28] : memref<1536x128xbf16, #tpu.memory_space<vmem>>, vector<1536x128xbf16>
      %cst_29 = arith.constant dense<0.000000e+00> : vector<1x128xf32>
      %57 = tpu.matmul %55, %56, %cst_29 {dimension_numbers = #tpu.dot_dimension_numbers<[1], [0], [0], [1], [0, 0, 1, 1], [], []>} : vector<1x1536xbf16>, vector<1536x128xbf16>, vector<1x128xf32> -> vector<1x128xf32>
      %58 = vector.shape_cast %57 : vector<1x128xf32> to vector<1x1x1x128xf32>
      %c0_30 = arith.constant 0 : index
      %c0_31 = arith.constant 0 : index
      %c0_32 = arith.constant 0 : index
      %c0_33 = arith.constant 0 : index
      %59 = vector.load %arg9[%c0_30, %c0_31, %c0_32, %c0_33] : memref<1x1x1x128xf32, #tpu.memory_space<vmem>>, vector<1x1x1x128xf32>
      tpu.vector_store %arg9[%c0_30, %c0_31, %c0_32, %c0_33], %58 {strides = array<i32>} : memref<1x1x1x128xf32, #tpu.memory_space<vmem>>, vector<1x1x1x128xf32>,
    } else {
    }
    return
  }
  func.func @transform_0(%arg0: i32, %arg1: i32, %arg2: i32) -> (i32, i32, i32) {
    %c1_i32 = arith.constant 1 : i32
    %0 = arith.muli %arg1, %c1_i32 : i32
    %1 = arith.addi %0, %arg2 : i32
    %c0_i32 = arith.constant 0 : i32
    %c0_i32_0 = arith.constant 0 : i32
    return %arg0, %1, %c0_i32 : i32, i32, i32
  }
  func.func @transform_1(%arg0: i32, %arg1: i32, %arg2: i32) -> (i32, i32) {
    %c0_i32 = arith.constant 0 : i32
    %c0_i32_0 = arith.constant 0 : i32
    %c0_i32_1 = arith.constant 0 : i32
    return %c0_i32, %c0_i32_0 : i32, i32
  }
  func.func @transform_2(%arg0: i32, %arg1: i32, %arg2: i32) -> (i32, i32) {
    %c0_i32 = arith.constant 0 : i32
    %c0_i32_0 = arith.constant 0 : i32
    %c0_i32_1 = arith.constant 0 : i32
    return %c0_i32, %c0_i32_0 : i32, i32
  }
  func.func @transform_3(%arg0: i32, %arg1: i32, %arg2: i32) -> (i32, i32) {
    %c0_i32 = arith.constant 0 : i32
    %c0_i32_0 = arith.constant 0 : i32
    %c0_i32_1 = arith.constant 0 : i32
    return %c0_i32, %c0_i32_0 : i32, i32
  }
  func.func @transform_4(%arg0: i32, %arg1: i32, %arg2: i32) -> (i32, i32) {
    %c0_i32 = arith.constant 0 : i32
    %c0_i32_0 = arith.constant 0 : i32
    %c0_i32_1 = arith.constant 0 : i32
    return %c0_i32, %c0_i32_0 : i32, i32
  }
  func.func @transform_5(%arg0: i32, %arg1: i32, %arg2: i32) -> (i32, i32) {
    %c0_i32 = arith.constant 0 : i32
    %c0_i32_0 = arith.constant 0 : i32
    %c0_i32_1 = arith.constant 0 : i32
    return %c0_i32, %c0_i32_0 : i32, i32
  }
  func.func @transform_6(%arg0: i32, %arg1: i32, %arg2: i32) -> (i32, i32, i32, i32) {
    %c0_i32 = arith.constant 0 : i32
    %c0_i32_0 = arith.constant 0 : i32
    %c0_i32_1 = arith.constant 0 : i32
    return %arg0, %arg1, %c0_i32, %c0_i32_0 : i32, i32, i32, i32
  }
}

</mosaic_0001>

<llo_original>
// kernel: _model_forward.1
$region0: #{_model_forward.1}
  #allocation0 [shape = 'u32[]', space=smem, size = 0x4, offset = 0x4, fixed_abs, tag = 'smem constant byte address 0x4 - core index']
  #allocation1 [shape = 'u32[144,128]{1,0:T(1,128)}', space=vmem, size = 0x12000, scoped, tag = 'internal scratch']
  #allocation2 [shape = 'f32[8,1536]{1,0:T(8,128)}', space=vmem, size = 0xc000, scoped, tag = 'scratch operand']
  %s0 = inlined_call_operand.vmem [shape: bf16[2,128,32], index: 0, kind: input, shape index: {}]
  %s1 = inlined_call_operand.vmem [shape: bf16[32,128], index: 1, kind: input, shape index: {}]
  %s2 = inlined_call_operand.vmem [shape: f32[1,128], index: 2, kind: input, shape index: {}]
  %s3 = inlined_call_operand.vmem [shape: bf16[128,1536], index: 3, kind: input, shape index: {}]
  %s4 = inlined_call_operand.vmem [shape: f32[1,1536], index: 4, kind: input, shape index: {}]
  %s5 = inlined_call_operand.vmem [shape: bf16[1536,128], index: 5, kind: input, shape index: {}]
  %s6 = inlined_call_operand.vmem [shape: f32[2,2,1,128], index: 6, kind: output, shape index: {}]
  %s7 = sld [smem:[#allocation0]]
  $region65: #{_model_forward.1} parent=0
    _
  %s9 = ssub.s32 1, %s7
  %s10 = scalar_select 0, %s9, %s7
  loop: start=0, step=1, limit=6
  $region2: #{_model_forward.1} parent=0 // loop_pre_header
    _
  $region3: #{_model_forward.1} parent=0 // loop_header
    %s12 = sphi 0, %s16
    %p13 = scmp.ge.s32.totalorder %s12, 6
    %s19 = sphi 0, %s38
    %s20 = sphi 0, %s34
    %s21 = sphi 0, %s30
    %s22 = sphi 0, %s19
    %s23 = sphi 0, %s20
    %s24 = sphi 0, %s21
    %s25 = sphi 0, %s22
    %s26 = sphi 0, %s23
    %s27 = sphi 0, %s24
    %s45 = sphi 0, %s47
    %s48 = sphi 0, %s45
    %s49 = sphi 0, %s48
    %s65 = sphi 0, %s49
    %s69 = sphi 0, %s69
    %s71 = sphi 0, %s69
    %s72 = sphi 0, %s71
    %s86 = sphi 0, %s72
    %s90 = sphi 0, %s90
    %s92 = sphi 0, %s90
    %s93 = sphi 0, %s92
    %s107 = sphi 0, %s93
    %s111 = sphi 0, %s111
    %s113 = sphi 0, %s111
    %s114 = sphi 0, %s113
    %s128 = sphi 0, %s114
    %s132 = sphi 0, %s132
    %s134 = sphi 0, %s132
    %s135 = sphi 0, %s134
    %s149 = sphi 0, %s135
    %s153 = sphi 0, %s153
    %s155 = sphi 0, %s153
    %s156 = sphi 0, %s155
    %s170 = sphi 0, %s156
    %s178 = sphi 0, %s180
    %s181 = sphi 0, %s178
    %s182 = sphi 0, %s181
    %s198 = sphi 0, %s182
  $region4: #{_model_forward.1} parent=0 // loop_header_branch
    %15 = sbr.rel (%p13) target = $region8
  $region5: #{_model_forward.1} parent=0 // loop_body
    %s17 = ssub.s32 %s12, 1
    %s18 = ssub.s32 %s12, 2
    %s28 = sadd.s32 1, %s21
    %p29 = scmp.ge.s32.totalorder %s28, 1
    %s30 = scalar_select %p29, 0, %s28
    %s31 = sadd.s32 1, %s20
    %s32 = scalar_select %p29, %s31, %s20
    %p33 = scmp.ge.s32.totalorder %s32, 2
    %s34 = scalar_select %p33, 0, %s32
    %s35 = sadd.s32 1, %s19
    %s36 = scalar_select %p33, %s35, %s19
    %p37 = scmp.ge.s32.totalorder %s36, 2
    %s38 = scalar_select %p37, 0, %s36
    %s39 = sadd.s32 %s20, %s21
    %s40 = sadd.s32 %s34, %s30
    %s41 = ssub.s32 %s19, %s38
    %s42 = ssub.s32 %s39, %s40
    %s43 = sor.u32 %s41, %s42
    %p44 = scmp.eq.s32.totalorder %s43, 0
    %s46 = sadd.s32 %s45, 1
    %s47 = scalar_select %p44, %s45, %s46
    %p50 = pneg %p44
    %p51 = scmp.eq.s32.totalorder %s12, 3
    %p52 = por %p50, %p51
    %p53 = scmp.ne.s32.totalorder %s45, %s48
    %p54 = scmp.eq.s32.totalorder %s12, 0
    %p55 = por %p53, %p54
    %p56 = scmp.ne.s32.totalorder %s45, %s48
    %p57 = scmp.eq.s32.totalorder %s17, 3
    %p58 = por %p56, %p57
    %p59 = scmp.ne.s32.totalorder %s48, %s49
    %p60 = scmp.eq.s32.totalorder %s17, 0
    %p61 = por %p59, %p60
    %p62 = scmp.ne.s32.totalorder %s48, %s49
    %p63 = scmp.eq.s32.totalorder %s18, 3
    %p64 = por %p62, %p63
    %p66 = scmp.ne.s32.totalorder %s49, %s65
    %p67 = scmp.eq.s32.totalorder %s18, 0
    %p68 = por %p66, %p67
    %s70 = sadd.s32 %s69, 1
    %p73 = scmp.eq.s32.totalorder %s12, 3
    %p74 = scmp.ne.s32.totalorder %s69, %s71
    %p75 = scmp.eq.s32.totalorder %s12, 0
    %p76 = por %p74, %p75
    %p77 = scmp.ne.s32.totalorder %s69, %s71
    %p78 = scmp.eq.s32.totalorder %s17, 3
    %p79 = por %p77, %p78
    %p80 = scmp.ne.s32.totalorder %s71, %s72
    %p81 = scmp.eq.s32.totalorder %s17, 0
    %p82 = por %p80, %p81
    %p83 = scmp.ne.s32.totalorder %s71, %s72
    %p84 = scmp.eq.s32.totalorder %s18, 3
    %p85 = por %p83, %p84
    %p87 = scmp.ne.s32.totalorder %s72, %s86
    %p88 = scmp.eq.s32.totalorder %s18, 0
    %p89 = por %p87, %p88
    %s91 = sadd.s32 %s90, 1
    %p94 = scmp.eq.s32.totalorder %s12, 3
    %p95 = scmp.ne.s32.totalorder %s90, %s92
    %p96 = scmp.eq.s32.totalorder %s12, 0
    %p97 = por %p95, %p96
    %p98 = scmp.ne.s32.totalorder %s90, %s92
    %p99 = scmp.eq.s32.totalorder %s17, 3
    %p100 = por %p98, %p99
    %p101 = scmp.ne.s32.totalorder %s92, %s93
    %p102 = scmp.eq.s32.totalorder %s17, 0
    %p103 = por %p101, %p102
    %p104 = scmp.ne.s32.totalorder %s92, %s93
    %p105 = scmp.eq.s32.totalorder %s18, 3
    %p106 = por %p104, %p105
    %p108 = scmp.ne.s32.totalorder %s93, %s107
    %p109 = scmp.eq.s32.totalorder %s18, 0
    %p110 = por %p108, %p109
    %s112 = sadd.s32 %s111, 1
    %p115 = scmp.eq.s32.totalorder %s12, 3
    %p116 = scmp.ne.s32.totalorder %s111, %s113
    %p117 = scmp.eq.s32.totalorder %s12, 0
    %p118 = por %p116, %p117
    %p119 = scmp.ne.s32.totalorder %s111, %s113
    %p120 = scmp.eq.s32.totalorder %s17, 3
    %p121 = por %p119, %p120
    %p122 = scmp.ne.s32.totalorder %s113, %s114
    %p123 = scmp.eq.s32.totalorder %s17, 0
    %p124 = por %p122, %p123
    %p125 = scmp.ne.s32.totalorder %s113, %s114
    %p126 = scmp.eq.s32.totalorder %s18, 3
    %p127 = por %p125, %p126
    %p129 = scmp.ne.s32.totalorder %s114, %s128
    %p130 = scmp.eq.s32.totalorder %s18, 0
    %p131 = por %p129, %p130
    %s133 = sadd.s32 %s132, 1
    %p136 = scmp.eq.s32.totalorder %s12, 3
    %p137 = scmp.ne.s32.totalorder %s132, %s134
    %p138 = scmp.eq.s32.totalorder %s12, 0
    %p139 = por %p137, %p138
    %p140 = scmp.ne.s32.totalorder %s132, %s134
    %p141 = scmp.eq.s32.totalorder %s17, 3
    %p142 = por %p140, %p141
    %p143 = scmp.ne.s32.totalorder %s134, %s135
    %p144 = scmp.eq.s32.totalorder %s17, 0
    %p145 = por %p143, %p144
    %p146 = scmp.ne.s32.totalorder %s134, %s135
    %p147 = scmp.eq.s32.totalorder %s18, 3
    %p148 = por %p146, %p147
    %p150 = scmp.ne.s32.totalorder %s135, %s149
    %p151 = scmp.eq.s32.totalorder %s18, 0
    %p152 = por %p150, %p151
    %s154 = sadd.s32 %s153, 1
    %p157 = scmp.eq.s32.totalorder %s12, 3
    %p158 = scmp.ne.s32.totalorder %s153, %s155
    %p159 = scmp.eq.s32.totalorder %s12, 0
    %p160 = por %p158, %p159
    %p161 = scmp.ne.s32.totalorder %s153, %s155
    %p162 = scmp.eq.s32.totalorder %s17, 3
    %p163 = por %p161, %p162
    %p164 = scmp.ne.s32.totalorder %s155, %s156
    %p165 = scmp.eq.s32.totalorder %s17, 0
    %p166 = por %p164, %p165
    %p167 = scmp.ne.s32.totalorder %s155, %s156
    %p168 = scmp.eq.s32.totalorder %s18, 3
    %p169 = por %p167, %p168
    %p171 = scmp.ne.s32.totalorder %s156, %s170
    %p172 = scmp.eq.s32.totalorder %s18, 0
    %p173 = por %p171, %p172
    %s174 = ssub.s32 %s19, %s38
    %s175 = ssub.s32 %s20, %s34
    %s176 = sor.u32 %s174, %s175
    %p177 = scmp.eq.s32.totalorder %s176, 0
    %s179 = sadd.s32 %s178, 1
    %s180 = scalar_select %p177, %s178, %s179
    %p183 = pneg %p177
    %p184 = scmp.eq.s32.totalorder %s12, 3
    %p185 = por %p183, %p184
    %p186 = scmp.ne.s32.totalorder %s178, %s181
    %p187 = scmp.eq.s32.totalorder %s12, 0
    %p188 = por %p186, %p187
    %p189 = scmp.ne.s32.totalorder %s178, %s181
    %p190 = scmp.eq.s32.totalorder %s17, 3
    %p191 = por %p189, %p190
    %p192 = scmp.ne.s32.totalorder %s181, %s182
    %p193 = scmp.eq.s32.totalorder %s17, 0
    %p194 = por %p192, %p193
    %p195 = scmp.ne.s32.totalorder %s181, %s182
    %p196 = scmp.eq.s32.totalorder %s18, 3
    %p197 = por %p195, %p196
    %p199 = scmp.ne.s32.totalorder %s182, %s198
    %p200 = scmp.eq.s32.totalorder %s18, 0
    %p201 = por %p199, %p200
    %p202 = scmp.le.s32.totalorder 1, %s12
    %p203 = scmp.lt.s32.totalorder %s12, 5
    %p204 = pnand %p202, %p203
    %p205 = pneg %p204
    // Predicated region
    $region9: #{_model_forward.1} parent=5 // pred_check
      _
    $region10: #{_model_forward.1} parent=5 // pred_check_branch
      %207 = sbr.rel (%p204) target = $region12
    $region11: #{_model_forward.1} parent=5 // pred_region
      %s208 = ssub.s32 %s12, 1
      // Predicated region
      $region13: #{_model_forward.1} parent=11 // pred_check
        %p209 = pneg %p82
      $region14: #{_model_forward.1} parent=11 // pred_check_branch
        %211 = sbr.rel (%p209) target = $region16
      $region15: #{_model_forward.1} parent=11 // pred_region
        _
      $region16: #{_model_forward.1} parent=11 // pred_fallthru
        _
      // Predicated region
      $region17: #{_model_forward.1} parent=11 // pred_check
        %p212 = pneg %p103
      $region18: #{_model_forward.1} parent=11 // pred_check_branch
        %214 = sbr.rel (%p212) target = $region20
      $region19: #{_model_forward.1} parent=11 // pred_region
        _
      $region20: #{_model_forward.1} parent=11 // pred_fallthru
        _
      // Predicated region
      $region21: #{_model_forward.1} parent=11 // pred_check
        %p215 = pneg %p124
      $region22: #{_model_forward.1} parent=11 // pred_check_branch
        %217 = sbr.rel (%p215) target = $region24
      $region23: #{_model_forward.1} parent=11 // pred_region
        _
      $region24: #{_model_forward.1} parent=11 // pred_fallthru
        _
      // Predicated region
      $region25: #{_model_forward.1} parent=11 // pred_check
        %p218 = pneg %p145
      $region26: #{_model_forward.1} parent=11 // pred_check_branch
        %220 = sbr.rel (%p218) target = $region28
      $region27: #{_model_forward.1} parent=11 // pred_region
        _
      $region28: #{_model_forward.1} parent=11 // pred_fallthru
        _
      // Predicated region
      $region29: #{_model_forward.1} parent=11 // pred_check
        %p221 = pneg %p166
      $region30: #{_model_forward.1} parent=11 // pred_check_branch
        %223 = sbr.rel (%p221) target = $region32
      $region31: #{_model_forward.1} parent=11 // pred_region
        _
      $region32: #{_model_forward.1} parent=11 // pred_fallthru
        _
    $region12: #{_model_forward.1} parent=5 // pred_fallthru
      _
    %p224 = scmp.lt.s32.totalorder %s12, 4
    // Predicated region
    $region33: #{_model_forward.1} parent=5 // pred_check
      %p225 = pneg %p224
    $region34: #{_model_forward.1} parent=5 // pred_check_branch
      %227 = sbr.rel (%p225) target = $region36
    $region35: #{_model_forward.1} parent=5 // pred_region
      // Predicated region
      $region37: #{_model_forward.1} parent=35 // pred_check
        %p228 = pneg %p55
      $region38: #{_model_forward.1} parent=35 // pred_check_branch
        %230 = sbr.rel (%p228) target = $region40
      $region39: #{_model_forward.1} parent=35 // pred_region
        %s231 = sadd.s32 %s20, %s21
        %s232 = smul.u32 8, %s231
        %p233 = scmp.lt.s32.totalorder %s19, 1
        %s234 = scalar_select %p233, %s19, 1
        %p235 = scmp.lt.s32.totalorder %s232, 15
        %s236 = scalar_select %p235, %s232, 15
        %s237 = smul.addr %s234, 16
        %s238 = sadd.s32 %s236, %s237
        %s239 = smul.addr %s238, 4
        %s240 = scalar_lea.vmem %s0, %s239
        %s241 = sadd.s32 %s20, %s21
        %s242 = smul.u32 8, %s241
      $region40: #{_model_forward.1} parent=35 // pred_fallthru
        _
    $region36: #{_model_forward.1} parent=5 // pred_fallthru
      _
    %p243 = scmp.le.s32.totalorder 1, %s12
    %p244 = scmp.lt.s32.totalorder %s12, 5
    %p245 = pnand %p243, %p244
    %p246 = pneg %p245
    // Predicated region
    $region41: #{_model_forward.1} parent=5 // pred_check
      _
    $region42: #{_model_forward.1} parent=5 // pred_check_branch
      %248 = sbr.rel (%p245) target = $region44
    $region43: #{_model_forward.1} parent=5 // pred_region
      %s249 = ssub.s32 %s12, 1
      %s250 = sadd.s32 %s23, %s24
      %s251 = smul.u32 8, %s250
      %p252 = scmp.lt.s32.totalorder %s22, 1
      %s253 = scalar_select %p252, %s22, 1
      %p254 = scmp.lt.s32.totalorder %s251, 15
      %s255 = scalar_select %p254, %s251, 15
      %s256 = smul.addr %s253, 16
      %s257 = sadd.s32 %s255, %s256
      %s258 = smul.addr %s257, 4
      %s259 = scalar_lea.vmem %s0, %s258
      %p260 = pneg %p61
      %p261 = pneg %p58
      %p262 = pneg %p82
      %p263 = pneg %p79
      %p264 = pneg %p103
      %p265 = pneg %p100
      %p266 = pneg %p124
      %p267 = pneg %p121
      %p268 = pneg %p145
      %p269 = pneg %p142
      %p270 = pneg %p166
      %p271 = pneg %p163
      %p272 = pneg %p194
      %p273 = pneg %p191
      %p274 = scmp.lt.s32.totalorder %s22, 1
      %s275 = scalar_select %p274, %s22, 1
      %p276 = scmp.lt.s32.totalorder %s23, 1
      %s277 = scalar_select %p276, %s23, 1
      %s278 = smul.addr %s275, 2
      %s279 = sadd.s32 %s277, %s278
      %s280 = scalar_lea.vmem %s6, %s279
      %s281 = sadd.s32 %s23, %s24
      %s282 = smul.u32 8, %s281
      %p283 = scmp.lt.s32.totalorder %s22, 1
      %s284 = scalar_select %p283, %s22, 1
      %p285 = scmp.lt.s32.totalorder %s282, 15
      %s286 = scalar_select %p285, %s282, 15
      %s287 = smul.addr %s284, 16
      %s288 = sadd.s32 %s286, %s287
      %s289 = smul.addr %s288, 4
      %s290 = scalar_lea.vmem %s0, %s289
      %s291 = sadd.s32 %s23, %s24
      %s292 = smul.u32 8, %s291
      %p293 = scmp.lt.s32.totalorder %s22, 1
      %s294 = scalar_select %p293, %s22, 1
      %p295 = scmp.lt.s32.totalorder %s23, 1
      %s296 = scalar_select %p295, %s23, 1
      %s297 = smul.addr %s294, 2
      %s298 = sadd.s32 %s296, %s297
      %s299 = scalar_lea.vmem %s6, %s298
      %p304 = scmp.eq.s32.totalorder %s24, 0
      // Predicated region
      $region45: #{_model_forward.1} parent=43 // pred_check
        %p305 = pneg %p304
      $region46: #{_model_forward.1} parent=43 // pred_check_branch
        %307 = sbr.rel (%p305) target = $region48
      $region47: #{_model_forward.1} parent=43 // pred_region
        %308 = vst [vmem:[#allocation2] sm:$0xff] 0.0
        %309 = vst [vmem:[#allocation2 + $0x8] sm:$0xff] 0.0
        %310 = vst [vmem:[#allocation2 + $0x10] sm:$0xff] 0.0
        %311 = vst [vmem:[#allocation2 + $0x18] sm:$0xff] 0.0
        %312 = vst [vmem:[#allocation2 + $0x20] sm:$0xff] 0.0
        %313 = vst [vmem:[#allocation2 + $0x28] sm:$0xff] 0.0
        %314 = vst [vmem:[#allocation2 + $0x30] sm:$0xff] 0.0
        %315 = vst [vmem:[#allocation2 + $0x38] sm:$0xff] 0.0
        %316 = vst [vmem:[#allocation2 + $0x40] sm:$0xff] 0.0
        %317 = vst [vmem:[#allocation2 + $0x48] sm:$0xff] 0.0
        %318 = vst [vmem:[#allocation2 + $0x50] sm:$0xff] 0.0
        %319 = vst [vmem:[#allocation2 + $0x58] sm:$0xff] 0.0
      $region48: #{_model_forward.1} parent=43 // pred_fallthru
        _
      %v320 = vld [vmem:[%s290] sm:$0xf]
      %v321 = vld [vmem:[%s290 + $0x4] sm:$0xf]
      %v322 = vld [vmem:[%s290 + $0x8] sm:$0xf]
      %v323 = vld [vmem:[%s290 + $0xc] sm:$0xf]
      %v324 = vld [vmem:[%s290 + $0x10] sm:$0xf]
      %v325 = vld [vmem:[%s290 + $0x14] sm:$0xf]
      %v326 = vld [vmem:[%s290 + $0x18] sm:$0xf]
      %v327 = vld [vmem:[%s290 + $0x1c] sm:$0xf]
      %v328 = vld [vmem:[%s1] sm:$0xf]
      %v329 = vld [vmem:[%s1 + $0x4] sm:$0xf]
      %v330 = vld [vmem:[%s1 + $0x8] sm:$0xf]
      %v331 = vld [vmem:[%s1 + $0xc] sm:$0xf]
      %v332 = vld [vmem:[%s2] sm:$0x1]
      %v334 = vlaneseq
      %v335 = vshrl.u32 %v334, 7
      %v336 = vsub.s32 0, %v335
      %v337 = vrot.slane %v332, %v336
      %v347 = vunpack.c.l.b16 %v320
      %v348 = vunpack.c.l.b16 %v321
      %v349 = vunpack.c.l.b16 %v322
      %v350 = vunpack.c.l.b16 %v323
      %v351 = vunpack.c.l.b16 %v324
      %v352 = vunpack.c.l.b16 %v325
      %v353 = vunpack.c.l.b16 %v326
      %v354 = vunpack.c.l.b16 %v327
      %v355 = vpack.c.b16 %v348, %v347
      %v356 = vpack.c.b16 %v350, %v349
      %v357 = vpack.c.b16 %v352, %v351
      %v358 = vpack.c.b16 %v354, %v353
      %v363 = vunpack.c.l.b16 %v328
      %v364 = vunpack.c.l.b16 %v329
      %v365 = vunpack.c.l.b16 %v330
      %v366 = vunpack.c.l.b16 %v331
      %v367 = vpack.c.b16 %v364, %v363
      %v368 = vpack.c.b16 %v366, %v365
      %vm371 = vcmask 261120
      %v373 = vsel %vm371, %v355, 0
      %v376 = vsel %vm371, %v356, 0
      %v379 = vsel %vm371, %v357, 0
      %v382 = vsel %vm371, %v358, 0
      %384 = vmatprep.subr.bf16.mxu0 0
      %385 = vmatpush1.bf16.msra.mxu0 %v367
      %386 = vmatprep.subr.bf16.mxu0 0
      %387 = vmatpush1.bf16.msra.mxu0 %v368
      %388 = vmatprep.subr.bf16.mxu0 0
      %389 = vmatpush1.bf16.msra.mxu0 0
      %390 = vmatprep.subr.bf16.mxu0 0
      %391 = vmatpush1.bf16.msra.mxu0 0
      %392 = vmatprep.subr.bf16.mxu0 0
      %393 = vmatpush1.bf16.msra.mxu0 0
      %394 = vmatprep.subr.bf16.mxu0 0
      %395 = vmatpush1.bf16.msra.mxu0 0
      %396 = vmatprep.subr.bf16.mxu0 0
      %397 = vmatpush1.bf16.msra.mxu0 0
      %398 = vmatprep.subr.bf16.mxu0 0
      %399 = vmatpush1.bf16.msra.mxu0 0
      %400 = vmatprep.subr.bf16.mxu0 0
      %401 = vmatpush1.bf16.msra.mxu0 0
      %402 = vmatprep.subr.bf16.mxu0 0
      %403 = vmatpush1.bf16.msra.mxu0 0
      %404 = vmatprep.subr.bf16.mxu0 0
      %405 = vmatpush1.bf16.msra.mxu0 0
      %406 = vmatprep.subr.bf16.mxu0 0
      %407 = vmatpush1.bf16.msra.mxu0 0
      %408 = vmatprep.subr.bf16.mxu0 0
      %409 = vmatpush1.bf16.msra.mxu0 0
      %410 = vmatprep.subr.bf16.mxu0 0
      %411 = vmatpush1.bf16.msra.mxu0 0
      %412 = vmatprep.subr.bf16.mxu0 0
      %413 = vmatpush1.bf16.msra.mxu0 0
      %414 = vmatprep.subr.bf16.mxu0 0
      %415 = vmatpush1.bf16.msra.mxu0 0
      %416 = vmatprep.mubr.bf16.mxu0 0
      %417 = vmatmul.mubr.bf16.gmra.mrb[0].mxu0 %v373
      %v418 = vpop.f32.mrb[0].mxu0
      %v419 = vadd.f32 %v337, %v418
      %v420 = vpop.f32.mrb[0].mxu0
      %v421 = vpop.f32.mrb[0].mxu0
      %v422 = vadd.f32 %v337, %v421
      %v423 = vpop.f32.mrb[0].mxu0
      %424 = vmatprep.mubr.bf16.mxu0 0
      %425 = vmatmul.mubr.bf16.gmra.mrb[0].mxu0 %v376
      %v426 = vpop.f32.mrb[0].mxu0
      %v427 = vadd.f32 %v337, %v426
      %v428 = vpop.f32.mrb[0].mxu0
      %v429 = vpop.f32.mrb[0].mxu0
      %v430 = vadd.f32 %v337, %v429
      %v431 = vpop.f32.mrb[0].mxu0
      %432 = vmatprep.mubr.bf16.mxu0 0
      %433 = vmatmul.mubr.bf16.gmra.mrb[0].mxu0 %v379
      %v434 = vpop.f32.mrb[0].mxu0
      %v435 = vadd.f32 %v337, %v434
      %v436 = vpop.f32.mrb[0].mxu0
      %v437 = vpop.f32.mrb[0].mxu0
      %v438 = vadd.f32 %v337, %v437
      %v439 = vpop.f32.mrb[0].mxu0
      %440 = vmatprep.mubr.bf16.mxu0 0
      %441 = vmatmul.mubr.bf16.gmra.mrb[0].mxu0 %v382
      %v442 = vpop.f32.mrb[0].mxu0
      %v443 = vadd.f32 %v337, %v442
      %v444 = vpop.f32.mrb[0].mxu0
      %v445 = vpop.f32.mrb[0].mxu0
      %v446 = vadd.f32 %v337, %v445
      %v447 = vpop.f32.mrb[0].mxu0
      %448 = vdwg.mxu0
      %v449 = vpack.c.bf16 %v422, %v419
      %v450 = vpack.c.bf16 %v430, %v427
      %v451 = vpack.c.bf16 %v438, %v435
      %v452 = vpack.c.bf16 %v446, %v443
      %v453 = vxor.u32 %v449, 2147516416
      %v454 = vxor.u32 %v450, 2147516416
      %v455 = vxor.u32 %v451, 2147516416
      %v456 = vxor.u32 %v452, 2147516416
      %v458 = vmul.bf16 %v453, 1069105081
      %v459 = vpow.bf16.pop %v458
      %v461 = vmul.bf16 %v454, 1069105081
      %v462 = vpow.bf16.pop %v461
      %v464 = vmul.bf16 %v455, 1069105081
      %v465 = vpow.bf16.pop %v464
      %v467 = vmul.bf16 %v456, 1069105081
      %v468 = vpow.bf16.pop %v467
      %v469 = vadd.bf16 %v459, 1065369472
      %v470 = vadd.bf16 %v462, 1065369472
      %v471 = vadd.bf16 %v465, 1065369472
      %v472 = vadd.bf16 %v468, 1065369472
      %v473 = vrcp.bf16.pop %v469
      %v474 = vmul.bf16 1065369472, %v473
      %v475 = vrcp.bf16.pop %v470
      %v476 = vmul.bf16 1065369472, %v475
      %v477 = vrcp.bf16.pop %v471
      %v478 = vmul.bf16 1065369472, %v477
      %v479 = vrcp.bf16.pop %v472
      %v480 = vmul.bf16 1065369472, %v479
      %v481 = vmul.bf16 %v449, %v474
      %v482 = vmul.bf16 %v450, %v476
      %v483 = vmul.bf16 %v451, %v478
      %v484 = vmul.bf16 %v452, %v480
      %v485 = vld [vmem:[%s3] sm:$0xff]
      %v486 = vld [vmem:[%s3 + $0x8] sm:$0xff]
      %v487 = vld [vmem:[%s3 + $0x10] sm:$0xff]
      %v488 = vld [vmem:[%s3 + $0x18] sm:$0xff]
      %v489 = vld [vmem:[%s3 + $0x20] sm:$0xff]
      %v490 = vld [vmem:[%s3 + $0x28] sm:$0xff]
      %v491 = vld [vmem:[%s3 + $0x30] sm:$0xff]
      %v492 = vld [vmem:[%s3 + $0x38] sm:$0xff]
      %v493 = vld [vmem:[%s3 + $0x40] sm:$0xff]
      %v494 = vld [vmem:[%s3 + $0x48] sm:$0xff]
      %v495 = vld [vmem:[%s3 + $0x50] sm:$0xff]
      %v496 = vld [vmem:[%s3 + $0x58] sm:$0xff]
      %v497 = vld [vmem:[%s3 + $0x60] sm:$0xff]
      %v498 = vld [vmem:[%s3 + $0x68] sm:$0xff]
      %v499 = vld [vmem:[%s3 + $0x70] sm:$0xff]
      %v500 = vld [vmem:[%s3 + $0x78] sm:$0xff]
      %v501 = vld [vmem:[%s3 + $0x80] sm:$0xff]
      %v502 = vld [vmem:[%s3 + $0x88] sm:$0xff]
      %v503 = vld [vmem:[%s3 + $0x90] sm:$0xff]
      %v504 = vld [vmem:[%s3 + $0x98] sm:$0xff]
      %v505 = vld [vmem:[%s3 + $0xa0] sm:$0xff]
      %v506 = vld [vmem:[%s3 + $0xa8] sm:$0xff]
      %v507 = vld [vmem:[%s3 + $0xb0] sm:$0xff]
      %v508 = vld [vmem:[%s3 + $0xb8] sm:$0xff]
      %v509 = vld [vmem:[%s3 + $0xc0] sm:$0xff]
      %v510 = vld [vmem:[%s3 + $0xc8] sm:$0xff]
      %v511 = vld [vmem:[%s3 + $0xd0] sm:$0xff]
      %v512 = vld [vmem:[%s3 + $0xd8] sm:$0xff]
      %v513 = vld [vmem:[%s3 + $0xe0] sm:$0xff]
      %v514 = vld [vmem:[%s3 + $0xe8] sm:$0xff]
      %v515 = vld [vmem:[%s3 + $0xf0] sm:$0xff]
      %v516 = vld [vmem:[%s3 + $0xf8] sm:$0xff]
      %v517 = vld [vmem:[%s3 + $0x100] sm:$0xff]
      %v518 = vld [vmem:[%s3 + $0x108] sm:$0xff]
      %v519 = vld [vmem:[%s3 + $0x110] sm:$0xff]
      %v520 = vld [vmem:[%s3 + $0x118] sm:$0xff]
      %v521 = vld [vmem:[%s3 + $0x120] sm:$0xff]
      %v522 = vld [vmem:[%s3 + $0x128] sm:$0xff]
      %v523 = vld [vmem:[%s3 + $0x130] sm:$0xff]
      %v524 = vld [vmem:[%s3 + $0x138] sm:$0xff]
      %v525 = vld [vmem:[%s3 + $0x140] sm:$0xff]
      %v526 = vld [vmem:[%s3 + $0x148] sm:$0xff]
      %v527 = vld [vmem:[%s3 + $0x150] sm:$0xff]
      %v528 = vld [vmem:[%s3 + $0x158] sm:$0xff]
      %v529 = vld [vmem:[%s3 + $0x160] sm:$0xff]
      %v530 = vld [vmem:[%s3 + $0x168] sm:$0xff]
      %v531 = vld [vmem:[%s3 + $0x170] sm:$0xff]
      %v532 = vld [vmem:[%s3 + $0x178] sm:$0xff]
      %v533 = vld [vmem:[%s3 + $0x180] sm:$0xff]
      %v534 = vld [vmem:[%s3 + $0x188] sm:$0xff]
      %v535 = vld [vmem:[%s3 + $0x190] sm:$0xff]
      %v536 = vld [vmem:[%s3 + $0x198] sm:$0xff]
      %v537 = vld [vmem:[%s3 + $0x1a0] sm:$0xff]
      %v538 = vld [vmem:[%s3 + $0x1a8] sm:$0xff]
      %v539 = vld [vmem:[%s3 + $0x1b0] sm:$0xff]
      %v540 = vld [vmem:[%s3 + $0x1b8] sm:$0xff]
      %v541 = vld [vmem:[%s3 + $0x1c0] sm:$0xff]
      %v542 = vld [vmem:[%s3 + $0x1c8] sm:$0xff]
      %v543 = vld [vmem:[%s3 + $0x1d0] sm:$0xff]
      %v544 = vld [vmem:[%s3 + $0x1d8] sm:$0xff]
      %v545 = vld [vmem:[%s3 + $0x1e0] sm:$0xff]
      %v546 = vld [vmem:[%s3 + $0x1e8] sm:$0xff]
      %v547 = vld [vmem:[%s3 + $0x1f0] sm:$0xff]
      %v548 = vld [vmem:[%s3 + $0x1f8] sm:$0xff]
      %v549 = vld [vmem:[%s3 + $0x200] sm:$0xff]
      %v550 = vld [vmem:[%s3 + $0x208] sm:$0xff]
      %v551 = vld [vmem:[%s3 + $0x210] sm:$0xff]
      %v552 = vld [vmem:[%s3 + $0x218] sm:$0xff]
      %v553 = vld [vmem:[%s3 + $0x220] sm:$0xff]
      %v554 = vld [vmem:[%s3 + $0x228] sm:$0xff]
      %v555 = vld [vmem:[%s3 + $0x230] sm:$0xff]
      %v556 = vld [vmem:[%s3 + $0x238] sm:$0xff]
      %v557 = vld [vmem:[%s3 + $0x240] sm:$0xff]
      %v558 = vld [vmem:[%s3 + $0x248] sm:$0xff]
      %v559 = vld [vmem:[%s3 + $0x250] sm:$0xff]
      %v560 = vld [vmem:[%s3 + $0x258] sm:$0xff]
      %v561 = vld [vmem:[%s3 + $0x260] sm:$0xff]
      %v562 = vld [vmem:[%s3 + $0x268] sm:$0xff]
      %v563 = vld [vmem:[%s3 + $0x270] sm:$0xff]
      %v564 = vld [vmem:[%s3 + $0x278] sm:$0xff]
      %v565 = vld [vmem:[%s3 + $0x280] sm:$0xff]
      %v566 = vld [vmem:[%s3 + $0x288] sm:$0xff]
      %v567 = vld [vmem:[%s3 + $0x290] sm:$0xff]
      %v568 = vld [vmem:[%s3 + $0x298] sm:$0xff]
      %v569 = vld [vmem:[%s3 + $0x2a0] sm:$0xff]
      %v570 = vld [vmem:[%s3 + $0x2a8] sm:$0xff]
      %v571 = vld [vmem:[%s3 + $0x2b0] sm:$0xff]
      %v572 = vld [vmem:[%s3 + $0x2b8] sm:$0xff]
      %v573 = vld [vmem:[%s3 + $0x2c0] sm:$0xff]
      %v574 = vld [vmem:[%s3 + $0x2c8] sm:$0xff]
      %v575 = vld [vmem:[%s3 + $0x2d0] sm:$0xff]
      %v576 = vld [vmem:[%s3 + $0x2d8] sm:$0xff]
      %v577 = vld [vmem:[%s3 + $0x2e0] sm:$0xff]
      %v578 = vld [vmem:[%s3 + $0x2e8] sm:$0xff]
      %v579 = vld [vmem:[%s3 + $0x2f0] sm:$0xff]
      %v580 = vld [vmem:[%s3 + $0x2f8] sm:$0xff]
      %v581 = vld [vmem:[%s4] sm:$0xff]
      %v582 = vld [vmem:[%s4 + $0x8] sm:$0xf]
      %v585 = vlaneseq
      %v586 = vshrl.u32 %v585, 7
      %v587 = vsub.s32 0, %v586
      %v588 = vrot.slane %v581, %v587
      %v589 = vlaneseq
      %v590 = vshrl.u32 %v589, 7
      %v591 = vsub.s32 1, %v590
      %v592 = vrot.slane %v581, %v591
      %v593 = vlaneseq
      %v594 = vshrl.u32 %v593, 7
      %v595 = vsub.s32 2, %v594
      %v596 = vrot.slane %v581, %v595
      %v597 = vlaneseq
      %v598 = vshrl.u32 %v597, 7
      %v599 = vsub.s32 3, %v598
      %v600 = vrot.slane %v581, %v599
      %v601 = vlaneseq
      %v602 = vshrl.u32 %v601, 7
      %v603 = vsub.s32 4, %v602
      %v604 = vrot.slane %v581, %v603
      %v605 = vlaneseq
      %v606 = vshrl.u32 %v605, 7
      %v607 = vsub.s32 5, %v606
      %v608 = vrot.slane %v581, %v607
      %v609 = vlaneseq
      %v610 = vshrl.u32 %v609, 7
      %v611 = vsub.s32 6, %v610
      %v612 = vrot.slane %v581, %v611
      %v613 = vlaneseq
      %v614 = vshrl.u32 %v613, 7
      %v615 = vsub.s32 7, %v614
      %v616 = vrot.slane %v581, %v615
      %v617 = vlaneseq
      %v618 = vshrl.u32 %v617, 7
      %v619 = vsub.s32 0, %v618
      %v620 = vrot.slane %v582, %v619
      %v621 = vlaneseq
      %v622 = vshrl.u32 %v621, 7
      %v623 = vsub.s32 1, %v622
      %v624 = vrot.slane %v582, %v623
      %v625 = vlaneseq
      %v626 = vshrl.u32 %v625, 7
      %v627 = vsub.s32 2, %v626
      %v628 = vrot.slane %v582, %v627
      %v629 = vlaneseq
      %v630 = vshrl.u32 %v629, 7
      %v631 = vsub.s32 3, %v630
      %v632 = vrot.slane %v582, %v631
      %v741 = vunpack.c.l.b16 %v485
      %v742 = vunpack.c.h.b16 %v485
      %v743 = vunpack.c.l.b16 %v486
      %v744 = vunpack.c.h.b16 %v486
      %v745 = vunpack.c.l.b16 %v487
      %v746 = vunpack.c.h.b16 %v487
      %v747 = vunpack.c.l.b16 %v488
      %v748 = vunpack.c.h.b16 %v488
      %v749 = vunpack.c.l.b16 %v489
      %v750 = vunpack.c.h.b16 %v489
      %v751 = vunpack.c.l.b16 %v490
      %v752 = vunpack.c.h.b16 %v490
      %v753 = vunpack.c.l.b16 %v491
      %v754 = vunpack.c.h.b16 %v491
      %v755 = vunpack.c.l.b16 %v492
      %v756 = vunpack.c.h.b16 %v492
      %v757 = vunpack.c.l.b16 %v493
      %v758 = vunpack.c.h.b16 %v493
      %v759 = vunpack.c.l.b16 %v494
      %v760 = vunpack.c.h.b16 %v494
      %v761 = vunpack.c.l.b16 %v495
      %v762 = vunpack.c.h.b16 %v495
      %v763 = vunpack.c.l.b16 %v496
      %v764 = vunpack.c.h.b16 %v496
      %v765 = vunpack.c.l.b16 %v497
      %v766 = vunpack.c.h.b16 %v497
      %v767 = vunpack.c.l.b16 %v498
      %v768 = vunpack.c.h.b16 %v498
      %v769 = vunpack.c.l.b16 %v499
      %v770 = vunpack.c.h.b16 %v499
      %v771 = vunpack.c.l.b16 %v500
      %v772 = vunpack.c.h.b16 %v500
      %v773 = vunpack.c.l.b16 %v501
      %v774 = vunpack.c.h.b16 %v501
      %v775 = vunpack.c.l.b16 %v502
      %v776 = vunpack.c.h.b16 %v502
      %v777 = vunpack.c.l.b16 %v503
      %v778 = vunpack.c.h.b16 %v503
      %v779 = vunpack.c.l.b16 %v504
      %v780 = vunpack.c.h.b16 %v504
      %v781 = vunpack.c.l.b16 %v505
      %v782 = vunpack.c.h.b16 %v505
      %v783 = vunpack.c.l.b16 %v506
      %v784 = vunpack.c.h.b16 %v506
      %v785 = vunpack.c.l.b16 %v507
      %v786 = vunpack.c.h.b16 %v507
      %v787 = vunpack.c.l.b16 %v508
      %v788 = vunpack.c.h.b16 %v508
      %v789 = vunpack.c.l.b16 %v509
      %v790 = vunpack.c.h.b16 %v509
      %v791 = vunpack.c.l.b16 %v510
      %v792 = vunpack.c.h.b16 %v510
      %v793 = vunpack.c.l.b16 %v511
      %v794 = vunpack.c.h.b16 %v511
      %v795 = vunpack.c.l.b16 %v512
      %v796 = vunpack.c.h.b16 %v512
      %v797 = vunpack.c.l.b16 %v513
      %v798 = vunpack.c.h.b16 %v513
      %v799 = vunpack.c.l.b16 %v514
      %v800 = vunpack.c.h.b16 %v514
      %v801 = vunpack.c.l.b16 %v515
      %v802 = vunpack.c.h.b16 %v515
      %v803 = vunpack.c.l.b16 %v516
      %v804 = vunpack.c.h.b16 %v516
      %v805 = vunpack.c.l.b16 %v517
      %v806 = vunpack.c.h.b16 %v517
      %v807 = vunpack.c.l.b16 %v518
      %v808 = vunpack.c.h.b16 %v518
      %v809 = vunpack.c.l.b16 %v519
      %v810 = vunpack.c.h.b16 %v519
      %v811 = vunpack.c.l.b16 %v520
      %v812 = vunpack.c.h.b16 %v520
      %v813 = vunpack.c.l.b16 %v521
      %v814 = vunpack.c.h.b16 %v521
      %v815 = vunpack.c.l.b16 %v522
      %v816 = vunpack.c.h.b16 %v522
      %v817 = vunpack.c.l.b16 %v523
      %v818 = vunpack.c.h.b16 %v523
      %v819 = vunpack.c.l.b16 %v524
      %v820 = vunpack.c.h.b16 %v524
      %v821 = vunpack.c.l.b16 %v525
      %v822 = vunpack.c.h.b16 %v525
      %v823 = vunpack.c.l.b16 %v526
      %v824 = vunpack.c.h.b16 %v526
      %v825 = vunpack.c.l.b16 %v527
      %v826 = vunpack.c.h.b16 %v527
      %v827 = vunpack.c.l.b16 %v528
      %v828 = vunpack.c.h.b16 %v528
      %v829 = vunpack.c.l.b16 %v529
      %v830 = vunpack.c.h.b16 %v529
      %v831 = vunpack.c.l.b16 %v530
      %v832 = vunpack.c.h.b16 %v530
      %v833 = vunpack.c.l.b16 %v531
      %v834 = vunpack.c.h.b16 %v531
      %v835 = vunpack.c.l.b16 %v532
      %v836 = vunpack.c.h.b16 %v532
      %v837 = vunpack.c.l.b16 %v533
      %v838 = vunpack.c.h.b16 %v533
      %v839 = vunpack.c.l.b16 %v534
      %v840 = vunpack.c.h.b16 %v534
      %v841 = vunpack.c.l.b16 %v535
      %v842 = vunpack.c.h.b16 %v535
      %v843 = vunpack.c.l.b16 %v536
      %v844 = vunpack.c.h.b16 %v536
      %v845 = vunpack.c.l.b16 %v537
      %v846 = vunpack.c.h.b16 %v537
      %v847 = vunpack.c.l.b16 %v538
      %v848 = vunpack.c.h.b16 %v538
      %v849 = vunpack.c.l.b16 %v539
      %v850 = vunpack.c.h.b16 %v539
      %v851 = vunpack.c.l.b16 %v540
      %v852 = vunpack.c.h.b16 %v540
      %v853 = vunpack.c.l.b16 %v541
      %v854 = vunpack.c.h.b16 %v541
      %v855 = vunpack.c.l.b16 %v542
      %v856 = vunpack.c.h.b16 %v542
      %v857 = vunpack.c.l.b16 %v543
      %v858 = vunpack.c.h.b16 %v543
      %v859 = vunpack.c.l.b16 %v544
      %v860 = vunpack.c.h.b16 %v544
      %v861 = vunpack.c.l.b16 %v545
      %v862 = vunpack.c.h.b16 %v545
      %v863 = vunpack.c.l.b16 %v546
      %v864 = vunpack.c.h.b16 %v546
      %v865 = vunpack.c.l.b16 %v547
      %v866 = vunpack.c.h.b16 %v547
      %v867 = vunpack.c.l.b16 %v548
      %v868 = vunpack.c.h.b16 %v548
      %v869 = vunpack.c.l.b16 %v549
      %v870 = vunpack.c.h.b16 %v549
      %v871 = vunpack.c.l.b16 %v550
      %v872 = vunpack.c.h.b16 %v550
      %v873 = vunpack.c.l.b16 %v551
      %v874 = vunpack.c.h.b16 %v551
      %v875 = vunpack.c.l.b16 %v552
      %v876 = vunpack.c.h.b16 %v552
      %v877 = vunpack.c.l.b16 %v553
      %v878 = vunpack.c.h.b16 %v553
      %v879 = vunpack.c.l.b16 %v554
      %v880 = vunpack.c.h.b16 %v554
      %v881 = vunpack.c.l.b16 %v555
      %v882 = vunpack.c.h.b16 %v555
      %v883 = vunpack.c.l.b16 %v556
      %v884 = vunpack.c.h.b16 %v556
      %v885 = vunpack.c.l.b16 %v557
      %v886 = vunpack.c.h.b16 %v557
      %v887 = vunpack.c.l.b16 %v558
      %v888 = vunpack.c.h.b16 %v558
      %v889 = vunpack.c.l.b16 %v559
      %v890 = vunpack.c.h.b16 %v559
      %v891 = vunpack.c.l.b16 %v560
      %v892 = vunpack.c.h.b16 %v560
      %v893 = vunpack.c.l.b16 %v561
      %v894 = vunpack.c.h.b16 %v561
      %v895 = vunpack.c.l.b16 %v562
      %v896 = vunpack.c.h.b16 %v562
      %v897 = vunpack.c.l.b16 %v563
      %v898 = vunpack.c.h.b16 %v563
      %v899 = vunpack.c.l.b16 %v564
      %v900 = vunpack.c.h.b16 %v564
      %v901 = vunpack.c.l.b16 %v565
      %v902 = vunpack.c.h.b16 %v565
      %v903 = vunpack.c.l.b16 %v566
      %v904 = vunpack.c.h.b16 %v566
      %v905 = vunpack.c.l.b16 %v567
      %v906 = vunpack.c.h.b16 %v567
      %v907 = vunpack.c.l.b16 %v568
      %v908 = vunpack.c.h.b16 %v568
      %v909 = vunpack.c.l.b16 %v569
      %v910 = vunpack.c.h.b16 %v569
      %v911 = vunpack.c.l.b16 %v570
      %v912 = vunpack.c.h.b16 %v570
      %v913 = vunpack.c.l.b16 %v571
      %v914 = vunpack.c.h.b16 %v571
      %v915 = vunpack.c.l.b16 %v572
      %v916 = vunpack.c.h.b16 %v572
      %v917 = vunpack.c.l.b16 %v573
      %v918 = vunpack.c.h.b16 %v573
      %v919 = vunpack.c.l.b16 %v574
      %v920 = vunpack.c.h.b16 %v574
      %v921 = vunpack.c.l.b16 %v575
      %v922 = vunpack.c.h.b16 %v575
      %v923 = vunpack.c.l.b16 %v576
      %v924 = vunpack.c.h.b16 %v576
      %v925 = vunpack.c.l.b16 %v577
      %v926 = vunpack.c.h.b16 %v577
      %v927 = vunpack.c.l.b16 %v578
      %v928 = vunpack.c.h.b16 %v578
      %v929 = vunpack.c.l.b16 %v579
      %v930 = vunpack.c.h.b16 %v579
      %v931 = vunpack.c.l.b16 %v580
      %v932 = vunpack.c.h.b16 %v580
      %v933 = vpack.c.b16 %v753, %v741
      %v934 = vpack.c.b16 %v754, %v742
      %v935 = vpack.c.b16 %v755, %v743
      %v936 = vpack.c.b16 %v756, %v744
      %v937 = vpack.c.b16 %v757, %v745
      %v938 = vpack.c.b16 %v758, %v746
      %v939 = vpack.c.b16 %v759, %v747
      %v940 = vpack.c.b16 %v760, %v748
      %v941 = vpack.c.b16 %v761, %v749
      %v942 = vpack.c.b16 %v762, %v750
      %v943 = vpack.c.b16 %v763, %v751
      %v944 = vpack.c.b16 %v764, %v752
      %v945 = vpack.c.b16 %v777, %v765
      %v946 = vpack.c.b16 %v778, %v766
      %v947 = vpack.c.b16 %v779, %v767
      %v948 = vpack.c.b16 %v780, %v768
      %v949 = vpack.c.b16 %v781, %v769
      %v950 = vpack.c.b16 %v782, %v770
      %v951 = vpack.c.b16 %v783, %v771
      %v952 = vpack.c.b16 %v784, %v772
      %v953 = vpack.c.b16 %v785, %v773
      %v954 = vpack.c.b16 %v786, %v774
      %v955 = vpack.c.b16 %v787, %v775
      %v956 = vpack.c.b16 %v788, %v776
      %v957 = vpack.c.b16 %v801, %v789
      %v958 = vpack.c.b16 %v802, %v790
      %v959 = vpack.c.b16 %v803, %v791
      %v960 = vpack.c.b16 %v804, %v792
      %v961 = vpack.c.b16 %v805, %v793
      %v962 = vpack.c.b16 %v806, %v794
      %v963 = vpack.c.b16 %v807, %v795
      %v964 = vpack.c.b16 %v808, %v796
      %v965 = vpack.c.b16 %v809, %v797
      %v966 = vpack.c.b16 %v810, %v798
      %v967 = vpack.c.b16 %v811, %v799
      %v968 = vpack.c.b16 %v812, %v800
      %v969 = vpack.c.b16 %v825, %v813
      %v970 = vpack.c.b16 %v826, %v814
      %v971 = vpack.c.b16 %v827, %v815
      %v972 = vpack.c.b16 %v828, %v816
      %v973 = vpack.c.b16 %v829, %v817
      %v974 = vpack.c.b16 %v830, %v818
      %v975 = vpack.c.b16 %v831, %v819
      %v976 = vpack.c.b16 %v832, %v820
      %v977 = vpack.c.b16 %v833, %v821
      %v978 = vpack.c.b16 %v834, %v822
      %v979 = vpack.c.b16 %v835, %v823
      %v980 = vpack.c.b16 %v836, %v824
      %v981 = vpack.c.b16 %v849, %v837
      %v982 = vpack.c.b16 %v850, %v838
      %v983 = vpack.c.b16 %v851, %v839
      %v984 = vpack.c.b16 %v852, %v840
      %v985 = vpack.c.b16 %v853, %v841
      %v986 = vpack.c.b16 %v854, %v842
      %v987 = vpack.c.b16 %v855, %v843
      %v988 = vpack.c.b16 %v856, %v844
      %v989 = vpack.c.b16 %v857, %v845
      %v990 = vpack.c.b16 %v858, %v846
      %v991 = vpack.c.b16 %v859, %v847
      %v992 = vpack.c.b16 %v860, %v848
      %v993 = vpack.c.b16 %v873, %v861
      %v994 = vpack.c.b16 %v874, %v862
      %v995 = vpack.c.b16 %v875, %v863
      %v996 = vpack.c.b16 %v876, %v864
      %v997 = vpack.c.b16 %v877, %v865
      %v998 = vpack.c.b16 %v878, %v866
      %v999 = vpack.c.b16 %v879, %v867
      %v1000 = vpack.c.b16 %v880, %v868
      %v1001 = vpack.c.b16 %v881, %v869
      %v1002 = vpack.c.b16 %v882, %v870
      %v1003 = vpack.c.b16 %v883, %v871
      %v1004 = vpack.c.b16 %v884, %v872
      %v1005 = vpack.c.b16 %v897, %v885
      %v1006 = vpack.c.b16 %v898, %v886
      %v1007 = vpack.c.b16 %v899, %v887
      %v1008 = vpack.c.b16 %v900, %v888
      %v1009 = vpack.c.b16 %v901, %v889
      %v1010 = vpack.c.b16 %v902, %v890
      %v1011 = vpack.c.b16 %v903, %v891
      %v1012 = vpack.c.b16 %v904, %v892
      %v1013 = vpack.c.b16 %v905, %v893
      %v1014 = vpack.c.b16 %v906, %v894
      %v1015 = vpack.c.b16 %v907, %v895
      %v1016 = vpack.c.b16 %v908, %v896
      %v1017 = vpack.c.b16 %v921, %v909
      %v1018 = vpack.c.b16 %v922, %v910
      %v1019 = vpack.c.b16 %v923, %v911
      %v1020 = vpack.c.b16 %v924, %v912
      %v1021 = vpack.c.b16 %v925, %v913
      %v1022 = vpack.c.b16 %v926, %v914
      %v1023 = vpack.c.b16 %v927, %v915
      %v1024 = vpack.c.b16 %v928, %v916
      %v1025 = vpack.c.b16 %v929, %v917
      %v1026 = vpack.c.b16 %v930, %v918
      %v1027 = vpack.c.b16 %v931, %v919
      %v1028 = vpack.c.b16 %v932, %v920
      %1125 = vmatprep.subr.bf16.mxu0 %v934
      %1126 = vmatpush1.bf16.msra.mxu0 %v933
      %1127 = vmatprep.subr.bf16.mxu0 %v946
      %1128 = vmatpush1.bf16.msra.mxu0 %v945
      %1129 = vmatprep.subr.bf16.mxu0 %v958
      %1130 = vmatpush1.bf16.msra.mxu0 %v957
      %1131 = vmatprep.subr.bf16.mxu0 %v970
      %1132 = vmatpush1.bf16.msra.mxu0 %v969
      %1133 = vmatprep.subr.bf16.mxu0 %v982
      %1134 = vmatpush1.bf16.msra.mxu0 %v981
      %1135 = vmatprep.subr.bf16.mxu0 %v994
      %1136 = vmatpush1.bf16.msra.mxu0 %v993
      %1137 = vmatprep.subr.bf16.mxu0 %v1006
      %1138 = vmatpush1.bf16.msra.mxu0 %v1005
      %1139 = vmatprep.subr.bf16.mxu0 %v1018
      %1140 = vmatpush1.bf16.msra.mxu0 %v1017
      %1141 = vmatprep.subr.bf16.mxu0 0
      %1142 = vmatpush1.bf16.msra.mxu0 0
      %1143 = vmatprep.subr.bf16.mxu0 0
      %1144 = vmatpush1.bf16.msra.mxu0 0
      %1145 = vmatprep.subr.bf16.mxu0 0
      %1146 = vmatpush1.bf16.msra.mxu0 0
      %1147 = vmatprep.subr.bf16.mxu0 0
      %1148 = vmatpush1.bf16.msra.mxu0 0
      %1149 = vmatprep.subr.bf16.mxu0 0
      %1150 = vmatpush1.bf16.msra.mxu0 0
      %1151 = vmatprep.subr.bf16.mxu0 0
      %1152 = vmatpush1.bf16.msra.mxu0 0
      %1153 = vmatprep.subr.bf16.mxu0 0
      %1154 = vmatpush1.bf16.msra.mxu0 0
      %1155 = vmatprep.subr.bf16.mxu0 0
      %1156 = vmatpush1.bf16.msra.mxu0 0
      %1157 = vmatprep.mubr.bf16.mxu0 0
      %1158 = vmatmul.mubr.bf16.gmra.mrb[0].mxu0 %v481
      %v1159 = vpop.f32.mrb[0].mxu0
      %v1160 = vadd.f32 %v588, %v1159
      %v1161 = vpop.f32.mrb[0].mxu0
      %v1162 = vadd.f32 %v592, %v1161
      %v1163 = vpop.f32.mrb[0].mxu0
      %v1164 = vadd.f32 %v588, %v1163
      %v1165 = vpop.f32.mrb[0].mxu0
      %v1166 = vadd.f32 %v592, %v1165
      %1167 = vmatprep.mubr.bf16.mxu0 0
      %1168 = vmatmul.mubr.bf16.gmra.mrb[0].mxu0 %v482
      %v1169 = vpop.f32.mrb[0].mxu0
      %v1170 = vadd.f32 %v588, %v1169
      %v1171 = vpop.f32.mrb[0].mxu0
      %v1172 = vadd.f32 %v592, %v1171
      %v1173 = vpop.f32.mrb[0].mxu0
      %v1174 = vadd.f32 %v588, %v1173
      %v1175 = vpop.f32.mrb[0].mxu0
      %v1176 = vadd.f32 %v592, %v1175
      %1177 = vmatprep.mubr.bf16.mxu0 0
      %1178 = vmatmul.mubr.bf16.gmra.mrb[0].mxu0 %v483
      %v1179 = vpop.f32.mrb[0].mxu0
      %v1180 = vadd.f32 %v588, %v1179
      %v1181 = vpop.f32.mrb[0].mxu0
      %v1182 = vadd.f32 %v592, %v1181
      %v1183 = vpop.f32.mrb[0].mxu0
      %v1184 = vadd.f32 %v588, %v1183
      %v1185 = vpop.f32.mrb[0].mxu0
      %v1186 = vadd.f32 %v592, %v1185
      %1187 = vmatprep.mubr.bf16.mxu0 0
      %1188 = vmatmul.mubr.bf16.gmra.mrb[0].mxu0 %v484
      %v1189 = vpop.f32.mrb[0].mxu0
      %v1190 = vadd.f32 %v588, %v1189
      %v1191 = vpop.f32.mrb[0].mxu0
      %v1192 = vadd.f32 %v592, %v1191
      %v1193 = vpop.f32.mrb[0].mxu0
      %v1194 = vadd.f32 %v588, %v1193
      %v1195 = vpop.f32.mrb[0].mxu0
      %v1196 = vadd.f32 %v592, %v1195
      %1197 = vdwg.mxu0
      %1198 = vmatprep.subr.bf16.mxu0 %v936
      %1199 = vmatpush1.bf16.msra.mxu0 %v935
      %1200 = vmatprep.subr.bf16.mxu0 %v948
      %1201 = vmatpush1.bf16.msra.mxu0 %v947
      %1202 = vmatprep.subr.bf16.mxu0 %v960
      %1203 = vmatpush1.bf16.msra.mxu0 %v959
      %1204 = vmatprep.subr.bf16.mxu0 %v972
      %1205 = vmatpush1.bf16.msra.mxu0 %v971
      %1206 = vmatprep.subr.bf16.mxu0 %v984
      %1207 = vmatpush1.bf16.msra.mxu0 %v983
      %1208 = vmatprep.subr.bf16.mxu0 %v996
      %1209 = vmatpush1.bf16.msra.mxu0 %v995
      %1210 = vmatprep.subr.bf16.mxu0 %v1008
      %1211 = vmatpush1.bf16.msra.mxu0 %v1007
      %1212 = vmatprep.subr.bf16.mxu0 %v1020
      %1213 = vmatpush1.bf16.msra.mxu0 %v1019
      %1214 = vmatprep.subr.bf16.mxu0 0
      %1215 = vmatpush1.bf16.msra.mxu0 0
      %1216 = vmatprep.subr.bf16.mxu0 0
      %1217 = vmatpush1.bf16.msra.mxu0 0
      %1218 = vmatprep.subr.bf16.mxu0 0
      %1219 = vmatpush1.bf16.msra.mxu0 0
      %1220 = vmatprep.subr.bf16.mxu0 0
      %1221 = vmatpush1.bf16.msra.mxu0 0
      %1222 = vmatprep.subr.bf16.mxu0 0
      %1223 = vmatpush1.bf16.msra.mxu0 0
      %1224 = vmatprep.subr.bf16.mxu0 0
      %1225 = vmatpush1.bf16.msra.mxu0 0
      %1226 = vmatprep.subr.bf16.mxu0 0
      %1227 = vmatpush1.bf16.msra.mxu0 0
      %1228 = vmatprep.subr.bf16.mxu0 0
      %1229 = vmatpush1.bf16.msra.mxu0 0
      %1230 = vmatprep.mubr.bf16.mxu0 0
      %1231 = vmatmul.mubr.bf16.gmra.mrb[0].mxu0 %v481
      %v1232 = vpop.f32.mrb[0].mxu0
      %v1233 = vadd.f32 %v596, %v1232
      %v1234 = vpop.f32.mrb[0].mxu0
      %v1235 = vadd.f32 %v600, %v1234
      %v1236 = vpop.f32.mrb[0].mxu0
      %v1237 = vadd.f32 %v596, %v1236
      %v1238 = vpop.f32.mrb[0].mxu0
      %v1239 = vadd.f32 %v600, %v1238
      %1240 = vmatprep.mubr.bf16.mxu0 0
      %1241 = vmatmul.mubr.bf16.gmra.mrb[0].mxu0 %v482
      %v1242 = vpop.f32.mrb[0].mxu0
      %v1243 = vadd.f32 %v596, %v1242
      %v1244 = vpop.f32.mrb[0].mxu0
      %v1245 = vadd.f32 %v600, %v1244
      %v1246 = vpop.f32.mrb[0].mxu0
      %v1247 = vadd.f32 %v596, %v1246
      %v1248 = vpop.f32.mrb[0].mxu0
      %v1249 = vadd.f32 %v600, %v1248
      %1250 = vmatprep.mubr.bf16.mxu0 0
      %1251 = vmatmul.mubr.bf16.gmra.mrb[0].mxu0 %v483
      %v1252 = vpop.f32.mrb[0].mxu0
      %v1253 = vadd.f32 %v596, %v1252
      %v1254 = vpop.f32.mrb[0].mxu0
      %v1255 = vadd.f32 %v600, %v1254
      %v1256 = vpop.f32.mrb[0].mxu0
      %v1257 = vadd.f32 %v596, %v1256
      %v1258 = vpop.f32.mrb[0].mxu0
      %v1259 = vadd.f32 %v600, %v1258
      %1260 = vmatprep.mubr.bf16.mxu0 0
      %1261 = vmatmul.mubr.bf16.gmra.mrb[0].mxu0 %v484
      %v1262 = vpop.f32.mrb[0].mxu0
      %v1263 = vadd.f32 %v596, %v1262
      %v1264 = vpop.f32.mrb[0].mxu0
      %v1265 = vadd.f32 %v600, %v1264
      %v1266 = vpop.f32.mrb[0].mxu0
      %v1267 = vadd.f32 %v596, %v1266
      %v1268 = vpop.f32.mrb[0].mxu0
      %v1269 = vadd.f32 %v600, %v1268
      %1270 = vdwg.mxu0
      %1271 = vmatprep.subr.bf16.mxu0 %v938
      %1272 = vmatpush1.bf16.msra.mxu0 %v937
      %1273 = vmatprep.subr.bf16.mxu0 %v950
      %1274 = vmatpush1.bf16.msra.mxu0 %v949
      %1275 = vmatprep.subr.bf16.mxu0 %v962
      %1276 = vmatpush1.bf16.msra.mxu0 %v961
      %1277 = vmatprep.subr.bf16.mxu0 %v974
      %1278 = vmatpush1.bf16.msra.mxu0 %v973
      %1279 = vmatprep.subr.bf16.mxu0 %v986
      %1280 = vmatpush1.bf16.msra.mxu0 %v985
      %1281 = vmatprep.subr.bf16.mxu0 %v998
      %1282 = vmatpush1.bf16.msra.mxu0 %v997
      %1283 = vmatprep.subr.bf16.mxu0 %v1010
      %1284 = vmatpush1.bf16.msra.mxu0 %v1009
      %1285 = vmatprep.subr.bf16.mxu0 %v1022
      %1286 = vmatpush1.bf16.msra.mxu0 %v1021
      %1287 = vmatprep.subr.bf16.mxu0 0
      %1288 = vmatpush1.bf16.msra.mxu0 0
      %1289 = vmatprep.subr.bf16.mxu0 0
      %1290 = vmatpush1.bf16.msra.mxu0 0
      %1291 = vmatprep.subr.bf16.mxu0 0
      %1292 = vmatpush1.bf16.msra.mxu0 0
      %1293 = vmatprep.subr.bf16.mxu0 0
      %1294 = vmatpush1.bf16.msra.mxu0 0
      %1295 = vmatprep.subr.bf16.mxu0 0
      %1296 = vmatpush1.bf16.msra.mxu0 0
      %1297 = vmatprep.subr.bf16.mxu0 0
      %1298 = vmatpush1.bf16.msra.mxu0 0
      %1299 = vmatprep.subr.bf16.mxu0 0
      %1300 = vmatpush1.bf16.msra.mxu0 0
      %1301 = vmatprep.subr.bf16.mxu0 0
      %1302 = vmatpush1.bf16.msra.mxu0 0
      %1303 = vmatprep.mubr.bf16.mxu0 0
      %1304 = vmatmul.mubr.bf16.gmra.mrb[0].mxu0 %v481
      %v1305 = vpop.f32.mrb[0].mxu0
      %v1306 = vadd.f32 %v604, %v1305
      %v1307 = vpop.f32.mrb[0].mxu0
      %v1308 = vadd.f32 %v608, %v1307
      %v1309 = vpop.f32.mrb[0].mxu0
      %v1310 = vadd.f32 %v604, %v1309
      %v1311 = vpop.f32.mrb[0].mxu0
      %v1312 = vadd.f32 %v608, %v1311
      %1313 = vmatprep.mubr.bf16.mxu0 0
      %1314 = vmatmul.mubr.bf16.gmra.mrb[0].mxu0 %v482
      %v1315 = vpop.f32.mrb[0].mxu0
      %v1316 = vadd.f32 %v604, %v1315
      %v1317 = vpop.f32.mrb[0].mxu0
      %v1318 = vadd.f32 %v608, %v1317
      %v1319 = vpop.f32.mrb[0].mxu0
      %v1320 = vadd.f32 %v604, %v1319
      %v1321 = vpop.f32.mrb[0].mxu0
      %v1322 = vadd.f32 %v608, %v1321
      %1323 = vmatprep.mubr.bf16.mxu0 0
      %1324 = vmatmul.mubr.bf16.gmra.mrb[0].mxu0 %v483
      %v1325 = vpop.f32.mrb[0].mxu0
      %v1326 = vadd.f32 %v604, %v1325
      %v1327 = vpop.f32.mrb[0].mxu0
      %v1328 = vadd.f32 %v608, %v1327
      %v1329 = vpop.f32.mrb[0].mxu0
      %v1330 = vadd.f32 %v604, %v1329
      %v1331 = vpop.f32.mrb[0].mxu0
      %v1332 = vadd.f32 %v608, %v1331
      %1333 = vmatprep.mubr.bf16.mxu0 0
      %1334 = vmatmul.mubr.bf16.gmra.mrb[0].mxu0 %v484
      %v1335 = vpop.f32.mrb[0].mxu0
      %v1336 = vadd.f32 %v604, %v1335
      %v1337 = vpop.f32.mrb[0].mxu0
      %v1338 = vadd.f32 %v608, %v1337
      %v1339 = vpop.f32.mrb[0].mxu0
      %v1340 = vadd.f32 %v604, %v1339
      %v1341 = vpop.f32.mrb[0].mxu0
      %v1342 = vadd.f32 %v608, %v1341
      %1343 = vdwg.mxu0
      %1344 = vmatprep.subr.bf16.mxu0 %v940
      %1345 = vmatpush1.bf16.msra.mxu0 %v939
      %1346 = vmatprep.subr.bf16.mxu0 %v952
      %1347 = vmatpush1.bf16.msra.mxu0 %v951
      %1348 = vmatprep.subr.bf16.mxu0 %v964
      %1349 = vmatpush1.bf16.msra.mxu0 %v963
      %1350 = vmatprep.subr.bf16.mxu0 %v976
      %1351 = vmatpush1.bf16.msra.mxu0 %v975
      %1352 = vmatprep.subr.bf16.mxu0 %v988
      %1353 = vmatpush1.bf16.msra.mxu0 %v987
      %1354 = vmatprep.subr.bf16.mxu0 %v1000
      %1355 = vmatpush1.bf16.msra.mxu0 %v999
      %1356 = vmatprep.subr.bf16.mxu0 %v1012
      %1357 = vmatpush1.bf16.msra.mxu0 %v1011
      %1358 = vmatprep.subr.bf16.mxu0 %v1024
      %1359 = vmatpush1.bf16.msra.mxu0 %v1023
      %1360 = vmatprep.subr.bf16.mxu0 0
      %1361 = vmatpush1.bf16.msra.mxu0 0
      %1362 = vmatprep.subr.bf16.mxu0 0
      %1363 = vmatpush1.bf16.msra.mxu0 0
      %1364 = vmatprep.subr.bf16.mxu0 0
      %1365 = vmatpush1.bf16.msra.mxu0 0
      %1366 = vmatprep.subr.bf16.mxu0 0
      %1367 = vmatpush1.bf16.msra.mxu0 0
      %1368 = vmatprep.subr.bf16.mxu0 0
      %1369 = vmatpush1.bf16.msra.mxu0 0
      %1370 = vmatprep.subr.bf16.mxu0 0
      %1371 = vmatpush1.bf16.msra.mxu0 0
      %1372 = vmatprep.subr.bf16.mxu0 0
      %1373 = vmatpush1.bf16.msra.mxu0 0
      %1374 = vmatprep.subr.bf16.mxu0 0
      %1375 = vmatpush1.bf16.msra.mxu0 0
      %1376 = vmatprep.mubr.bf16.mxu0 0
      %1377 = vmatmul.mubr.bf16.gmra.mrb[0].mxu0 %v481
      %v1378 = vpop.f32.mrb[0].mxu0
      %v1379 = vadd.f32 %v612, %v1378
      %v1380 = vpop.f32.mrb[0].mxu0
      %v1381 = vadd.f32 %v616, %v1380
      %v1382 = vpop.f32.mrb[0].mxu0
      %v1383 = vadd.f32 %v612, %v1382
      %v1384 = vpop.f32.mrb[0].mxu0
      %v1385 = vadd.f32 %v616, %v1384
      %1386 = vmatprep.mubr.bf16.mxu0 0
      %1387 = vmatmul.mubr.bf16.gmra.mrb[0].mxu0 %v482
      %v1388 = vpop.f32.mrb[0].mxu0
      %v1389 = vadd.f32 %v612, %v1388
      %v1390 = vpop.f32.mrb[0].mxu0
      %v1391 = vadd.f32 %v616, %v1390
      %v1392 = vpop.f32.mrb[0].mxu0
      %v1393 = vadd.f32 %v612, %v1392
      %v1394 = vpop.f32.mrb[0].mxu0
      %v1395 = vadd.f32 %v616, %v1394
      %1396 = vmatprep.mubr.bf16.mxu0 0
      %1397 = vmatmul.mubr.bf16.gmra.mrb[0].mxu0 %v483
      %v1398 = vpop.f32.mrb[0].mxu0
      %v1399 = vadd.f32 %v612, %v1398
      %v1400 = vpop.f32.mrb[0].mxu0
      %v1401 = vadd.f32 %v616, %v1400
      %v1402 = vpop.f32.mrb[0].mxu0
      %v1403 = vadd.f32 %v612, %v1402
      %v1404 = vpop.f32.mrb[0].mxu0
      %v1405 = vadd.f32 %v616, %v1404
      %1406 = vmatprep.mubr.bf16.mxu0 0
      %1407 = vmatmul.mubr.bf16.gmra.mrb[0].mxu0 %v484
      %v1408 = vpop.f32.mrb[0].mxu0
      %v1409 = vadd.f32 %v612, %v1408
      %v1410 = vpop.f32.mrb[0].mxu0
      %v1411 = vadd.f32 %v616, %v1410
      %v1412 = vpop.f32.mrb[0].mxu0
      %v1413 = vadd.f32 %v612, %v1412
      %v1414 = vpop.f32.mrb[0].mxu0
      %v1415 = vadd.f32 %v616, %v1414
      %1416 = vdwg.mxu0
      %1417 = vmatprep.subr.bf16.mxu0 %v942
      %1418 = vmatpush1.bf16.msra.mxu0 %v941
      %1419 = vmatprep.subr.bf16.mxu0 %v954
      %1420 = vmatpush1.bf16.msra.mxu0 %v953
      %1421 = vmatprep.subr.bf16.mxu0 %v966
      %1422 = vmatpush1.bf16.msra.mxu0 %v965
      %1423 = vmatprep.subr.bf16.mxu0 %v978
      %1424 = vmatpush1.bf16.msra.mxu0 %v977
      %1425 = vmatprep.subr.bf16.mxu0 %v990
      %1426 = vmatpush1.bf16.msra.mxu0 %v989
      %1427 = vmatprep.subr.bf16.mxu0 %v1002
      %1428 = vmatpush1.bf16.msra.mxu0 %v1001
      %1429 = vmatprep.subr.bf16.mxu0 %v1014
      %1430 = vmatpush1.bf16.msra.mxu0 %v1013
      %1431 = vmatprep.subr.bf16.mxu0 %v1026
      %1432 = vmatpush1.bf16.msra.mxu0 %v1025
      %1433 = vmatprep.subr.bf16.mxu0 0
      %1434 = vmatpush1.bf16.msra.mxu0 0
      %1435 = vmatprep.subr.bf16.mxu0 0
      %1436 = vmatpush1.bf16.msra.mxu0 0
      %1437 = vmatprep.subr.bf16.mxu0 0
      %1438 = vmatpush1.bf16.msra.mxu0 0
      %1439 = vmatprep.subr.bf16.mxu0 0
      %1440 = vmatpush1.bf16.msra.mxu0 0
      %1441 = vmatprep.subr.bf16.mxu0 0
      %1442 = vmatpush1.bf16.msra.mxu0 0
      %1443 = vmatprep.subr.bf16.mxu0 0
      %1444 = vmatpush1.bf16.msra.mxu0 0
      %1445 = vmatprep.subr.bf16.mxu0 0
      %1446 = vmatpush1.bf16.msra.mxu0 0
      %1447 = vmatprep.subr.bf16.mxu0 0
      %1448 = vmatpush1.bf16.msra.mxu0 0
      %1449 = vmatprep.mubr.bf16.mxu0 0
      %1450 = vmatmul.mubr.bf16.gmra.mrb[0].mxu0 %v481
      %v1451 = vpop.f32.mrb[0].mxu0
      %v1452 = vadd.f32 %v620, %v1451
      %v1453 = vpop.f32.mrb[0].mxu0
      %v1454 = vadd.f32 %v624, %v1453
      %v1455 = vpop.f32.mrb[0].mxu0
      %v1456 = vadd.f32 %v620, %v1455
      %v1457 = vpop.f32.mrb[0].mxu0
      %v1458 = vadd.f32 %v624, %v1457
      %1459 = vmatprep.mubr.bf16.mxu0 0
      %1460 = vmatmul.mubr.bf16.gmra.mrb[0].mxu0 %v482
      %v1461 = vpop.f32.mrb[0].mxu0
      %v1462 = vadd.f32 %v620, %v1461
      %v1463 = vpop.f32.mrb[0].mxu0
      %v1464 = vadd.f32 %v624, %v1463
      %v1465 = vpop.f32.mrb[0].mxu0
      %v1466 = vadd.f32 %v620, %v1465
      %v1467 = vpop.f32.mrb[0].mxu0
      %v1468 = vadd.f32 %v624, %v1467
      %1469 = vmatprep.mubr.bf16.mxu0 0
      %1470 = vmatmul.mubr.bf16.gmra.mrb[0].mxu0 %v483
      %v1471 = vpop.f32.mrb[0].mxu0
      %v1472 = vadd.f32 %v620, %v1471
      %v1473 = vpop.f32.mrb[0].mxu0
      %v1474 = vadd.f32 %v624, %v1473
      %v1475 = vpop.f32.mrb[0].mxu0
      %v1476 = vadd.f32 %v620, %v1475
      %v1477 = vpop.f32.mrb[0].mxu0
      %v1478 = vadd.f32 %v624, %v1477
      %1479 = vmatprep.mubr.bf16.mxu0 0
      %1480 = vmatmul.mubr.bf16.gmra.mrb[0].mxu0 %v484
      %v1481 = vpop.f32.mrb[0].mxu0
      %v1482 = vadd.f32 %v620, %v1481
      %v1483 = vpop.f32.mrb[0].mxu0
      %v1484 = vadd.f32 %v624, %v1483
      %v1485 = vpop.f32.mrb[0].mxu0
      %v1486 = vadd.f32 %v620, %v1485
      %v1487 = vpop.f32.mrb[0].mxu0
      %v1488 = vadd.f32 %v624, %v1487
      %1489 = vdwg.mxu0
      %1490 = vmatprep.subr.bf16.mxu0 %v944
      %1491 = vmatpush1.bf16.msra.mxu0 %v943
      %1492 = vmatprep.subr.bf16.mxu0 %v956
      %1493 = vmatpush1.bf16.msra.mxu0 %v955
      %1494 = vmatprep.subr.bf16.mxu0 %v968
      %1495 = vmatpush1.bf16.msra.mxu0 %v967
      %1496 = vmatprep.subr.bf16.mxu0 %v980
      %1497 = vmatpush1.bf16.msra.mxu0 %v979
      %1498 = vmatprep.subr.bf16.mxu0 %v992
      %1499 = vmatpush1.bf16.msra.mxu0 %v991
      %1500 = vmatprep.subr.bf16.mxu0 %v1004
      %1501 = vmatpush1.bf16.msra.mxu0 %v1003
      %1502 = vmatprep.subr.bf16.mxu0 %v1016
      %1503 = vmatpush1.bf16.msra.mxu0 %v1015
      %1504 = vmatprep.subr.bf16.mxu0 %v1028
      %1505 = vmatpush1.bf16.msra.mxu0 %v1027
      %1506 = vmatprep.subr.bf16.mxu0 0
      %1507 = vmatpush1.bf16.msra.mxu0 0
      %1508 = vmatprep.subr.bf16.mxu0 0
      %1509 = vmatpush1.bf16.msra.mxu0 0
      %1510 = vmatprep.subr.bf16.mxu0 0
      %1511 = vmatpush1.bf16.msra.mxu0 0
      %1512 = vmatprep.subr.bf16.mxu0 0
      %1513 = vmatpush1.bf16.msra.mxu0 0
      %1514 = vmatprep.subr.bf16.mxu0 0
      %1515 = vmatpush1.bf16.msra.mxu0 0
      %1516 = vmatprep.subr.bf16.mxu0 0
      %1517 = vmatpush1.bf16.msra.mxu0 0
      %1518 = vmatprep.subr.bf16.mxu0 0
      %1519 = vmatpush1.bf16.msra.mxu0 0
      %1520 = vmatprep.subr.bf16.mxu0 0
      %1521 = vmatpush1.bf16.msra.mxu0 0
      %1522 = vmatprep.mubr.bf16.mxu0 0
      %1523 = vmatmul.mubr.bf16.gmra.mrb[0].mxu0 %v481
      %v1524 = vpop.f32.mrb[0].mxu0
      %v1525 = vadd.f32 %v628, %v1524
      %v1526 = vpop.f32.mrb[0].mxu0
      %v1527 = vadd.f32 %v632, %v1526
      %v1528 = vpop.f32.mrb[0].mxu0
      %v1529 = vadd.f32 %v628, %v1528
      %v1530 = vpop.f32.mrb[0].mxu0
      %v1531 = vadd.f32 %v632, %v1530
      %1532 = vmatprep.mubr.bf16.mxu0 0
      %1533 = vmatmul.mubr.bf16.gmra.mrb[0].mxu0 %v482
      %v1534 = vpop.f32.mrb[0].mxu0
      %v1535 = vadd.f32 %v628, %v1534
      %v1536 = vpop.f32.mrb[0].mxu0
      %v1537 = vadd.f32 %v632, %v1536
      %v1538 = vpop.f32.mrb[0].mxu0
      %v1539 = vadd.f32 %v628, %v1538
      %v1540 = vpop.f32.mrb[0].mxu0
      %v1541 = vadd.f32 %v632, %v1540
      %1542 = vmatprep.mubr.bf16.mxu0 0
      %1543 = vmatmul.mubr.bf16.gmra.mrb[0].mxu0 %v483
      %v1544 = vpop.f32.mrb[0].mxu0
      %v1545 = vadd.f32 %v628, %v1544
      %v1546 = vpop.f32.mrb[0].mxu0
      %v1547 = vadd.f32 %v632, %v1546
      %v1548 = vpop.f32.mrb[0].mxu0
      %v1549 = vadd.f32 %v628, %v1548
      %v1550 = vpop.f32.mrb[0].mxu0
      %v1551 = vadd.f32 %v632, %v1550
      %1552 = vmatprep.mubr.bf16.mxu0 0
      %1553 = vmatmul.mubr.bf16.gmra.mrb[0].mxu0 %v484
      %v1554 = vpop.f32.mrb[0].mxu0
      %v1555 = vadd.f32 %v628, %v1554
      %v1556 = vpop.f32.mrb[0].mxu0
      %v1557 = vadd.f32 %v632, %v1556
      %v1558 = vpop.f32.mrb[0].mxu0
      %v1559 = vadd.f32 %v628, %v1558
      %v1560 = vpop.f32.mrb[0].mxu0
      %v1561 = vadd.f32 %v632, %v1560
      %1562 = vdwg.mxu0
      %v1563 = vpack.c.bf16 %v1164, %v1160
      %v1564 = vpack.c.bf16 %v1166, %v1162
      %v1565 = vpack.c.bf16 %v1237, %v1233
      %v1566 = vpack.c.bf16 %v1239, %v1235
      %v1567 = vpack.c.bf16 %v1310, %v1306
      %v1568 = vpack.c.bf16 %v1312, %v1308
      %v1569 = vpack.c.bf16 %v1383, %v1379
      %v1570 = vpack.c.bf16 %v1385, %v1381
      %v1571 = vpack.c.bf16 %v1456, %v1452
      %v1572 = vpack.c.bf16 %v1458, %v1454
      %v1573 = vpack.c.bf16 %v1529, %v1525
      %v1574 = vpack.c.bf16 %v1531, %v1527
      %v1575 = vpack.c.bf16 %v1174, %v1170
      %v1576 = vpack.c.bf16 %v1176, %v1172
      %v1577 = vpack.c.bf16 %v1247, %v1243
      %v1578 = vpack.c.bf16 %v1249, %v1245
      %v1579 = vpack.c.bf16 %v1320, %v1316
      %v1580 = vpack.c.bf16 %v1322, %v1318
      %v1581 = vpack.c.bf16 %v1393, %v1389
      %v1582 = vpack.c.bf16 %v1395, %v1391
      %v1583 = vpack.c.bf16 %v1466, %v1462
      %v1584 = vpack.c.bf16 %v1468, %v1464
      %v1585 = vpack.c.bf16 %v1539, %v1535
      %v1586 = vpack.c.bf16 %v1541, %v1537
      %v1587 = vpack.c.bf16 %v1184, %v1180
      %v1588 = vpack.c.bf16 %v1186, %v1182
      %v1589 = vpack.c.bf16 %v1257, %v1253
      %v1590 = vpack.c.bf16 %v1259, %v1255
      %v1591 = vpack.c.bf16 %v1330, %v1326
      %v1592 = vpack.c.bf16 %v1332, %v1328
      %v1593 = vpack.c.bf16 %v1403, %v1399
      %v1594 = vpack.c.bf16 %v1405, %v1401
      %v1595 = vpack.c.bf16 %v1476, %v1472
      %v1596 = vpack.c.bf16 %v1478, %v1474
      %v1597 = vpack.c.bf16 %v1549, %v1545
      %v1598 = vpack.c.bf16 %v1551, %v1547
      %v1599 = vpack.c.bf16 %v1194, %v1190
      %v1600 = vpack.c.bf16 %v1196, %v1192
      %v1601 = vpack.c.bf16 %v1267, %v1263
      %v1602 = vpack.c.bf16 %v1269, %v1265
      %v1603 = vpack.c.bf16 %v1340, %v1336
      %v1604 = vpack.c.bf16 %v1342, %v1338
      %v1605 = vpack.c.bf16 %v1413, %v1409
      %v1606 = vpack.c.bf16 %v1415, %v1411
      %v1607 = vpack.c.bf16 %v1486, %v1482
      %v1608 = vpack.c.bf16 %v1488, %v1484
      %v1609 = vpack.c.bf16 %v1559, %v1555
      %v1610 = vpack.c.bf16 %v1561, %v1557
      %v1611 = vxor.u32 %v1563, 2147516416
      %v1612 = vxor.u32 %v1564, 2147516416
      %v1613 = vxor.u32 %v1565, 2147516416
      %v1614 = vxor.u32 %v1566, 2147516416
      %v1615 = vxor.u32 %v1567, 2147516416
      %v1616 = vxor.u32 %v1568, 2147516416
      %v1617 = vxor.u32 %v1569, 2147516416
      %v1618 = vxor.u32 %v1570, 2147516416
      %v1619 = vxor.u32 %v1571, 2147516416
      %v1620 = vxor.u32 %v1572, 2147516416
      %v1621 = vxor.u32 %v1573, 2147516416
      %v1622 = vxor.u32 %v1574, 2147516416
      %v1623 = vxor.u32 %v1575, 2147516416
      %v1624 = vxor.u32 %v1576, 2147516416
      %v1625 = vxor.u32 %v1577, 2147516416
      %v1626 = vxor.u32 %v1578, 2147516416
      %v1627 = vxor.u32 %v1579, 2147516416
      %v1628 = vxor.u32 %v1580, 2147516416
      %v1629 = vxor.u32 %v1581, 2147516416
      %v1630 = vxor.u32 %v1582, 2147516416
      %v1631 = vxor.u32 %v1583, 2147516416
      %v1632 = vxor.u32 %v1584, 2147516416
      %v1633 = vxor.u32 %v1585, 2147516416
      %v1634 = vxor.u32 %v1586, 2147516416
      %v1635 = vxor.u32 %v1587, 2147516416
      %v1636 = vxor.u32 %v1588, 2147516416
      %v1637 = vxor.u32 %v1589, 2147516416
      %v1638 = vxor.u32 %v1590, 2147516416
      %v1639 = vxor.u32 %v1591, 2147516416
      %v1640 = vxor.u32 %v1592, 2147516416
      %v1641 = vxor.u32 %v1593, 2147516416
      %v1642 = vxor.u32 %v1594, 2147516416
      %v1643 = vxor.u32 %v1595, 2147516416
      %v1644 = vxor.u32 %v1596, 2147516416
      %v1645 = vxor.u32 %v1597, 2147516416
      %v1646 = vxor.u32 %v1598, 2147516416
      %v1647 = vxor.u32 %v1599, 2147516416
      %v1648 = vxor.u32 %v1600, 2147516416
      %v1649 = vxor.u32 %v1601, 2147516416
      %v1650 = vxor.u32 %v1602, 2147516416
      %v1651 = vxor.u32 %v1603, 2147516416
      %v1652 = vxor.u32 %v1604, 2147516416
      %v1653 = vxor.u32 %v1605, 2147516416
      %v1654 = vxor.u32 %v1606, 2147516416
      %v1655 = vxor.u32 %v1607, 2147516416
      %v1656 = vxor.u32 %v1608, 2147516416
      %v1657 = vxor.u32 %v1609, 2147516416
      %v1658 = vxor.u32 %v1610, 2147516416
      %v1660 = vmul.bf16 %v1611, 1069105081
      %v1661 = vpow.bf16.pop %v1660
      %v1663 = vmul.bf16 %v1612, 1069105081
      %v1664 = vpow.bf16.pop %v1663
      %v1666 = vmul.bf16 %v1613, 1069105081
      %v1667 = vpow.bf16.pop %v1666
      %v1669 = vmul.bf16 %v1614, 1069105081
      %v1670 = vpow.bf16.pop %v1669
      %v1672 = vmul.bf16 %v1615, 1069105081
      %v1673 = vpow.bf16.pop %v1672
      %v1675 = vmul.bf16 %v1616, 1069105081
      %v1676 = vpow.bf16.pop %v1675
      %v1678 = vmul.bf16 %v1617, 1069105081
      %v1679 = vpow.bf16.pop %v1678
      %v1681 = vmul.bf16 %v1618, 1069105081
      %v1682 = vpow.bf16.pop %v1681
      %v1684 = vmul.bf16 %v1619, 1069105081
      %v1685 = vpow.bf16.pop %v1684
      %v1687 = vmul.bf16 %v1620, 1069105081
      %v1688 = vpow.bf16.pop %v1687
      %v1690 = vmul.bf16 %v1621, 1069105081
      %v1691 = vpow.bf16.pop %v1690
      %v1693 = vmul.bf16 %v1622, 1069105081
      %v1694 = vpow.bf16.pop %v1693
      %v1696 = vmul.bf16 %v1623, 1069105081
      %v1697 = vpow.bf16.pop %v1696
      %v1699 = vmul.bf16 %v1624, 1069105081
      %v1700 = vpow.bf16.pop %v1699
      %v1702 = vmul.bf16 %v1625, 1069105081
      %v1703 = vpow.bf16.pop %v1702
      %v1705 = vmul.bf16 %v1626, 1069105081
      %v1706 = vpow.bf16.pop %v1705
      %v1708 = vmul.bf16 %v1627, 1069105081
      %v1709 = vpow.bf16.pop %v1708
      %v1711 = vmul.bf16 %v1628, 1069105081
      %v1712 = vpow.bf16.pop %v1711
      %v1714 = vmul.bf16 %v1629, 1069105081
      %v1715 = vpow.bf16.pop %v1714
      %v1717 = vmul.bf16 %v1630, 1069105081
      %v1718 = vpow.bf16.pop %v1717
      %v1720 = vmul.bf16 %v1631, 1069105081
      %v1721 = vpow.bf16.pop %v1720
      %v1723 = vmul.bf16 %v1632, 1069105081
      %v1724 = vpow.bf16.pop %v1723
      %v1726 = vmul.bf16 %v1633, 1069105081
      %v1727 = vpow.bf16.pop %v1726
      %v1729 = vmul.bf16 %v1634, 1069105081
      %v1730 = vpow.bf16.pop %v1729
      %v1732 = vmul.bf16 %v1635, 1069105081
      %v1733 = vpow.bf16.pop %v1732
      %v1735 = vmul.bf16 %v1636, 1069105081
      %v1736 = vpow.bf16.pop %v1735
      %v1738 = vmul.bf16 %v1637, 1069105081
      %v1739 = vpow.bf16.pop %v1738
      %v1741 = vmul.bf16 %v1638, 1069105081
      %v1742 = vpow.bf16.pop %v1741
      %v1744 = vmul.bf16 %v1639, 1069105081
      %v1745 = vpow.bf16.pop %v1744
      %v1747 = vmul.bf16 %v1640, 1069105081
      %v1748 = vpow.bf16.pop %v1747
      %v1750 = vmul.bf16 %v1641, 1069105081
      %v1751 = vpow.bf16.pop %v1750
      %v1753 = vmul.bf16 %v1642, 1069105081
      %v1754 = vpow.bf16.pop %v1753
      %v1756 = vmul.bf16 %v1643, 1069105081
      %v1757 = vpow.bf16.pop %v1756
      %v1759 = vmul.bf16 %v1644, 1069105081
      %v1760 = vpow.bf16.pop %v1759
      %v1762 = vmul.bf16 %v1645, 1069105081
      %v1763 = vpow.bf16.pop %v1762
      %v1765 = vmul.bf16 %v1646, 1069105081
      %v1766 = vpow.bf16.pop %v1765
      %v1768 = vmul.bf16 %v1647, 1069105081
      %v1769 = vpow.bf16.pop %v1768
      %v1771 = vmul.bf16 %v1648, 1069105081
      %v1772 = vpow.bf16.pop %v1771
      %v1774 = vmul.bf16 %v1649, 1069105081
      %v1775 = vpow.bf16.pop %v1774
      %v1777 = vmul.bf16 %v1650, 1069105081
      %v1778 = vpow.bf16.pop %v1777
      %v1780 = vmul.bf16 %v1651, 1069105081
      %v1781 = vpow.bf16.pop %v1780
      %v1783 = vmul.bf16 %v1652, 1069105081
      %v1784 = vpow.bf16.pop %v1783
      %v1786 = vmul.bf16 %v1653, 1069105081
      %v1787 = vpow.bf16.pop %v1786
      %v1789 = vmul.bf16 %v1654, 1069105081
      %v1790 = vpow.bf16.pop %v1789
      %v1792 = vmul.bf16 %v1655, 1069105081
      %v1793 = vpow.bf16.pop %v1792
      %v1795 = vmul.bf16 %v1656, 1069105081
      %v1796 = vpow.bf16.pop %v1795
      %v1798 = vmul.bf16 %v1657, 1069105081
      %v1799 = vpow.bf16.pop %v1798
      %v1801 = vmul.bf16 %v1658, 1069105081
      %v1802 = vpow.bf16.pop %v1801
      %v1803 = vadd.bf16 %v1661, 1065369472
      %v1804 = vadd.bf16 %v1664, 1065369472
      %v1805 = vadd.bf16 %v1667, 1065369472
      %v1806 = vadd.bf16 %v1670, 1065369472
      %v1807 = vadd.bf16 %v1673, 1065369472
      %v1808 = vadd.bf16 %v1676, 1065369472
      %v1809 = vadd.bf16 %v1679, 1065369472
      %v1810 = vadd.bf16 %v1682, 1065369472
      %v1811 = vadd.bf16 %v1685, 1065369472
      %v1812 = vadd.bf16 %v1688, 1065369472
      %v1813 = vadd.bf16 %v1691, 1065369472
      %v1814 = vadd.bf16 %v1694, 1065369472
      %v1815 = vadd.bf16 %v1697, 1065369472
      %v1816 = vadd.bf16 %v1700, 1065369472
      %v1817 = vadd.bf16 %v1703, 1065369472
      %v1818 = vadd.bf16 %v1706, 1065369472
      %v1819 = vadd.bf16 %v1709, 1065369472
      %v1820 = vadd.bf16 %v1712, 1065369472
      %v1821 = vadd.bf16 %v1715, 1065369472
      %v1822 = vadd.bf16 %v1718, 1065369472
      %v1823 = vadd.bf16 %v1721, 1065369472
      %v1824 = vadd.bf16 %v1724, 1065369472
      %v1825 = vadd.bf16 %v1727, 1065369472
      %v1826 = vadd.bf16 %v1730, 1065369472
      %v1827 = vadd.bf16 %v1733, 1065369472
      %v1828 = vadd.bf16 %v1736, 1065369472
      %v1829 = vadd.bf16 %v1739, 1065369472
      %v1830 = vadd.bf16 %v1742, 1065369472
      %v1831 = vadd.bf16 %v1745, 1065369472
      %v1832 = vadd.bf16 %v1748, 1065369472
      %v1833 = vadd.bf16 %v1751, 1065369472
      %v1834 = vadd.bf16 %v1754, 1065369472
      %v1835 = vadd.bf16 %v1757, 1065369472
      %v1836 = vadd.bf16 %v1760, 1065369472
      %v1837 = vadd.bf16 %v1763, 1065369472
      %v1838 = vadd.bf16 %v1766, 1065369472
      %v1839 = vadd.bf16 %v1769, 1065369472
      %v1840 = vadd.bf16 %v1772, 1065369472
      %v1841 = vadd.bf16 %v1775, 1065369472
      %v1842 = vadd.bf16 %v1778, 1065369472
      %v1843 = vadd.bf16 %v1781, 1065369472
      %v1844 = vadd.bf16 %v1784, 1065369472
      %v1845 = vadd.bf16 %v1787, 1065369472
      %v1846 = vadd.bf16 %v1790, 1065369472
      %v1847 = vadd.bf16 %v1793, 1065369472
      %v1848 = vadd.bf16 %v1796, 1065369472
      %v1849 = vadd.bf16 %v1799, 1065369472
      %v1850 = vadd.bf16 %v1802, 1065369472
      %v1851 = vrcp.bf16.pop %v1803
      %v1852 = vmul.bf16 1065369472, %v1851
      %v1853 = vrcp.bf16.pop %v1804
      %v1854 = vmul.bf16 1065369472, %v1853
      %v1855 = vrcp.bf16.pop %v1805
      %v1856 = vmul.bf16 1065369472, %v1855
      %v1857 = vrcp.bf16.pop %v1806
      %v1858 = vmul.bf16 1065369472, %v1857
      %v1859 = vrcp.bf16.pop %v1807
      %v1860 = vmul.bf16 1065369472, %v1859
      %v1861 = vrcp.bf16.pop %v1808
      %v1862 = vmul.bf16 1065369472, %v1861
      %v1863 = vrcp.bf16.pop %v1809
      %v1864 = vmul.bf16 1065369472, %v1863
      %v1865 = vrcp.bf16.pop %v1810
      %v1866 = vmul.bf16 1065369472, %v1865
      %v1867 = vrcp.bf16.pop %v1811
      %v1868 = vmul.bf16 1065369472, %v1867
      %v1869 = vrcp.bf16.pop %v1812
      %v1870 = vmul.bf16 1065369472, %v1869
      %v1871 = vrcp.bf16.pop %v1813
      %v1872 = vmul.bf16 1065369472, %v1871
      %v1873 = vrcp.bf16.pop %v1814
      %v1874 = vmul.bf16 1065369472, %v1873
      %v1875 = vrcp.bf16.pop %v1815
      %v1876 = vmul.bf16 1065369472, %v1875
      %v1877 = vrcp.bf16.pop %v1816
      %v1878 = vmul.bf16 1065369472, %v1877
      %v1879 = vrcp.bf16.pop %v1817
      %v1880 = vmul.bf16 1065369472, %v1879
      %v1881 = vrcp.bf16.pop %v1818
      %v1882 = vmul.bf16 1065369472, %v1881
      %v1883 = vrcp.bf16.pop %v1819
      %v1884 = vmul.bf16 1065369472, %v1883
      %v1885 = vrcp.bf16.pop %v1820
      %v1886 = vmul.bf16 1065369472, %v1885
      %v1887 = vrcp.bf16.pop %v1821
      %v1888 = vmul.bf16 1065369472, %v1887
      %v1889 = vrcp.bf16.pop %v1822
      %v1890 = vmul.bf16 1065369472, %v1889
      %v1891 = vrcp.bf16.pop %v1823
      %v1892 = vmul.bf16 1065369472, %v1891
      %v1893 = vrcp.bf16.pop %v1824
      %v1894 = vmul.bf16 1065369472, %v1893
      %v1895 = vrcp.bf16.pop %v1825
      %v1896 = vmul.bf16 1065369472, %v1895
      %v1897 = vrcp.bf16.pop %v1826
      %v1898 = vmul.bf16 1065369472, %v1897
      %v1899 = vrcp.bf16.pop %v1827
      %v1900 = vmul.bf16 1065369472, %v1899
      %v1901 = vrcp.bf16.pop %v1828
      %v1902 = vmul.bf16 1065369472, %v1901
      %v1903 = vrcp.bf16.pop %v1829
      %v1904 = vmul.bf16 1065369472, %v1903
      %v1905 = vrcp.bf16.pop %v1830
      %v1906 = vmul.bf16 1065369472, %v1905
      %v1907 = vrcp.bf16.pop %v1831
      %v1908 = vmul.bf16 1065369472, %v1907
      %v1909 = vrcp.bf16.pop %v1832
      %v1910 = vmul.bf16 1065369472, %v1909
      %v1911 = vrcp.bf16.pop %v1833
      %v1912 = vmul.bf16 1065369472, %v1911
      %v1913 = vrcp.bf16.pop %v1834
      %v1914 = vmul.bf16 1065369472, %v1913
      %v1915 = vrcp.bf16.pop %v1835
      %v1916 = vmul.bf16 1065369472, %v1915
      %v1917 = vrcp.bf16.pop %v1836
      %v1918 = vmul.bf16 1065369472, %v1917
      %v1919 = vrcp.bf16.pop %v1837
      %v1920 = vmul.bf16 1065369472, %v1919
      %v1921 = vrcp.bf16.pop %v1838
      %v1922 = vmul.bf16 1065369472, %v1921
      %v1923 = vrcp.bf16.pop %v1839
      %v1924 = vmul.bf16 1065369472, %v1923
      %v1925 = vrcp.bf16.pop %v1840
      %v1926 = vmul.bf16 1065369472, %v1925
      %v1927 = vrcp.bf16.pop %v1841
      %v1928 = vmul.bf16 1065369472, %v1927
      %v1929 = vrcp.bf16.pop %v1842
      %v1930 = vmul.bf16 1065369472, %v1929
      %v1931 = vrcp.bf16.pop %v1843
      %v1932 = vmul.bf16 1065369472, %v1931
      %v1933 = vrcp.bf16.pop %v1844
      %v1934 = vmul.bf16 1065369472, %v1933
      %v1935 = vrcp.bf16.pop %v1845
      %v1936 = vmul.bf16 1065369472, %v1935
      %v1937 = vrcp.bf16.pop %v1846
      %v1938 = vmul.bf16 1065369472, %v1937
      %v1939 = vrcp.bf16.pop %v1847
      %v1940 = vmul.bf16 1065369472, %v1939
      %v1941 = vrcp.bf16.pop %v1848
      %v1942 = vmul.bf16 1065369472, %v1941
      %v1943 = vrcp.bf16.pop %v1849
      %v1944 = vmul.bf16 1065369472, %v1943
      %v1945 = vrcp.bf16.pop %v1850
      %v1946 = vmul.bf16 1065369472, %v1945
      %v1947 = vmul.bf16 %v1563, %v1852
      %v1948 = vmul.bf16 %v1564, %v1854
      %v1949 = vmul.bf16 %v1565, %v1856
      %v1950 = vmul.bf16 %v1566, %v1858
      %v1951 = vmul.bf16 %v1567, %v1860
      %v1952 = vmul.bf16 %v1568, %v1862
      %v1953 = vmul.bf16 %v1569, %v1864
      %v1954 = vmul.bf16 %v1570, %v1866
      %v1955 = vmul.bf16 %v1571, %v1868
      %v1956 = vmul.bf16 %v1572, %v1870
      %v1957 = vmul.bf16 %v1573, %v1872
      %v1958 = vmul.bf16 %v1574, %v1874
      %v1959 = vmul.bf16 %v1575, %v1876
      %v1960 = vmul.bf16 %v1576, %v1878
      %v1961 = vmul.bf16 %v1577, %v1880
      %v1962 = vmul.bf16 %v1578, %v1882
      %v1963 = vmul.bf16 %v1579, %v1884
      %v1964 = vmul.bf16 %v1580, %v1886
      %v1965 = vmul.bf16 %v1581, %v1888
      %v1966 = vmul.bf16 %v1582, %v1890
      %v1967 = vmul.bf16 %v1583, %v1892
      %v1968 = vmul.bf16 %v1584, %v1894
      %v1969 = vmul.bf16 %v1585, %v1896
      %v1970 = vmul.bf16 %v1586, %v1898
      %v1971 = vmul.bf16 %v1587, %v1900
      %v1972 = vmul.bf16 %v1588, %v1902
      %v1973 = vmul.bf16 %v1589, %v1904
      %v1974 = vmul.bf16 %v1590, %v1906
      %v1975 = vmul.bf16 %v1591, %v1908
      %v1976 = vmul.bf16 %v1592, %v1910
      %v1977 = vmul.bf16 %v1593, %v1912
      %v1978 = vmul.bf16 %v1594, %v1914
      %v1979 = vmul.bf16 %v1595, %v1916
      %v1980 = vmul.bf16 %v1596, %v1918
      %v1981 = vmul.bf16 %v1597, %v1920
      %v1982 = vmul.bf16 %v1598, %v1922
      %v1983 = vmul.bf16 %v1599, %v1924
      %v1984 = vmul.bf16 %v1600, %v1926
      %v1985 = vmul.bf16 %v1601, %v1928
      %v1986 = vmul.bf16 %v1602, %v1930
      %v1987 = vmul.bf16 %v1603, %v1932
      %v1988 = vmul.bf16 %v1604, %v1934
      %v1989 = vmul.bf16 %v1605, %v1936
      %v1990 = vmul.bf16 %v1606, %v1938
      %v1991 = vmul.bf16 %v1607, %v1940
      %v1992 = vmul.bf16 %v1608, %v1942
      %v1993 = vmul.bf16 %v1609, %v1944
      %v1994 = vmul.bf16 %v1610, %v1946
      %s1995 = sadd.s32 %s23, %s24
      %s1996 = smul.u32 %s1995, 64
      %v1997 = vlaneseq
      %v1998 = vshrl.u32 %v1997, 7
      %v1999 = vadd.s32 %v1998, 8
      %v2000 = vadd.s32 %v1998, 16
      %v2001 = vadd.s32 %v1998, 24
      %v2002 = vadd.s32 %v1998, 32
      %v2003 = vadd.s32 %v1998, 40
      %v2004 = vadd.s32 %v1998, 48
      %v2005 = vadd.s32 %v1998, 56
      %v2006 = vstv %s1996
      %v2007 = vadd.s32 %v2006, %v1998
      %v2008 = vadd.s32 %v2006, %v1999
      %v2009 = vadd.s32 %v2006, %v2000
      %v2010 = vadd.s32 %v2006, %v2001
      %v2011 = vadd.s32 %v2006, %v2002
      %v2012 = vadd.s32 %v2006, %v2003
      %v2013 = vadd.s32 %v2006, %v2004
      %v2014 = vadd.s32 %v2006, %v2005
      %vm2015 = vcmp.lt.s32.totalorder %v2007, 64
      %vm2016 = vcmp.lt.s32.totalorder %v2008, 64
      %vm2017 = vcmp.lt.s32.totalorder %v2009, 64
      %vm2018 = vcmp.lt.s32.totalorder %v2010, 64
      %vm2019 = vcmp.lt.s32.totalorder %v2011, 64
      %vm2020 = vcmp.lt.s32.totalorder %v2012, 64
      %vm2021 = vcmp.lt.s32.totalorder %v2013, 64
      %vm2022 = vcmp.lt.s32.totalorder %v2014, 64
      %v2023 = vsel %vm2015, 1, 0
      %v2024 = vsel %vm2016, 1, 0
      %v2025 = vsel %vm2017, 1, 0
      %v2026 = vsel %vm2018, 1, 0
      %v2027 = vsel %vm2019, 1, 0
      %v2028 = vsel %vm2020, 1, 0
      %v2029 = vsel %vm2021, 1, 0
      %v2030 = vsel %vm2022, 1, 0
      %vm2031 = vcmp.eq.s32.totalorder %v2023, 1
      %vm2032 = vcmp.eq.s32.totalorder %v2024, 1
      %vm2033 = vcmp.eq.s32.totalorder %v2025, 1
      %vm2034 = vcmp.eq.s32.totalorder %v2026, 1
      %vm2035 = vcmp.eq.s32.totalorder %v2027, 1
      %vm2036 = vcmp.eq.s32.totalorder %v2028, 1
      %vm2037 = vcmp.eq.s32.totalorder %v2029, 1
      %vm2038 = vcmp.eq.s32.totalorder %v2030, 1
      %vm2039 = vmpackc.low %vm2031, %vm2031
      %vm2040 = vmpackc.low %vm2032, %vm2032
      %vm2041 = vmpackc.low %vm2033, %vm2033
      %vm2042 = vmpackc.low %vm2034, %vm2034
      %vm2043 = vmpackc.low %vm2035, %vm2035
      %vm2044 = vmpackc.low %vm2036, %vm2036
      %vm2045 = vmpackc.low %vm2037, %vm2037
      %vm2046 = vmpackc.low %vm2038, %vm2038
      %v2047 = vsel %vm2039, 65537, 0
      %v2048 = vsel %vm2040, 65537, 0
      %v2049 = vsel %vm2041, 65537, 0
      %v2050 = vsel %vm2042, 65537, 0
      %v2051 = vsel %vm2043, 65537, 0
      %v2052 = vsel %vm2044, 65537, 0
      %v2053 = vsel %vm2045, 65537, 0
      %v2054 = vsel %vm2046, 65537, 0
      %v2055 = vunpack.c.l.b16 %v2047
      %v2056 = vunpack.c.l.b16 %v2048
      %v2057 = vunpack.c.l.b16 %v2049
      %v2058 = vunpack.c.l.b16 %v2050
      %v2059 = vunpack.c.l.b16 %v2051
      %v2060 = vunpack.c.l.b16 %v2052
      %v2061 = vunpack.c.l.b16 %v2053
      %v2062 = vunpack.c.l.b16 %v2054
      %v2063 = vpack.c.b16 %v2056, %v2055
      %v2064 = vpack.c.b16 %v2058, %v2057
      %v2065 = vpack.c.b16 %v2060, %v2059
      %v2066 = vpack.c.b16 %v2062, %v2061
      %vm2067 = vcmp.ne.s16.totalorder %v2063, 0
      %vm2068 = vcmp.ne.s16.totalorder %v2064, 0
      %vm2069 = vcmp.ne.s16.totalorder %v2065, 0
      %vm2070 = vcmp.ne.s16.totalorder %v2066, 0
      %v2071 = vsel %vm2067, %v1947, 0
      %v2072 = vsel %vm2067, %v1948, 0
      %v2073 = vsel %vm2067, %v1949, 0
      %v2074 = vsel %vm2067, %v1950, 0
      %v2075 = vsel %vm2067, %v1951, 0
      %v2076 = vsel %vm2067, %v1952, 0
      %v2077 = vsel %vm2067, %v1953, 0
      %v2078 = vsel %vm2067, %v1954, 0
      %v2079 = vsel %vm2067, %v1955, 0
      %v2080 = vsel %vm2067, %v1956, 0
      %v2081 = vsel %vm2067, %v1957, 0
      %v2082 = vsel %vm2067, %v1958, 0
      %v2083 = vsel %vm2068, %v1959, 0
      %v2084 = vsel %vm2068, %v1960, 0
      %v2085 = vsel %vm2068, %v1961, 0
      %v2086 = vsel %vm2068, %v1962, 0
      %v2087 = vsel %vm2068, %v1963, 0
      %v2088 = vsel %vm2068, %v1964, 0
      %v2089 = vsel %vm2068, %v1965, 0
      %v2090 = vsel %vm2068, %v1966, 0
      %v2091 = vsel %vm2068, %v1967, 0
      %v2092 = vsel %vm2068, %v1968, 0
      %v2093 = vsel %vm2068, %v1969, 0
      %v2094 = vsel %vm2068, %v1970, 0
      %v2095 = vsel %vm2069, %v1971, 0
      %v2096 = vsel %vm2069, %v1972, 0
      %v2097 = vsel %vm2069, %v1973, 0
      %v2098 = vsel %vm2069, %v1974, 0
      %v2099 = vsel %vm2069, %v1975, 0
      %v2100 = vsel %vm2069, %v1976, 0
      %v2101 = vsel %vm2069, %v1977, 0
      %v2102 = vsel %vm2069, %v1978, 0
      %v2103 = vsel %vm2069, %v1979, 0
      %v2104 = vsel %vm2069, %v1980, 0
      %v2105 = vsel %vm2069, %v1981, 0
      %v2106 = vsel %vm2069, %v1982, 0
      %v2107 = vsel %vm2070, %v1983, 0
      %v2108 = vsel %vm2070, %v1984, 0
      %v2109 = vsel %vm2070, %v1985, 0
      %v2110 = vsel %vm2070, %v1986, 0
      %v2111 = vsel %vm2070, %v1987, 0
      %v2112 = vsel %vm2070, %v1988, 0
      %v2113 = vsel %vm2070, %v1989, 0
      %v2114 = vsel %vm2070, %v1990, 0
      %v2115 = vsel %vm2070, %v1991, 0
      %v2116 = vsel %vm2070, %v1992, 0
      %v2117 = vsel %vm2070, %v1993, 0
      %v2118 = vsel %vm2070, %v1994, 0
      %v2119 = vld [vmem:[#allocation2] sm:$0xff]
      %v2120 = vld [vmem:[#allocation2 + $0x8] sm:$0xff]
      %v2121 = vld [vmem:[#allocation2 + $0x10] sm:$0xff]
      %v2122 = vld [vmem:[#allocation2 + $0x18] sm:$0xff]
      %v2123 = vld [vmem:[#allocation2 + $0x20] sm:$0xff]
      %v2124 = vld [vmem:[#allocation2 + $0x28] sm:$0xff]
      %v2125 = vld [vmem:[#allocation2 + $0x30] sm:$0xff]
      %v2126 = vld [vmem:[#allocation2 + $0x38] sm:$0xff]
      %v2127 = vld [vmem:[#allocation2 + $0x40] sm:$0xff]
      %v2128 = vld [vmem:[#allocation2 + $0x48] sm:$0xff]
      %v2129 = vld [vmem:[#allocation2 + $0x50] sm:$0xff]
      %v2130 = vld [vmem:[#allocation2 + $0x58] sm:$0xff]
      %v2131 = vunpack.c.l.bf16 %v2071
      %v2132 = vunpack.c.l.bf16 %v2072
      %v2133 = vunpack.c.l.bf16 %v2073
      %v2134 = vunpack.c.l.bf16 %v2074
      %v2135 = vunpack.c.l.bf16 %v2075
      %v2136 = vunpack.c.l.bf16 %v2076
      %v2137 = vunpack.c.l.bf16 %v2077
      %v2138 = vunpack.c.l.bf16 %v2078
      %v2139 = vunpack.c.l.bf16 %v2079
      %v2140 = vunpack.c.l.bf16 %v2080
      %v2141 = vunpack.c.l.bf16 %v2081
      %v2142 = vunpack.c.l.bf16 %v2082
      %v2143 = vunpack.c.h.bf16 %v2071
      %v2144 = vunpack.c.h.bf16 %v2072
      %v2145 = vunpack.c.h.bf16 %v2073
      %v2146 = vunpack.c.h.bf16 %v2074
      %v2147 = vunpack.c.h.bf16 %v2075
      %v2148 = vunpack.c.h.bf16 %v2076
      %v2149 = vunpack.c.h.bf16 %v2077
      %v2150 = vunpack.c.h.bf16 %v2078
      %v2151 = vunpack.c.h.bf16 %v2079
      %v2152 = vunpack.c.h.bf16 %v2080
      %v2153 = vunpack.c.h.bf16 %v2081
      %v2154 = vunpack.c.h.bf16 %v2082
      %v2155 = vunpack.c.l.bf16 %v2083
      %v2156 = vunpack.c.l.bf16 %v2084
      %v2157 = vunpack.c.l.bf16 %v2085
      %v2158 = vunpack.c.l.bf16 %v2086
      %v2159 = vunpack.c.l.bf16 %v2087
      %v2160 = vunpack.c.l.bf16 %v2088
      %v2161 = vunpack.c.l.bf16 %v2089
      %v2162 = vunpack.c.l.bf16 %v2090
      %v2163 = vunpack.c.l.bf16 %v2091
      %v2164 = vunpack.c.l.bf16 %v2092
      %v2165 = vunpack.c.l.bf16 %v2093
      %v2166 = vunpack.c.l.bf16 %v2094
      %v2167 = vunpack.c.h.bf16 %v2083
      %v2168 = vunpack.c.h.bf16 %v2084
      %v2169 = vunpack.c.h.bf16 %v2085
      %v2170 = vunpack.c.h.bf16 %v2086
      %v2171 = vunpack.c.h.bf16 %v2087
      %v2172 = vunpack.c.h.bf16 %v2088
      %v2173 = vunpack.c.h.bf16 %v2089
      %v2174 = vunpack.c.h.bf16 %v2090
      %v2175 = vunpack.c.h.bf16 %v2091
      %v2176 = vunpack.c.h.bf16 %v2092
      %v2177 = vunpack.c.h.bf16 %v2093
      %v2178 = vunpack.c.h.bf16 %v2094
      %v2179 = vunpack.c.l.bf16 %v2095
      %v2180 = vunpack.c.l.bf16 %v2096
      %v2181 = vunpack.c.l.bf16 %v2097
      %v2182 = vunpack.c.l.bf16 %v2098
      %v2183 = vunpack.c.l.bf16 %v2099
      %v2184 = vunpack.c.l.bf16 %v2100
      %v2185 = vunpack.c.l.bf16 %v2101
      %v2186 = vunpack.c.l.bf16 %v2102
      %v2187 = vunpack.c.l.bf16 %v2103
      %v2188 = vunpack.c.l.bf16 %v2104
      %v2189 = vunpack.c.l.bf16 %v2105
      %v2190 = vunpack.c.l.bf16 %v2106
      %v2191 = vunpack.c.h.bf16 %v2095
      %v2192 = vunpack.c.h.bf16 %v2096
      %v2193 = vunpack.c.h.bf16 %v2097
      %v2194 = vunpack.c.h.bf16 %v2098
      %v2195 = vunpack.c.h.bf16 %v2099
      %v2196 = vunpack.c.h.bf16 %v2100
      %v2197 = vunpack.c.h.bf16 %v2101
      %v2198 = vunpack.c.h.bf16 %v2102
      %v2199 = vunpack.c.h.bf16 %v2103
      %v2200 = vunpack.c.h.bf16 %v2104
      %v2201 = vunpack.c.h.bf16 %v2105
      %v2202 = vunpack.c.h.bf16 %v2106
      %v2203 = vunpack.c.l.bf16 %v2107
      %v2204 = vunpack.c.l.bf16 %v2108
      %v2205 = vunpack.c.l.bf16 %v2109
      %v2206 = vunpack.c.l.bf16 %v2110
      %v2207 = vunpack.c.l.bf16 %v2111
      %v2208 = vunpack.c.l.bf16 %v2112
      %v2209 = vunpack.c.l.bf16 %v2113
      %v2210 = vunpack.c.l.bf16 %v2114
      %v2211 = vunpack.c.l.bf16 %v2115
      %v2212 = vunpack.c.l.bf16 %v2116
      %v2213 = vunpack.c.l.bf16 %v2117
      %v2214 = vunpack.c.l.bf16 %v2118
      %v2215 = vunpack.c.h.bf16 %v2107
      %v2216 = vunpack.c.h.bf16 %v2108
      %v2217 = vunpack.c.h.bf16 %v2109
      %v2218 = vunpack.c.h.bf16 %v2110
      %v2219 = vunpack.c.h.bf16 %v2111
      %v2220 = vunpack.c.h.bf16 %v2112
      %v2221 = vunpack.c.h.bf16 %v2113
      %v2222 = vunpack.c.h.bf16 %v2114
      %v2223 = vunpack.c.h.bf16 %v2115
      %v2224 = vunpack.c.h.bf16 %v2116
      %v2225 = vunpack.c.h.bf16 %v2117
      %v2226 = vunpack.c.h.bf16 %v2118
      %v2227 = vadd.f32 %v2131, %v2143
      %v2228 = vadd.f32 %v2227, %v2155
      %v2229 = vadd.f32 %v2228, %v2167
      %v2230 = vadd.f32 %v2229, %v2179
      %v2231 = vadd.f32 %v2230, %v2191
      %v2232 = vadd.f32 %v2231, %v2203
      %v2233 = vadd.f32 %v2232, %v2215
      %v2234 = vadd.f32 %v2132, %v2144
      %v2235 = vadd.f32 %v2234, %v2156
      %v2236 = vadd.f32 %v2235, %v2168
      %v2237 = vadd.f32 %v2236, %v2180
      %v2238 = vadd.f32 %v2237, %v2192
      %v2239 = vadd.f32 %v2238, %v2204
      %v2240 = vadd.f32 %v2239, %v2216
      %v2241 = vadd.f32 %v2133, %v2145
      %v2242 = vadd.f32 %v2241, %v2157
      %v2243 = vadd.f32 %v2242, %v2169
      %v2244 = vadd.f32 %v2243, %v2181
      %v2245 = vadd.f32 %v2244, %v2193
      %v2246 = vadd.f32 %v2245, %v2205
      %v2247 = vadd.f32 %v2246, %v2217
      %v2248 = vadd.f32 %v2134, %v2146
      %v2249 = vadd.f32 %v2248, %v2158
      %v2250 = vadd.f32 %v2249, %v2170
      %v2251 = vadd.f32 %v2250, %v2182
      %v2252 = vadd.f32 %v2251, %v2194
      %v2253 = vadd.f32 %v2252, %v2206
      %v2254 = vadd.f32 %v2253, %v2218
      %v2255 = vadd.f32 %v2135, %v2147
      %v2256 = vadd.f32 %v2255, %v2159
      %v2257 = vadd.f32 %v2256, %v2171
      %v2258 = vadd.f32 %v2257, %v2183
      %v2259 = vadd.f32 %v2258, %v2195
      %v2260 = vadd.f32 %v2259, %v2207
      %v2261 = vadd.f32 %v2260, %v2219
      %v2262 = vadd.f32 %v2136, %v2148
      %v2263 = vadd.f32 %v2262, %v2160
      %v2264 = vadd.f32 %v2263, %v2172
      %v2265 = vadd.f32 %v2264, %v2184
      %v2266 = vadd.f32 %v2265, %v2196
      %v2267 = vadd.f32 %v2266, %v2208
      %v2268 = vadd.f32 %v2267, %v2220
      %v2269 = vadd.f32 %v2137, %v2149
      %v2270 = vadd.f32 %v2269, %v2161
      %v2271 = vadd.f32 %v2270, %v2173
      %v2272 = vadd.f32 %v2271, %v2185
      %v2273 = vadd.f32 %v2272, %v2197
      %v2274 = vadd.f32 %v2273, %v2209
      %v2275 = vadd.f32 %v2274, %v2221
      %v2276 = vadd.f32 %v2138, %v2150
      %v2277 = vadd.f32 %v2276, %v2162
      %v2278 = vadd.f32 %v2277, %v2174
      %v2279 = vadd.f32 %v2278, %v2186
      %v2280 = vadd.f32 %v2279, %v2198
      %v2281 = vadd.f32 %v2280, %v2210
      %v2282 = vadd.f32 %v2281, %v2222
      %v2283 = vadd.f32 %v2139, %v2151
      %v2284 = vadd.f32 %v2283, %v2163
      %v2285 = vadd.f32 %v2284, %v2175
      %v2286 = vadd.f32 %v2285, %v2187
      %v2287 = vadd.f32 %v2286, %v2199
      %v2288 = vadd.f32 %v2287, %v2211
      %v2289 = vadd.f32 %v2288, %v2223
      %v2290 = vadd.f32 %v2140, %v2152
      %v2291 = vadd.f32 %v2290, %v2164
      %v2292 = vadd.f32 %v2291, %v2176
      %v2293 = vadd.f32 %v2292, %v2188
      %v2294 = vadd.f32 %v2293, %v2200
      %v2295 = vadd.f32 %v2294, %v2212
      %v2296 = vadd.f32 %v2295, %v2224
      %v2297 = vadd.f32 %v2141, %v2153
      %v2298 = vadd.f32 %v2297, %v2165
      %v2299 = vadd.f32 %v2298, %v2177
      %v2300 = vadd.f32 %v2299, %v2189
      %v2301 = vadd.f32 %v2300, %v2201
      %v2302 = vadd.f32 %v2301, %v2213
      %v2303 = vadd.f32 %v2302, %v2225
      %v2304 = vadd.f32 %v2142, %v2154
      %v2305 = vadd.f32 %v2304, %v2166
      %v2306 = vadd.f32 %v2305, %v2178
      %v2307 = vadd.f32 %v2306, %v2190
      %v2308 = vadd.f32 %v2307, %v2202
      %v2309 = vadd.f32 %v2308, %v2214
      %v2310 = vadd.f32 %v2309, %v2226
      %v2311 = vadd.f32 %v2119, %v2233
      %v2312 = vadd.f32 %v2120, %v2240
      %v2313 = vadd.f32 %v2121, %v2247
      %v2314 = vadd.f32 %v2122, %v2254
      %v2315 = vadd.f32 %v2123, %v2261
      %v2316 = vadd.f32 %v2124, %v2268
      %v2317 = vadd.f32 %v2125, %v2275
      %v2318 = vadd.f32 %v2126, %v2282
      %v2319 = vadd.f32 %v2127, %v2289
      %v2320 = vadd.f32 %v2128, %v2296
      %v2321 = vadd.f32 %v2129, %v2303
      %v2322 = vadd.f32 %v2130, %v2310
      %2323 = vst [vmem:[#allocation2] sm:$0xff] %v2311
      %2324 = vst [vmem:[#allocation2 + $0x8] sm:$0xff] %v2312
      %2325 = vst [vmem:[#allocation2 + $0x10] sm:$0xff] %v2313
      %2326 = vst [vmem:[#allocation2 + $0x18] sm:$0xff] %v2314
      %2327 = vst [vmem:[#allocation2 + $0x20] sm:$0xff] %v2315
      %2328 = vst [vmem:[#allocation2 + $0x28] sm:$0xff] %v2316
      %2329 = vst [vmem:[#allocation2 + $0x30] sm:$0xff] %v2317
      %2330 = vst [vmem:[#allocation2 + $0x38] sm:$0xff] %v2318
      %2331 = vst [vmem:[#allocation2 + $0x40] sm:$0xff] %v2319
      %2332 = vst [vmem:[#allocation2 + $0x48] sm:$0xff] %v2320
      %2333 = vst [vmem:[#allocation2 + $0x50] sm:$0xff] %v2321
      %2334 = vst [vmem:[#allocation2 + $0x58] sm:$0xff] %v2322
      // Predicated region
      $region49: #{_model_forward.1} parent=43 // pred_check
        %p2335 = pneg %p304
      $region50: #{_model_forward.1} parent=43 // pred_check_branch
        %2337 = sbr.rel (%p2335) target = $region52
      $region51: #{_model_forward.1} parent=43 // pred_region
        %v2338 = vld [vmem:[#allocation2] sm:$0xff]
        %v2339 = vld [vmem:[#allocation2 + $0x8] sm:$0xff]
        %v2340 = vld [vmem:[#allocation2 + $0x10] sm:$0xff]
        %v2341 = vld [vmem:[#allocation2 + $0x18] sm:$0xff]
        %v2342 = vld [vmem:[#allocation2 + $0x20] sm:$0xff]
        %v2343 = vld [vmem:[#allocation2 + $0x28] sm:$0xff]
        %v2344 = vld [vmem:[#allocation2 + $0x30] sm:$0xff]
        %v2345 = vld [vmem:[#allocation2 + $0x38] sm:$0xff]
        %v2346 = vld [vmem:[#allocation2 + $0x40] sm:$0xff]
        %v2347 = vld [vmem:[#allocation2 + $0x48] sm:$0xff]
        %v2348 = vld [vmem:[#allocation2 + $0x50] sm:$0xff]
        %v2349 = vld [vmem:[#allocation2 + $0x58] sm:$0xff]
        %v2350 = vrot.slane %v2338, 4
        %v2351 = vadd.f32 %v2338, %v2350
        %v2352 = vrot.slane %v2351, 2
        %v2353 = vadd.f32 %v2351, %v2352
        %v2354 = vrot.slane %v2353, 1
        %v2355 = vadd.f32 %v2353, %v2354
        %v2356 = vrot.slane %v2339, 4
        %v2357 = vadd.f32 %v2339, %v2356
        %v2358 = vrot.slane %v2357, 2
        %v2359 = vadd.f32 %v2357, %v2358
        %v2360 = vrot.slane %v2359, 1
        %v2361 = vadd.f32 %v2359, %v2360
        %v2362 = vrot.slane %v2340, 4
        %v2363 = vadd.f32 %v2340, %v2362
        %v2364 = vrot.slane %v2363, 2
        %v2365 = vadd.f32 %v2363, %v2364
        %v2366 = vrot.slane %v2365, 1
        %v2367 = vadd.f32 %v2365, %v2366
        %v2368 = vrot.slane %v2341, 4
        %v2369 = vadd.f32 %v2341, %v2368
        %v2370 = vrot.slane %v2369, 2
        %v2371 = vadd.f32 %v2369, %v2370
        %v2372 = vrot.slane %v2371, 1
        %v2373 = vadd.f32 %v2371, %v2372
        %v2374 = vrot.slane %v2342, 4
        %v2375 = vadd.f32 %v2342, %v2374
        %v2376 = vrot.slane %v2375, 2
        %v2377 = vadd.f32 %v2375, %v2376
        %v2378 = vrot.slane %v2377, 1
        %v2379 = vadd.f32 %v2377, %v2378
        %v2380 = vrot.slane %v2343, 4
        %v2381 = vadd.f32 %v2343, %v2380
        %v2382 = vrot.slane %v2381, 2
        %v2383 = vadd.f32 %v2381, %v2382
        %v2384 = vrot.slane %v2383, 1
        %v2385 = vadd.f32 %v2383, %v2384
        %v2386 = vrot.slane %v2344, 4
        %v2387 = vadd.f32 %v2344, %v2386
        %v2388 = vrot.slane %v2387, 2
        %v2389 = vadd.f32 %v2387, %v2388
        %v2390 = vrot.slane %v2389, 1
        %v2391 = vadd.f32 %v2389, %v2390
        %v2392 = vrot.slane %v2345, 4
        %v2393 = vadd.f32 %v2345, %v2392
        %v2394 = vrot.slane %v2393, 2
        %v2395 = vadd.f32 %v2393, %v2394
        %v2396 = vrot.slane %v2395, 1
        %v2397 = vadd.f32 %v2395, %v2396
        %v2398 = vrot.slane %v2346, 4
        %v2399 = vadd.f32 %v2346, %v2398
        %v2400 = vrot.slane %v2399, 2
        %v2401 = vadd.f32 %v2399, %v2400
        %v2402 = vrot.slane %v2401, 1
        %v2403 = vadd.f32 %v2401, %v2402
        %v2404 = vrot.slane %v2347, 4
        %v2405 = vadd.f32 %v2347, %v2404
        %v2406 = vrot.slane %v2405, 2
        %v2407 = vadd.f32 %v2405, %v2406
        %v2408 = vrot.slane %v2407, 1
        %v2409 = vadd.f32 %v2407, %v2408
        %v2410 = vrot.slane %v2348, 4
        %v2411 = vadd.f32 %v2348, %v2410
        %v2412 = vrot.slane %v2411, 2
        %v2413 = vadd.f32 %v2411, %v2412
        %v2414 = vrot.slane %v2413, 1
        %v2415 = vadd.f32 %v2413, %v2414
        %v2416 = vrot.slane %v2349, 4
        %v2417 = vadd.f32 %v2349, %v2416
        %v2418 = vrot.slane %v2417, 2
        %v2419 = vadd.f32 %v2417, %v2418
        %v2420 = vrot.slane %v2419, 1
        %v2421 = vadd.f32 %v2419, %v2420
        %v2422 = vmul.f32 %v2355, 0.015625
        %v2423 = vmul.f32 %v2361, 0.015625
        %v2424 = vmul.f32 %v2367, 0.015625
        %v2425 = vmul.f32 %v2373, 0.015625
        %v2426 = vmul.f32 %v2379, 0.015625
        %v2427 = vmul.f32 %v2385, 0.015625
        %v2428 = vmul.f32 %v2391, 0.015625
        %v2429 = vmul.f32 %v2397, 0.015625
        %v2430 = vmul.f32 %v2403, 0.015625
        %v2431 = vmul.f32 %v2409, 0.015625
        %v2432 = vmul.f32 %v2415, 0.015625
        %v2433 = vmul.f32 %v2421, 0.015625
        %v2434 = vpack.c.bf16 %v2422, %v2422
        %v2435 = vpack.c.bf16 %v2423, %v2423
        %v2436 = vpack.c.bf16 %v2424, %v2424
        %v2437 = vpack.c.bf16 %v2425, %v2425
        %v2438 = vpack.c.bf16 %v2426, %v2426
        %v2439 = vpack.c.bf16 %v2427, %v2427
        %v2440 = vpack.c.bf16 %v2428, %v2428
        %v2441 = vpack.c.bf16 %v2429, %v2429
        %v2442 = vpack.c.bf16 %v2430, %v2430
        %v2443 = vpack.c.bf16 %v2431, %v2431
        %v2444 = vpack.c.bf16 %v2432, %v2432
        %v2445 = vpack.c.bf16 %v2433, %v2433
        %v2446 = vld [vmem:[%s5] sm:$0xf]
        %v2447 = vld [vmem:[%s5 + $0x4] sm:$0xf]
        %v2448 = vld [vmem:[%s5 + $0x8] sm:$0xf]
        %v2449 = vld [vmem:[%s5 + $0xc] sm:$0xf]
        %v2450 = vld [vmem:[%s5 + $0x10] sm:$0xf]
        %v2451 = vld [vmem:[%s5 + $0x14] sm:$0xf]
        %v2452 = vld [vmem:[%s5 + $0x18] sm:$0xf]
        %v2453 = vld [vmem:[%s5 + $0x1c] sm:$0xf]
        %v2454 = vld [vmem:[%s5 + $0x20] sm:$0xf]
        %v2455 = vld [vmem:[%s5 + $0x24] sm:$0xf]
        %v2456 = vld [vmem:[%s5 + $0x28] sm:$0xf]
        %v2457 = vld [vmem:[%s5 + $0x2c] sm:$0xf]
        %v2458 = vld [vmem:[%s5 + $0x30] sm:$0xf]
        %v2459 = vld [vmem:[%s5 + $0x34] sm:$0xf]
        %v2460 = vld [vmem:[%s5 + $0x38] sm:$0xf]
        %v2461 = vld [vmem:[%s5 + $0x3c] sm:$0xf]
        %v2462 = vld [vmem:[%s5 + $0x40] sm:$0xf]
        %v2463 = vld [vmem:[%s5 + $0x44] sm:$0xf]
        %v2464 = vld [vmem:[%s5 + $0x48] sm:$0xf]
        %v2465 = vld [vmem:[%s5 + $0x4c] sm:$0xf]
        %v2466 = vld [vmem:[%s5 + $0x50] sm:$0xf]
        %v2467 = vld [vmem:[%s5 + $0x54] sm:$0xf]
        %v2468 = vld [vmem:[%s5 + $0x58] sm:$0xf]
        %v2469 = vld [vmem:[%s5 + $0x5c] sm:$0xf]
        %v2470 = vld [vmem:[%s5 + $0x60] sm:$0xf]
        %v2471 = vld [vmem:[%s5 + $0x64] sm:$0xf]
        %v2472 = vld [vmem:[%s5 + $0x68] sm:$0xf]
        %v2473 = vld [vmem:[%s5 + $0x6c] sm:$0xf]
        %v2474 = vld [vmem:[%s5 + $0x70] sm:$0xf]
        %v2475 = vld [vmem:[%s5 + $0x74] sm:$0xf]
        %v2476 = vld [vmem:[%s5 + $0x78] sm:$0xf]
        %v2477 = vld [vmem:[%s5 + $0x7c] sm:$0xf]
        %v2478 = vld [vmem:[%s5 + $0x80] sm:$0xf]
        %v2479 = vld [vmem:[%s5 + $0x84] sm:$0xf]
        %v2480 = vld [vmem:[%s5 + $0x88] sm:$0xf]
        %v2481 = vld [vmem:[%s5 + $0x8c] sm:$0xf]
        %v2482 = vld [vmem:[%s5 + $0x90] sm:$0xf]
        %v2483 = vld [vmem:[%s5 + $0x94] sm:$0xf]
        %v2484 = vld [vmem:[%s5 + $0x98] sm:$0xf]
        %v2485 = vld [vmem:[%s5 + $0x9c] sm:$0xf]
        %v2486 = vld [vmem:[%s5 + $0xa0] sm:$0xf]
        %v2487 = vld [vmem:[%s5 + $0xa4] sm:$0xf]
        %v2488 = vld [vmem:[%s5 + $0xa8] sm:$0xf]
        %v2489 = vld [vmem:[%s5 + $0xac] sm:$0xf]
        %v2490 = vld [vmem:[%s5 + $0xb0] sm:$0xf]
        %v2491 = vld [vmem:[%s5 + $0xb4] sm:$0xf]
        %v2492 = vld [vmem:[%s5 + $0xb8] sm:$0xf]
        %v2493 = vld [vmem:[%s5 + $0xbc] sm:$0xf]
        %v2494 = vld [vmem:[%s5 + $0xc0] sm:$0xf]
        %v2495 = vld [vmem:[%s5 + $0xc4] sm:$0xf]
        %v2496 = vld [vmem:[%s5 + $0xc8] sm:$0xf]
        %v2497 = vld [vmem:[%s5 + $0xcc] sm:$0xf]
        %v2498 = vld [vmem:[%s5 + $0xd0] sm:$0xf]
        %v2499 = vld [vmem:[%s5 + $0xd4] sm:$0xf]
        %v2500 = vld [vmem:[%s5 + $0xd8] sm:$0xf]
        %v2501 = vld [vmem:[%s5 + $0xdc] sm:$0xf]
        %v2502 = vld [vmem:[%s5 + $0xe0] sm:$0xf]
        %v2503 = vld [vmem:[%s5 + $0xe4] sm:$0xf]
        %v2504 = vld [vmem:[%s5 + $0xe8] sm:$0xf]
        %v2505 = vld [vmem:[%s5 + $0xec] sm:$0xf]
        %v2506 = vld [vmem:[%s5 + $0xf0] sm:$0xf]
        %v2507 = vld [vmem:[%s5 + $0xf4] sm:$0xf]
        %v2508 = vld [vmem:[%s5 + $0xf8] sm:$0xf]
        %v2509 = vld [vmem:[%s5 + $0xfc] sm:$0xf]
        %v2510 = vld [vmem:[%s5 + $0x100] sm:$0xf]
        %v2511 = vld [vmem:[%s5 + $0x104] sm:$0xf]
        %v2512 = vld [vmem:[%s5 + $0x108] sm:$0xf]
        %v2513 = vld [vmem:[%s5 + $0x10c] sm:$0xf]
        %v2514 = vld [vmem:[%s5 + $0x110] sm:$0xf]
        %v2515 = vld [vmem:[%s5 + $0x114] sm:$0xf]
        %v2516 = vld [vmem:[%s5 + $0x118] sm:$0xf]
        %v2517 = vld [vmem:[%s5 + $0x11c] sm:$0xf]
        %v2518 = vld [vmem:[%s5 + $0x120] sm:$0xf]
        %v2519 = vld [vmem:[%s5 + $0x124] sm:$0xf]
        %v2520 = vld [vmem:[%s5 + $0x128] sm:$0xf]
        %v2521 = vld [vmem:[%s5 + $0x12c] sm:$0xf]
        %v2522 = vld [vmem:[%s5 + $0x130] sm:$0xf]
        %v2523 = vld [vmem:[%s5 + $0x134] sm:$0xf]
        %v2524 = vld [vmem:[%s5 + $0x138] sm:$0xf]
        %v2525 = vld [vmem:[%s5 + $0x13c] sm:$0xf]
        %v2526 = vld [vmem:[%s5 + $0x140] sm:$0xf]
        %v2527 = vld [vmem:[%s5 + $0x144] sm:$0xf]
        %v2528 = vld [vmem:[%s5 + $0x148] sm:$0xf]
        %v2529 = vld [vmem:[%s5 + $0x14c] sm:$0xf]
        %v2530 = vld [vmem:[%s5 + $0x150] sm:$0xf]
        %v2531 = vld [vmem:[%s5 + $0x154] sm:$0xf]
        %v2532 = vld [vmem:[%s5 + $0x158] sm:$0xf]
        %v2533 = vld [vmem:[%s5 + $0x15c] sm:$0xf]
        %v2534 = vld [vmem:[%s5 + $0x160] sm:$0xf]
        %v2535 = vld [vmem:[%s5 + $0x164] sm:$0xf]
        %v2536 = vld [vmem:[%s5 + $0x168] sm:$0xf]
        %v2537 = vld [vmem:[%s5 + $0x16c] sm:$0xf]
        %v2538 = vld [vmem:[%s5 + $0x170] sm:$0xf]
        %v2539 = vld [vmem:[%s5 + $0x174] sm:$0xf]
        %v2540 = vld [vmem:[%s5 + $0x178] sm:$0xf]
        %v2541 = vld [vmem:[%s5 + $0x17c] sm:$0xf]
        %v2542 = vld [vmem:[%s5 + $0x180] sm:$0xf]
        %v2543 = vld [vmem:[%s5 + $0x184] sm:$0xf]
        %v2544 = vld [vmem:[%s5 + $0x188] sm:$0xf]
        %v2545 = vld [vmem:[%s5 + $0x18c] sm:$0xf]
        %v2546 = vld [vmem:[%s5 + $0x190] sm:$0xf]
        %v2547 = vld [vmem:[%s5 + $0x194] sm:$0xf]
        %v2548 = vld [vmem:[%s5 + $0x198] sm:$0xf]
        %v2549 = vld [vmem:[%s5 + $0x19c] sm:$0xf]
        %v2550 = vld [vmem:[%s5 + $0x1a0] sm:$0xf]
        %v2551 = vld [vmem:[%s5 + $0x1a4] sm:$0xf]
        %v2552 = vld [vmem:[%s5 + $0x1a8] sm:$0xf]
        %v2553 = vld [vmem:[%s5 + $0x1ac] sm:$0xf]
        %v2554 = vld [vmem:[%s5 + $0x1b0] sm:$0xf]
        %v2555 = vld [vmem:[%s5 + $0x1b4] sm:$0xf]
        %v2556 = vld [vmem:[%s5 + $0x1b8] sm:$0xf]
        %v2557 = vld [vmem:[%s5 + $0x1bc] sm:$0xf]
        %v2558 = vld [vmem:[%s5 + $0x1c0] sm:$0xf]
        %v2559 = vld [vmem:[%s5 + $0x1c4] sm:$0xf]
        %v2560 = vld [vmem:[%s5 + $0x1c8] sm:$0xf]
        %v2561 = vld [vmem:[%s5 + $0x1cc] sm:$0xf]
        %v2562 = vld [vmem:[%s5 + $0x1d0] sm:$0xf]
        %v2563 = vld [vmem:[%s5 + $0x1d4] sm:$0xf]
        %v2564 = vld [vmem:[%s5 + $0x1d8] sm:$0xf]
        %v2565 = vld [vmem:[%s5 + $0x1dc] sm:$0xf]
        %v2566 = vld [vmem:[%s5 + $0x1e0] sm:$0xf]
        %v2567 = vld [vmem:[%s5 + $0x1e4] sm:$0xf]
        %v2568 = vld [vmem:[%s5 + $0x1e8] sm:$0xf]
        %v2569 = vld [vmem:[%s5 + $0x1ec] sm:$0xf]
        %v2570 = vld [vmem:[%s5 + $0x1f0] sm:$0xf]
        %v2571 = vld [vmem:[%s5 + $0x1f4] sm:$0xf]
        %v2572 = vld [vmem:[%s5 + $0x1f8] sm:$0xf]
        %v2573 = vld [vmem:[%s5 + $0x1fc] sm:$0xf]
        %v2574 = vld [vmem:[%s5 + $0x200] sm:$0xf]
        %v2575 = vld [vmem:[%s5 + $0x204] sm:$0xf]
        %v2576 = vld [vmem:[%s5 + $0x208] sm:$0xf]
        %v2577 = vld [vmem:[%s5 + $0x20c] sm:$0xf]
        %v2578 = vld [vmem:[%s5 + $0x210] sm:$0xf]
        %v2579 = vld [vmem:[%s5 + $0x214] sm:$0xf]
        %v2580 = vld [vmem:[%s5 + $0x218] sm:$0xf]
        %v2581 = vld [vmem:[%s5 + $0x21c] sm:$0xf]
        %v2582 = vld [vmem:[%s5 + $0x220] sm:$0xf]
        %v2583 = vld [vmem:[%s5 + $0x224] sm:$0xf]
        %v2584 = vld [vmem:[%s5 + $0x228] sm:$0xf]
        %v2585 = vld [vmem:[%s5 + $0x22c] sm:$0xf]
        %v2586 = vld [vmem:[%s5 + $0x230] sm:$0xf]
        %v2587 = vld [vmem:[%s5 + $0x234] sm:$0xf]
        %v2588 = vld [vmem:[%s5 + $0x238] sm:$0xf]
        %v2589 = vld [vmem:[%s5 + $0x23c] sm:$0xf]
        %v2590 = vld [vmem:[%s5 + $0x240] sm:$0xf]
        %v2591 = vld [vmem:[%s5 + $0x244] sm:$0xf]
        %v2592 = vld [vmem:[%s5 + $0x248] sm:$0xf]
        %v2593 = vld [vmem:[%s5 + $0x24c] sm:$0xf]
        %v2594 = vld [vmem:[%s5 + $0x250] sm:$0xf]
        %v2595 = vld [vmem:[%s5 + $0x254] sm:$0xf]
        %v2596 = vld [vmem:[%s5 + $0x258] sm:$0xf]
        %v2597 = vld [vmem:[%s5 + $0x25c] sm:$0xf]
        %v2598 = vld [vmem:[%s5 + $0x260] sm:$0xf]
        %v2599 = vld [vmem:[%s5 + $0x264] sm:$0xf]
        %v2600 = vld [vmem:[%s5 + $0x268] sm:$0xf]
        %v2601 = vld [vmem:[%s5 + $0x26c] sm:$0xf]
        %v2602 = vld [vmem:[%s5 + $0x270] sm:$0xf]
        %v2603 = vld [vmem:[%s5 + $0x274] sm:$0xf]
        %v2604 = vld [vmem:[%s5 + $0x278] sm:$0xf]
        %v2605 = vld [vmem:[%s5 + $0x27c] sm:$0xf]
        %v2606 = vld [vmem:[%s5 + $0x280] sm:$0xf]
        %v2607 = vld [vmem:[%s5 + $0x284] sm:$0xf]
        %v2608 = vld [vmem:[%s5 + $0x288] sm:$0xf]
        %v2609 = vld [vmem:[%s5 + $0x28c] sm:$0xf]
        %v2610 = vld [vmem:[%s5 + $0x290] sm:$0xf]
        %v2611 = vld [vmem:[%s5 + $0x294] sm:$0xf]
        %v2612 = vld [vmem:[%s5 + $0x298] sm:$0xf]
        %v2613 = vld [vmem:[%s5 + $0x29c] sm:$0xf]
        %v2614 = vld [vmem:[%s5 + $0x2a0] sm:$0xf]
        %v2615 = vld [vmem:[%s5 + $0x2a4] sm:$0xf]
        %v2616 = vld [vmem:[%s5 + $0x2a8] sm:$0xf]
        %v2617 = vld [vmem:[%s5 + $0x2ac] sm:$0xf]
        %v2618 = vld [vmem:[%s5 + $0x2b0] sm:$0xf]
        %v2619 = vld [vmem:[%s5 + $0x2b4] sm:$0xf]
        %v2620 = vld [vmem:[%s5 + $0x2b8] sm:$0xf]
        %v2621 = vld [vmem:[%s5 + $0x2bc] sm:$0xf]
        %v2622 = vld [vmem:[%s5 + $0x2c0] sm:$0xf]
        %v2623 = vld [vmem:[%s5 + $0x2c4] sm:$0xf]
        %v2624 = vld [vmem:[%s5 + $0x2c8] sm:$0xf]
        %v2625 = vld [vmem:[%s5 + $0x2cc] sm:$0xf]
        %v2626 = vld [vmem:[%s5 + $0x2d0] sm:$0xf]
        %v2627 = vld [vmem:[%s5 + $0x2d4] sm:$0xf]
        %v2628 = vld [vmem:[%s5 + $0x2d8] sm:$0xf]
        %v2629 = vld [vmem:[%s5 + $0x2dc] sm:$0xf]
        %v2630 = vld [vmem:[%s5 + $0x2e0] sm:$0xf]
        %v2631 = vld [vmem:[%s5 + $0x2e4] sm:$0xf]
        %v2632 = vld [vmem:[%s5 + $0x2e8] sm:$0xf]
        %v2633 = vld [vmem:[%s5 + $0x2ec] sm:$0xf]
        %v2634 = vld [vmem:[%s5 + $0x2f0] sm:$0xf]
        %v2635 = vld [vmem:[%s5 + $0x2f4] sm:$0xf]
        %v2636 = vld [vmem:[%s5 + $0x2f8] sm:$0xf]
        %v2637 = vld [vmem:[%s5 + $0x2fc] sm:$0xf]
        %v2830 = vunpack.c.l.b16 %v2446
        %v2831 = vunpack.c.l.b16 %v2447
        %v2832 = vunpack.c.l.b16 %v2448
        %v2833 = vunpack.c.l.b16 %v2449
        %v2834 = vunpack.c.l.b16 %v2450
        %v2835 = vunpack.c.l.b16 %v2451
        %v2836 = vunpack.c.l.b16 %v2452
        %v2837 = vunpack.c.l.b16 %v2453
        %v2838 = vunpack.c.l.b16 %v2454
        %v2839 = vunpack.c.l.b16 %v2455
        %v2840 = vunpack.c.l.b16 %v2456
        %v2841 = vunpack.c.l.b16 %v2457
        %v2842 = vunpack.c.l.b16 %v2458
        %v2843 = vunpack.c.l.b16 %v2459
        %v2844 = vunpack.c.l.b16 %v2460
        %v2845 = vunpack.c.l.b16 %v2461
        %v2846 = vunpack.c.l.b16 %v2462
        %v2847 = vunpack.c.l.b16 %v2463
        %v2848 = vunpack.c.l.b16 %v2464
        %v2849 = vunpack.c.l.b16 %v2465
        %v2850 = vunpack.c.l.b16 %v2466
        %v2851 = vunpack.c.l.b16 %v2467
        %v2852 = vunpack.c.l.b16 %v2468
        %v2853 = vunpack.c.l.b16 %v2469
        %v2854 = vunpack.c.l.b16 %v2470
        %v2855 = vunpack.c.l.b16 %v2471
        %v2856 = vunpack.c.l.b16 %v2472
        %v2857 = vunpack.c.l.b16 %v2473
        %v2858 = vunpack.c.l.b16 %v2474
        %v2859 = vunpack.c.l.b16 %v2475
        %v2860 = vunpack.c.l.b16 %v2476
        %v2861 = vunpack.c.l.b16 %v2477
        %v2862 = vunpack.c.l.b16 %v2478
        %v2863 = vunpack.c.l.b16 %v2479
        %v2864 = vunpack.c.l.b16 %v2480
        %v2865 = vunpack.c.l.b16 %v2481
        %v2866 = vunpack.c.l.b16 %v2482
        %v2867 = vunpack.c.l.b16 %v2483
        %v2868 = vunpack.c.l.b16 %v2484
        %v2869 = vunpack.c.l.b16 %v2485
        %v2870 = vunpack.c.l.b16 %v2486
        %v2871 = vunpack.c.l.b16 %v2487
        %v2872 = vunpack.c.l.b16 %v2488
        %v2873 = vunpack.c.l.b16 %v2489
        %v2874 = vunpack.c.l.b16 %v2490
        %v2875 = vunpack.c.l.b16 %v2491
        %v2876 = vunpack.c.l.b16 %v2492
        %v2877 = vunpack.c.l.b16 %v2493
        %v2878 = vunpack.c.l.b16 %v2494
        %v2879 = vunpack.c.l.b16 %v2495
        %v2880 = vunpack.c.l.b16 %v2496
        %v2881 = vunpack.c.l.b16 %v2497
        %v2882 = vunpack.c.l.b16 %v2498
        %v2883 = vunpack.c.l.b16 %v2499
        %v2884 = vunpack.c.l.b16 %v2500
        %v2885 = vunpack.c.l.b16 %v2501
        %v2886 = vunpack.c.l.b16 %v2502
        %v2887 = vunpack.c.l.b16 %v2503
        %v2888 = vunpack.c.l.b16 %v2504
        %v2889 = vunpack.c.l.b16 %v2505
        %v2890 = vunpack.c.l.b16 %v2506
        %v2891 = vunpack.c.l.b16 %v2507
        %v2892 = vunpack.c.l.b16 %v2508
        %v2893 = vunpack.c.l.b16 %v2509
        %v2894 = vunpack.c.l.b16 %v2510
        %v2895 = vunpack.c.l.b16 %v2511
        %v2896 = vunpack.c.l.b16 %v2512
        %v2897 = vunpack.c.l.b16 %v2513
        %v2898 = vunpack.c.l.b16 %v2514
        %v2899 = vunpack.c.l.b16 %v2515
        %v2900 = vunpack.c.l.b16 %v2516
        %v2901 = vunpack.c.l.b16 %v2517
        %v2902 = vunpack.c.l.b16 %v2518
        %v2903 = vunpack.c.l.b16 %v2519
        %v2904 = vunpack.c.l.b16 %v2520
        %v2905 = vunpack.c.l.b16 %v2521
        %v2906 = vunpack.c.l.b16 %v2522
        %v2907 = vunpack.c.l.b16 %v2523
        %v2908 = vunpack.c.l.b16 %v2524
        %v2909 = vunpack.c.l.b16 %v2525
        %v2910 = vunpack.c.l.b16 %v2526
        %v2911 = vunpack.c.l.b16 %v2527
        %v2912 = vunpack.c.l.b16 %v2528
        %v2913 = vunpack.c.l.b16 %v2529
        %v2914 = vunpack.c.l.b16 %v2530
        %v2915 = vunpack.c.l.b16 %v2531
        %v2916 = vunpack.c.l.b16 %v2532
        %v2917 = vunpack.c.l.b16 %v2533
        %v2918 = vunpack.c.l.b16 %v2534
        %v2919 = vunpack.c.l.b16 %v2535
        %v2920 = vunpack.c.l.b16 %v2536
        %v2921 = vunpack.c.l.b16 %v2537
        %v2922 = vunpack.c.l.b16 %v2538
        %v2923 = vunpack.c.l.b16 %v2539
        %v2924 = vunpack.c.l.b16 %v2540
        %v2925 = vunpack.c.l.b16 %v2541
        %v2926 = vunpack.c.l.b16 %v2542
        %v2927 = vunpack.c.l.b16 %v2543
        %v2928 = vunpack.c.l.b16 %v2544
        %v2929 = vunpack.c.l.b16 %v2545
        %v2930 = vunpack.c.l.b16 %v2546
        %v2931 = vunpack.c.l.b16 %v2547
        %v2932 = vunpack.c.l.b16 %v2548
        %v2933 = vunpack.c.l.b16 %v2549
        %v2934 = vunpack.c.l.b16 %v2550
        %v2935 = vunpack.c.l.b16 %v2551
        %v2936 = vunpack.c.l.b16 %v2552
        %v2937 = vunpack.c.l.b16 %v2553
        %v2938 = vunpack.c.l.b16 %v2554
        %v2939 = vunpack.c.l.b16 %v2555
        %v2940 = vunpack.c.l.b16 %v2556
        %v2941 = vunpack.c.l.b16 %v2557
        %v2942 = vunpack.c.l.b16 %v2558
        %v2943 = vunpack.c.l.b16 %v2559
        %v2944 = vunpack.c.l.b16 %v2560
        %v2945 = vunpack.c.l.b16 %v2561
        %v2946 = vunpack.c.l.b16 %v2562
        %v2947 = vunpack.c.l.b16 %v2563
        %v2948 = vunpack.c.l.b16 %v2564
        %v2949 = vunpack.c.l.b16 %v2565
        %v2950 = vunpack.c.l.b16 %v2566
        %v2951 = vunpack.c.l.b16 %v2567
        %v2952 = vunpack.c.l.b16 %v2568
        %v2953 = vunpack.c.l.b16 %v2569
        %v2954 = vunpack.c.l.b16 %v2570
        %v2955 = vunpack.c.l.b16 %v2571
        %v2956 = vunpack.c.l.b16 %v2572
        %v2957 = vunpack.c.l.b16 %v2573
        %v2958 = vunpack.c.l.b16 %v2574
        %v2959 = vunpack.c.l.b16 %v2575
        %v2960 = vunpack.c.l.b16 %v2576
        %v2961 = vunpack.c.l.b16 %v2577
        %v2962 = vunpack.c.l.b16 %v2578
        %v2963 = vunpack.c.l.b16 %v2579
        %v2964 = vunpack.c.l.b16 %v2580
        %v2965 = vunpack.c.l.b16 %v2581
        %v2966 = vunpack.c.l.b16 %v2582
        %v2967 = vunpack.c.l.b16 %v2583
        %v2968 = vunpack.c.l.b16 %v2584
        %v2969 = vunpack.c.l.b16 %v2585
        %v2970 = vunpack.c.l.b16 %v2586
        %v2971 = vunpack.c.l.b16 %v2587
        %v2972 = vunpack.c.l.b16 %v2588
        %v2973 = vunpack.c.l.b16 %v2589
        %v2974 = vunpack.c.l.b16 %v2590
        %v2975 = vunpack.c.l.b16 %v2591
        %v2976 = vunpack.c.l.b16 %v2592
        %v2977 = vunpack.c.l.b16 %v2593
        %v2978 = vunpack.c.l.b16 %v2594
        %v2979 = vunpack.c.l.b16 %v2595
        %v2980 = vunpack.c.l.b16 %v2596
        %v2981 = vunpack.c.l.b16 %v2597
        %v2982 = vunpack.c.l.b16 %v2598
        %v2983 = vunpack.c.l.b16 %v2599
        %v2984 = vunpack.c.l.b16 %v2600
        %v2985 = vunpack.c.l.b16 %v2601
        %v2986 = vunpack.c.l.b16 %v2602
        %v2987 = vunpack.c.l.b16 %v2603
        %v2988 = vunpack.c.l.b16 %v2604
        %v2989 = vunpack.c.l.b16 %v2605
        %v2990 = vunpack.c.l.b16 %v2606
        %v2991 = vunpack.c.l.b16 %v2607
        %v2992 = vunpack.c.l.b16 %v2608
        %v2993 = vunpack.c.l.b16 %v2609
        %v2994 = vunpack.c.l.b16 %v2610
        %v2995 = vunpack.c.l.b16 %v2611
        %v2996 = vunpack.c.l.b16 %v2612
        %v2997 = vunpack.c.l.b16 %v2613
        %v2998 = vunpack.c.l.b16 %v2614
        %v2999 = vunpack.c.l.b16 %v2615
        %v3000 = vunpack.c.l.b16 %v2616
        %v3001 = vunpack.c.l.b16 %v2617
        %v3002 = vunpack.c.l.b16 %v2618
        %v3003 = vunpack.c.l.b16 %v2619
        %v3004 = vunpack.c.l.b16 %v2620
        %v3005 = vunpack.c.l.b16 %v2621
        %v3006 = vunpack.c.l.b16 %v2622
        %v3007 = vunpack.c.l.b16 %v2623
        %v3008 = vunpack.c.l.b16 %v2624
        %v3009 = vunpack.c.l.b16 %v2625
        %v3010 = vunpack.c.l.b16 %v2626
        %v3011 = vunpack.c.l.b16 %v2627
        %v3012 = vunpack.c.l.b16 %v2628
        %v3013 = vunpack.c.l.b16 %v2629
        %v3014 = vunpack.c.l.b16 %v2630
        %v3015 = vunpack.c.l.b16 %v2631
        %v3016 = vunpack.c.l.b16 %v2632
        %v3017 = vunpack.c.l.b16 %v2633
        %v3018 = vunpack.c.l.b16 %v2634
        %v3019 = vunpack.c.l.b16 %v2635
        %v3020 = vunpack.c.l.b16 %v2636
        %v3021 = vunpack.c.l.b16 %v2637
        %v3022 = vpack.c.b16 %v2831, %v2830
        %v3023 = vpack.c.b16 %v2833, %v2832
        %v3024 = vpack.c.b16 %v2835, %v2834
        %v3025 = vpack.c.b16 %v2837, %v2836
        %v3026 = vpack.c.b16 %v2839, %v2838
        %v3027 = vpack.c.b16 %v2841, %v2840
        %v3028 = vpack.c.b16 %v2843, %v2842
        %v3029 = vpack.c.b16 %v2845, %v2844
        %v3030 = vpack.c.b16 %v2847, %v2846
        %v3031 = vpack.c.b16 %v2849, %v2848
        %v3032 = vpack.c.b16 %v2851, %v2850
        %v3033 = vpack.c.b16 %v2853, %v2852
        %v3034 = vpack.c.b16 %v2855, %v2854
        %v3035 = vpack.c.b16 %v2857, %v2856
        %v3036 = vpack.c.b16 %v2859, %v2858
        %v3037 = vpack.c.b16 %v2861, %v2860
        %v3038 = vpack.c.b16 %v2863, %v2862
        %v3039 = vpack.c.b16 %v2865, %v2864
        %v3040 = vpack.c.b16 %v2867, %v2866
        %v3041 = vpack.c.b16 %v2869, %v2868
        %v3042 = vpack.c.b16 %v2871, %v2870
        %v3043 = vpack.c.b16 %v2873, %v2872
        %v3044 = vpack.c.b16 %v2875, %v2874
        %v3045 = vpack.c.b16 %v2877, %v2876
        %v3046 = vpack.c.b16 %v2879, %v2878
        %v3047 = vpack.c.b16 %v2881, %v2880
        %v3048 = vpack.c.b16 %v2883, %v2882
        %v3049 = vpack.c.b16 %v2885, %v2884
        %v3050 = vpack.c.b16 %v2887, %v2886
        %v3051 = vpack.c.b16 %v2889, %v2888
        %v3052 = vpack.c.b16 %v2891, %v2890
        %v3053 = vpack.c.b16 %v2893, %v2892
        %v3054 = vpack.c.b16 %v2895, %v2894
        %v3055 = vpack.c.b16 %v2897, %v2896
        %v3056 = vpack.c.b16 %v2899, %v2898
        %v3057 = vpack.c.b16 %v2901, %v2900
        %v3058 = vpack.c.b16 %v2903, %v2902
        %v3059 = vpack.c.b16 %v2905, %v2904
        %v3060 = vpack.c.b16 %v2907, %v2906
        %v3061 = vpack.c.b16 %v2909, %v2908
        %v3062 = vpack.c.b16 %v2911, %v2910
        %v3063 = vpack.c.b16 %v2913, %v2912
        %v3064 = vpack.c.b16 %v2915, %v2914
        %v3065 = vpack.c.b16 %v2917, %v2916
        %v3066 = vpack.c.b16 %v2919, %v2918
        %v3067 = vpack.c.b16 %v2921, %v2920
        %v3068 = vpack.c.b16 %v2923, %v2922
        %v3069 = vpack.c.b16 %v2925, %v2924
        %v3070 = vpack.c.b16 %v2927, %v2926
        %v3071 = vpack.c.b16 %v2929, %v2928
        %v3072 = vpack.c.b16 %v2931, %v2930
        %v3073 = vpack.c.b16 %v2933, %v2932
        %v3074 = vpack.c.b16 %v2935, %v2934
        %v3075 = vpack.c.b16 %v2937, %v2936
        %v3076 = vpack.c.b16 %v2939, %v2938
        %v3077 = vpack.c.b16 %v2941, %v2940
        %v3078 = vpack.c.b16 %v2943, %v2942
        %v3079 = vpack.c.b16 %v2945, %v2944
        %v3080 = vpack.c.b16 %v2947, %v2946
        %v3081 = vpack.c.b16 %v2949, %v2948
        %v3082 = vpack.c.b16 %v2951, %v2950
        %v3083 = vpack.c.b16 %v2953, %v2952
        %v3084 = vpack.c.b16 %v2955, %v2954
        %v3085 = vpack.c.b16 %v2957, %v2956
        %v3086 = vpack.c.b16 %v2959, %v2958
        %v3087 = vpack.c.b16 %v2961, %v2960
        %v3088 = vpack.c.b16 %v2963, %v2962
        %v3089 = vpack.c.b16 %v2965, %v2964
        %v3090 = vpack.c.b16 %v2967, %v2966
        %v3091 = vpack.c.b16 %v2969, %v2968
        %v3092 = vpack.c.b16 %v2971, %v2970
        %v3093 = vpack.c.b16 %v2973, %v2972
        %v3094 = vpack.c.b16 %v2975, %v2974
        %v3095 = vpack.c.b16 %v2977, %v2976
        %v3096 = vpack.c.b16 %v2979, %v2978
        %v3097 = vpack.c.b16 %v2981, %v2980
        %v3098 = vpack.c.b16 %v2983, %v2982
        %v3099 = vpack.c.b16 %v2985, %v2984
        %v3100 = vpack.c.b16 %v2987, %v2986
        %v3101 = vpack.c.b16 %v2989, %v2988
        %v3102 = vpack.c.b16 %v2991, %v2990
        %v3103 = vpack.c.b16 %v2993, %v2992
        %v3104 = vpack.c.b16 %v2995, %v2994
        %v3105 = vpack.c.b16 %v2997, %v2996
        %v3106 = vpack.c.b16 %v2999, %v2998
        %v3107 = vpack.c.b16 %v3001, %v3000
        %v3108 = vpack.c.b16 %v3003, %v3002
        %v3109 = vpack.c.b16 %v3005, %v3004
        %v3110 = vpack.c.b16 %v3007, %v3006
        %v3111 = vpack.c.b16 %v3009, %v3008
        %v3112 = vpack.c.b16 %v3011, %v3010
        %v3113 = vpack.c.b16 %v3013, %v3012
        %v3114 = vpack.c.b16 %v3015, %v3014
        %v3115 = vpack.c.b16 %v3017, %v3016
        %v3116 = vpack.c.b16 %v3019, %v3018
        %v3117 = vpack.c.b16 %v3021, %v3020
        %3214 = vmatprep.subr.bf16.mxu0 0
        %3215 = vmatpush1.bf16.msra.mxu0 %v3022
        %3216 = vmatprep.subr.bf16.mxu0 0
        %3217 = vmatpush1.bf16.msra.mxu0 %v3023
        %3218 = vmatprep.subr.bf16.mxu0 0
        %3219 = vmatpush1.bf16.msra.mxu0 %v3024
        %3220 = vmatprep.subr.bf16.mxu0 0
        %3221 = vmatpush1.bf16.msra.mxu0 %v3025
        %3222 = vmatprep.subr.bf16.mxu0 0
        %3223 = vmatpush1.bf16.msra.mxu0 %v3026
        %3224 = vmatprep.subr.bf16.mxu0 0
        %3225 = vmatpush1.bf16.msra.mxu0 %v3027
        %3226 = vmatprep.subr.bf16.mxu0 0
        %3227 = vmatpush1.bf16.msra.mxu0 %v3028
        %3228 = vmatprep.subr.bf16.mxu0 0
        %3229 = vmatpush1.bf16.msra.mxu0 %v3029
        %3230 = vmatprep.subr.bf16.mxu0 0
        %3231 = vmatpush1.bf16.msra.mxu0 %v3030
        %3232 = vmatprep.subr.bf16.mxu0 0
        %3233 = vmatpush1.bf16.msra.mxu0 %v3031
        %3234 = vmatprep.subr.bf16.mxu0 0
        %3235 = vmatpush1.bf16.msra.mxu0 %v3032
        %3236 = vmatprep.subr.bf16.mxu0 0
        %3237 = vmatpush1.bf16.msra.mxu0 %v3033
        %3238 = vmatprep.subr.bf16.mxu0 0
        %3239 = vmatpush1.bf16.msra.mxu0 %v3034
        %3240 = vmatprep.subr.bf16.mxu0 0
        %3241 = vmatpush1.bf16.msra.mxu0 %v3035
        %3242 = vmatprep.subr.bf16.mxu0 0
        %3243 = vmatpush1.bf16.msra.mxu0 %v3036
        %3244 = vmatprep.subr.bf16.mxu0 0
        %3245 = vmatpush1.bf16.msra.mxu0 %v3037
        %3246 = vmatprep.mubr.bf16.mxu0 %v2435
        %3247 = vmatmul.mubr.bf16.gmra.mrb[0].mxu0 %v2434
        %v3248 = vpop.f32.mrb[0].mxu0
        %v3249 = vadd.f32 0.0, %v3248
        %v3250 = vpop.f32.mrb[0].mxu0
        %v3251 = vpop.f32.mrb[0].mxu0
        %v3252 = vpop.f32.mrb[0].mxu0
        %3253 = vdwg.mxu0
        %3254 = vmatprep.subr.bf16.mxu0 0
        %3255 = vmatpush1.bf16.msra.mxu0 %v3038
        %3256 = vmatprep.subr.bf16.mxu0 0
        %3257 = vmatpush1.bf16.msra.mxu0 %v3039
        %3258 = vmatprep.subr.bf16.mxu0 0
        %3259 = vmatpush1.bf16.msra.mxu0 %v3040
        %3260 = vmatprep.subr.bf16.mxu0 0
        %3261 = vmatpush1.bf16.msra.mxu0 %v3041
        %3262 = vmatprep.subr.bf16.mxu0 0
        %3263 = vmatpush1.bf16.msra.mxu0 %v3042
        %3264 = vmatprep.subr.bf16.mxu0 0
        %3265 = vmatpush1.bf16.msra.mxu0 %v3043
        %3266 = vmatprep.subr.bf16.mxu0 0
        %3267 = vmatpush1.bf16.msra.mxu0 %v3044
        %3268 = vmatprep.subr.bf16.mxu0 0
        %3269 = vmatpush1.bf16.msra.mxu0 %v3045
        %3270 = vmatprep.subr.bf16.mxu0 0
        %3271 = vmatpush1.bf16.msra.mxu0 %v3046
        %3272 = vmatprep.subr.bf16.mxu0 0
        %3273 = vmatpush1.bf16.msra.mxu0 %v3047
        %3274 = vmatprep.subr.bf16.mxu0 0
        %3275 = vmatpush1.bf16.msra.mxu0 %v3048
        %3276 = vmatprep.subr.bf16.mxu0 0
        %3277 = vmatpush1.bf16.msra.mxu0 %v3049
        %3278 = vmatprep.subr.bf16.mxu0 0
        %3279 = vmatpush1.bf16.msra.mxu0 %v3050
        %3280 = vmatprep.subr.bf16.mxu0 0
        %3281 = vmatpush1.bf16.msra.mxu0 %v3051
        %3282 = vmatprep.subr.bf16.mxu0 0
        %3283 = vmatpush1.bf16.msra.mxu0 %v3052
        %3284 = vmatprep.subr.bf16.mxu0 0
        %3285 = vmatpush1.bf16.msra.mxu0 %v3053
        %3286 = vmatprep.mubr.bf16.mxu0 %v2437
        %3287 = vmatmul.mubr.bf16.gmra.mrb[0].mxu0 %v2436
        %v3288 = vpop.f32.mrb[0].mxu0
        %v3289 = vadd.f32 %v3249, %v3288
        %v3290 = vpop.f32.mrb[0].mxu0
        %v3291 = vpop.f32.mrb[0].mxu0
        %v3292 = vpop.f32.mrb[0].mxu0
        %3293 = vdwg.mxu0
        %3294 = vmatprep.subr.bf16.mxu0 0
        %3295 = vmatpush1.bf16.msra.mxu0 %v3054
        %3296 = vmatprep.subr.bf16.mxu0 0
        %3297 = vmatpush1.bf16.msra.mxu0 %v3055
        %3298 = vmatprep.subr.bf16.mxu0 0
        %3299 = vmatpush1.bf16.msra.mxu0 %v3056
        %3300 = vmatprep.subr.bf16.mxu0 0
        %3301 = vmatpush1.bf16.msra.mxu0 %v3057
        %3302 = vmatprep.subr.bf16.mxu0 0
        %3303 = vmatpush1.bf16.msra.mxu0 %v3058
        %3304 = vmatprep.subr.bf16.mxu0 0
        %3305 = vmatpush1.bf16.msra.mxu0 %v3059
        %3306 = vmatprep.subr.bf16.mxu0 0
        %3307 = vmatpush1.bf16.msra.mxu0 %v3060
        %3308 = vmatprep.subr.bf16.mxu0 0
        %3309 = vmatpush1.bf16.msra.mxu0 %v3061
        %3310 = vmatprep.subr.bf16.mxu0 0
        %3311 = vmatpush1.bf16.msra.mxu0 %v3062
        %3312 = vmatprep.subr.bf16.mxu0 0
        %3313 = vmatpush1.bf16.msra.mxu0 %v3063
        %3314 = vmatprep.subr.bf16.mxu0 0
        %3315 = vmatpush1.bf16.msra.mxu0 %v3064
        %3316 = vmatprep.subr.bf16.mxu0 0
        %3317 = vmatpush1.bf16.msra.mxu0 %v3065
        %3318 = vmatprep.subr.bf16.mxu0 0
        %3319 = vmatpush1.bf16.msra.mxu0 %v3066
        %3320 = vmatprep.subr.bf16.mxu0 0
        %3321 = vmatpush1.bf16.msra.mxu0 %v3067
        %3322 = vmatprep.subr.bf16.mxu0 0
        %3323 = vmatpush1.bf16.msra.mxu0 %v3068
        %3324 = vmatprep.subr.bf16.mxu0 0
        %3325 = vmatpush1.bf16.msra.mxu0 %v3069
        %3326 = vmatprep.mubr.bf16.mxu0 %v2439
        %3327 = vmatmul.mubr.bf16.gmra.mrb[0].mxu0 %v2438
        %v3328 = vpop.f32.mrb[0].mxu0
        %v3329 = vadd.f32 %v3289, %v3328
        %v3330 = vpop.f32.mrb[0].mxu0
        %v3331 = vpop.f32.mrb[0].mxu0
        %v3332 = vpop.f32.mrb[0].mxu0
        %3333 = vdwg.mxu0
        %3334 = vmatprep.subr.bf16.mxu0 0
        %3335 = vmatpush1.bf16.msra.mxu0 %v3070
        %3336 = vmatprep.subr.bf16.mxu0 0
        %3337 = vmatpush1.bf16.msra.mxu0 %v3071
        %3338 = vmatprep.subr.bf16.mxu0 0
        %3339 = vmatpush1.bf16.msra.mxu0 %v3072
        %3340 = vmatprep.subr.bf16.mxu0 0
        %3341 = vmatpush1.bf16.msra.mxu0 %v3073
        %3342 = vmatprep.subr.bf16.mxu0 0
        %3343 = vmatpush1.bf16.msra.mxu0 %v3074
        %3344 = vmatprep.subr.bf16.mxu0 0
        %3345 = vmatpush1.bf16.msra.mxu0 %v3075
        %3346 = vmatprep.subr.bf16.mxu0 0
        %3347 = vmatpush1.bf16.msra.mxu0 %v3076
        %3348 = vmatprep.subr.bf16.mxu0 0
        %3349 = vmatpush1.bf16.msra.mxu0 %v3077
        %3350 = vmatprep.subr.bf16.mxu0 0
        %3351 = vmatpush1.bf16.msra.mxu0 %v3078
        %3352 = vmatprep.subr.bf16.mxu0 0
        %3353 = vmatpush1.bf16.msra.mxu0 %v3079
        %3354 = vmatprep.subr.bf16.mxu0 0
        %3355 = vmatpush1.bf16.msra.mxu0 %v3080
        %3356 = vmatprep.subr.bf16.mxu0 0
        %3357 = vmatpush1.bf16.msra.mxu0 %v3081
        %3358 = vmatprep.subr.bf16.mxu0 0
        %3359 = vmatpush1.bf16.msra.mxu0 %v3082
        %3360 = vmatprep.subr.bf16.mxu0 0
        %3361 = vmatpush1.bf16.msra.mxu0 %v3083
        %3362 = vmatprep.subr.bf16.mxu0 0
        %3363 = vmatpush1.bf16.msra.mxu0 %v3084
        %3364 = vmatprep.subr.bf16.mxu0 0
        %3365 = vmatpush1.bf16.msra.mxu0 %v3085
        %3366 = vmatprep.mubr.bf16.mxu0 %v2441
        %3367 = vmatmul.mubr.bf16.gmra.mrb[0].mxu0 %v2440
        %v3368 = vpop.f32.mrb[0].mxu0
        %v3369 = vadd.f32 %v3329, %v3368
        %v3370 = vpop.f32.mrb[0].mxu0
        %v3371 = vpop.f32.mrb[0].mxu0
        %v3372 = vpop.f32.mrb[0].mxu0
        %3373 = vdwg.mxu0
        %3374 = vmatprep.subr.bf16.mxu0 0
        %3375 = vmatpush1.bf16.msra.mxu0 %v3086
        %3376 = vmatprep.subr.bf16.mxu0 0
        %3377 = vmatpush1.bf16.msra.mxu0 %v3087
        %3378 = vmatprep.subr.bf16.mxu0 0
        %3379 = vmatpush1.bf16.msra.mxu0 %v3088
        %3380 = vmatprep.subr.bf16.mxu0 0
        %3381 = vmatpush1.bf16.msra.mxu0 %v3089
        %3382 = vmatprep.subr.bf16.mxu0 0
        %3383 = vmatpush1.bf16.msra.mxu0 %v3090
        %3384 = vmatprep.subr.bf16.mxu0 0
        %3385 = vmatpush1.bf16.msra.mxu0 %v3091
        %3386 = vmatprep.subr.bf16.mxu0 0
        %3387 = vmatpush1.bf16.msra.mxu0 %v3092
        %3388 = vmatprep.subr.bf16.mxu0 0
        %3389 = vmatpush1.bf16.msra.mxu0 %v3093
        %3390 = vmatprep.subr.bf16.mxu0 0
        %3391 = vmatpush1.bf16.msra.mxu0 %v3094
        %3392 = vmatprep.subr.bf16.mxu0 0
        %3393 = vmatpush1.bf16.msra.mxu0 %v3095
        %3394 = vmatprep.subr.bf16.mxu0 0
        %3395 = vmatpush1.bf16.msra.mxu0 %v3096
        %3396 = vmatprep.subr.bf16.mxu0 0
        %3397 = vmatpush1.bf16.msra.mxu0 %v3097
        %3398 = vmatprep.subr.bf16.mxu0 0
        %3399 = vmatpush1.bf16.msra.mxu0 %v3098
        %3400 = vmatprep.subr.bf16.mxu0 0
        %3401 = vmatpush1.bf16.msra.mxu0 %v3099
        %3402 = vmatprep.subr.bf16.mxu0 0
        %3403 = vmatpush1.bf16.msra.mxu0 %v3100
        %3404 = vmatprep.subr.bf16.mxu0 0
        %3405 = vmatpush1.bf16.msra.mxu0 %v3101
        %3406 = vmatprep.mubr.bf16.mxu0 %v2443
        %3407 = vmatmul.mubr.bf16.gmra.mrb[0].mxu0 %v2442
        %v3408 = vpop.f32.mrb[0].mxu0
        %v3409 = vadd.f32 %v3369, %v3408
        %v3410 = vpop.f32.mrb[0].mxu0
        %v3411 = vpop.f32.mrb[0].mxu0
        %v3412 = vpop.f32.mrb[0].mxu0
        %3413 = vdwg.mxu0
        %3414 = vmatprep.subr.bf16.mxu0 0
        %3415 = vmatpush1.bf16.msra.mxu0 %v3102
        %3416 = vmatprep.subr.bf16.mxu0 0
        %3417 = vmatpush1.bf16.msra.mxu0 %v3103
        %3418 = vmatprep.subr.bf16.mxu0 0
        %3419 = vmatpush1.bf16.msra.mxu0 %v3104
        %3420 = vmatprep.subr.bf16.mxu0 0
        %3421 = vmatpush1.bf16.msra.mxu0 %v3105
        %3422 = vmatprep.subr.bf16.mxu0 0
        %3423 = vmatpush1.bf16.msra.mxu0 %v3106
        %3424 = vmatprep.subr.bf16.mxu0 0
        %3425 = vmatpush1.bf16.msra.mxu0 %v3107
        %3426 = vmatprep.subr.bf16.mxu0 0
        %3427 = vmatpush1.bf16.msra.mxu0 %v3108
        %3428 = vmatprep.subr.bf16.mxu0 0
        %3429 = vmatpush1.bf16.msra.mxu0 %v3109
        %3430 = vmatprep.subr.bf16.mxu0 0
        %3431 = vmatpush1.bf16.msra.mxu0 %v3110
        %3432 = vmatprep.subr.bf16.mxu0 0
        %3433 = vmatpush1.bf16.msra.mxu0 %v3111
        %3434 = vmatprep.subr.bf16.mxu0 0
        %3435 = vmatpush1.bf16.msra.mxu0 %v3112
        %3436 = vmatprep.subr.bf16.mxu0 0
        %3437 = vmatpush1.bf16.msra.mxu0 %v3113
        %3438 = vmatprep.subr.bf16.mxu0 0
        %3439 = vmatpush1.bf16.msra.mxu0 %v3114
        %3440 = vmatprep.subr.bf16.mxu0 0
        %3441 = vmatpush1.bf16.msra.mxu0 %v3115
        %3442 = vmatprep.subr.bf16.mxu0 0
        %3443 = vmatpush1.bf16.msra.mxu0 %v3116
        %3444 = vmatprep.subr.bf16.mxu0 0
        %3445 = vmatpush1.bf16.msra.mxu0 %v3117
        %3446 = vmatprep.mubr.bf16.mxu0 %v2445
        %3447 = vmatmul.mubr.bf16.gmra.mrb[0].mxu0 %v2444
        %v3448 = vpop.f32.mrb[0].mxu0
        %v3449 = vadd.f32 %v3409, %v3448
        %v3450 = vpop.f32.mrb[0].mxu0
        %v3451 = vpop.f32.mrb[0].mxu0
        %v3452 = vpop.f32.mrb[0].mxu0
        %3453 = vdwg.mxu0
        %3454 = vst [vmem:[%s299] sm:$0x1] %v3449
      $region52: #{_model_forward.1} parent=43 // pred_fallthru
        _
      %p3455 = scmp.lt.s32.totalorder %s22, 1
      %s3456 = scalar_select %p3455, %s22, 1
      %p3457 = scmp.lt.s32.totalorder %s23, 1
      %s3458 = scalar_select %p3457, %s23, 1
      %s3459 = smul.addr %s3456, 2
      %s3460 = sadd.s32 %s3458, %s3459
      %s3461 = scalar_lea.vmem %s6, %s3460
      // Predicated region
      $region53: #{_model_forward.1} parent=43 // pred_check
        %p3462 = pneg %p191
      $region54: #{_model_forward.1} parent=43 // pred_check_branch
        %3464 = sbr.rel (%p3462) target = $region56
      $region55: #{_model_forward.1} parent=43 // pred_region
        _
      $region56: #{_model_forward.1} parent=43 // pred_fallthru
        _
    $region44: #{_model_forward.1} parent=5 // pred_fallthru
      _
    %p3465 = scmp.le.s32.totalorder 2, %s12
    // Predicated region
    $region57: #{_model_forward.1} parent=5 // pred_check
      %p3466 = pneg %p3465
    $region58: #{_model_forward.1} parent=5 // pred_check_branch
      %3468 = sbr.rel (%p3466) target = $region60
    $region59: #{_model_forward.1} parent=5 // pred_region
      %s3469 = ssub.s32 %s12, 2
      // Predicated region
      $region61: #{_model_forward.1} parent=59 // pred_check
        %p3470 = pneg %p197
      $region62: #{_model_forward.1} parent=59 // pred_check_branch
        %3472 = sbr.rel (%p3470) target = $region64
      $region63: #{_model_forward.1} parent=59 // pred_region
        %p3473 = scmp.lt.s32.totalorder %s25, 1
        %s3474 = scalar_select %p3473, %s25, 1
        %p3475 = scmp.lt.s32.totalorder %s26, 1
        %s3476 = scalar_select %p3475, %s26, 1
        %s3477 = smul.addr %s3474, 2
        %s3478 = sadd.s32 %s3476, %s3477
        %s3479 = scalar_lea.vmem %s6, %s3478
      $region64: #{_model_forward.1} parent=59 // pred_fallthru
        _
    $region60: #{_model_forward.1} parent=5 // pred_fallthru
      _
  $region6: #{_model_forward.1} parent=0 // loop_footer
    %s16 = sadd.s32 1, %s12
  $region7: #{_model_forward.1} parent=0 // loop_footer_branch
    %11 = sbr.rel target = $region3
  $region8: #{_model_forward.1} parent=0 // loop_exit
    _

</llo_original>
